<compile_context>
chip_gen: v6e
topology: v6e:2x2x1
jax: 0.10.0
libtpu: 0.0.40
codegen_flags: <defaults>
</compile_context>

<pallas_src>
import functools

import numpy as np
import jax
import jax.numpy as jnp
from jax import lax
from jax.experimental import pallas as pl
from jax.experimental.pallas import tpu as pltpu


def _cbam_kernel(x_ref, w1t_ref, b1t_ref, w2t_ref, b2t_ref, rowm_ref, colm_ref,
                 wsp_ref, bsp_ref, o_ref, *, K, H, W, C, Bb):
    HW = H * W
    P = K // 2

    x = x_ref[...].astype(jnp.float32)                      # (Bb*C, HW)

    # ----------------------- channel attention ----------------------------- #
    avg = jnp.mean(x, axis=1, keepdims=True)                 # (Bb*C, 1) spatial avg-pool
    mx = jnp.max(x, axis=1, keepdims=True)                   # (Bb*C, 1) spatial max-pool

    # pack every sample's [avg | max] columns into ONE (C, 2*Bb) operand so the
    # shared MLP is a single pair of matmuls for the whole block.
    cols = ([avg[b * C:(b + 1) * C] for b in range(Bb)]
            + [mx[b * C:(b + 1) * C] for b in range(Bb)])
    pooled = jnp.concatenate(cols, axis=1)                   # (C, 2*Bb)

    h = jnp.dot(w1t_ref[...], pooled,
                preferred_element_type=jnp.float32) + b1t_ref[...]   # (Cr, 2*Bb)
    h = jnp.maximum(h, 0.0)
    z = jnp.dot(w2t_ref[...], h,
                preferred_element_type=jnp.float32) + b2t_ref[...]   # (C, 2*Bb)
    gate_cols = jax.nn.sigmoid(z[:, :Bb] + z[:, Bb:])        # (C, Bb) avg+max gate
    gate = jnp.concatenate(
        [gate_cols[:, b:b + 1] for b in range(Bb)], axis=0)  # (Bb*C, 1)

    y = x * gate                                             # (Bb*C, HW)

    # ----------------------- spatial attention ------------------------------ #
    # per-sample channel pools, stacked into full-occupancy (Bb, HW) slabs
    spa = jnp.concatenate(
        [jnp.mean(y[b * C:(b + 1) * C], axis=0, keepdims=True) for b in range(Bb)],
        axis=0)                                              # (Bb, HW)
    spm = jnp.concatenate(
        [jnp.max(y[b * C:(b + 1) * C], axis=0, keepdims=True) for b in range(Bb)],
        axis=0)                                              # (Bb, HW)

    rowm = rowm_ref[...]                                     # (K, HW) row validity per kh
    colm = colm_ref[...]                                     # (K, HW) col validity per kw

    # Row shifts (dh*W): one XLU roll per kh per map; rows that wrap are zeroed
    # by the precomputed row masks -> exact Conv2d zero padding, no padded slabs.
    a_rows, m_rows = [], []
    for kh in range(K):
        dh = kh - P
        s = (-(dh * W)) % HW
        ra = spa if s == 0 else pltpu.roll(spa, s, axis=1)
        rm = spm if s == 0 else pltpu.roll(spm, s, axis=1)
        if dh != 0:
            msk = rowm[kh:kh + 1, :]                         # (1, HW) broadcast over Bb
            ra = ra * msk
            rm = rm * msk
        a_rows.append(ra)
        m_rows.append(rm)

    total = jnp.full((Bb, HW), bsp_ref[0], dtype=jnp.float32)
    for kw in range(K):                                      # unrolled KxK conv
        dw = kw - P
        acc = jnp.zeros((Bb, HW), jnp.float32)               # per-kw partial accumulator
        for kh in range(K):
            wa = wsp_ref[kh * K + kw]                        # weight[0, 0, kh, kw]
            wm = wsp_ref[K * K + kh * K + kw]                # weight[0, 1, kh, kw]
            acc = acc + wa * a_rows[kh] + wm * m_rows[kh]
        s = (-dw) % HW
        if s != 0:                                           # column shift + validity mask
            acc = pltpu.roll(acc, s, axis=1) * colm[kw:kw + 1, :]
        total = total + acc

    attn = jax.nn.sigmoid(total)                             # (Bb, HW)
    attn_full = jnp.concatenate(
        [jnp.broadcast_to(attn[b:b + 1, :], (C, HW)) for b in range(Bb)], axis=0)
    o_ref[...] = (y * attn_full).astype(o_ref.dtype)         # lane-dense store


def _pick_block_batch(B):
    """Samples per grid step: fill the 8 f32 sublanes of the spatial slab when
    possible, while keeping >= 2 grid steps so the parallel axis can use both
    TensorCores on v7x."""
    divisors = [d for d in range(min(B, 8), 0, -1) if B % d == 0]
    for d in divisors:
        if B // d >= 2:
            return d
    return divisors[0]


def cbam_pallas(x, w1, b1, w2, b2, wsp4, bsp):
    B, C, H, W = x.shape
    K = wsp4.shape[-1]
    P = K // 2
    HW = H * W
    Cr = w1.shape[1]

    # layout assumptions behind the lane-dense stores / clean (8,128) tiling
    assert HW % 128 == 0, "H*W must be a multiple of 128"
    assert C % 8 == 0, "C must be a multiple of 8"

    # TODO(synk): for B == 1 on v7x the single-step grid leaves one TensorCore
    # idle; splitting HW would need a multi-pass pooling scheme.
    Bb = _pick_block_batch(B)
    grid = (B // Bb,)

    xf = x.reshape(B * C, HW)                # contiguous reshape (no transpose)
    w1t = w1.T                               # (Cr, C)
    b1t = b1.reshape(Cr, 1)
    w2t = w2.T                               # (C, Cr)
    b2t = b2.reshape(C, 1)
    wsp_flat = wsp4.reshape(2 * K * K)

    # precomputed Conv2d zero-padding validity masks (host side, tiny)
    hw = np.arange(HW)
    row, col = hw // W, hw % W
    rowmask = jnp.asarray(np.stack(
        [((row + (kh - P) >= 0) & (row + (kh - P) < H)) for kh in range(K)]
    ).astype(np.float32))                    # (K, HW)
    colmask = jnp.asarray(np.stack(
        [((col + (kw - P) >= 0) & (col + (kw - P) < W)) for kw in range(K)]
    ).astype(np.float32))                    # (K, HW)

    itemsize = jnp.dtype(x.dtype).itemsize
    blk = Bb * C * HW
    vmem_limit = int(min(100 * 1024 * 1024,
                         max(32 * 1024 * 1024,
                             4 * blk * itemsize + 8 * blk * 4 + (4 << 20))))

    cost = pl.CostEstimate(
        flops=int(B * (6 * C * HW + 4 * K * K * HW + 8 * C * Cr)),
        transcendentals=int(2 * B * (C + HW)),
        bytes_accessed=int(2 * B * C * HW * itemsize),
    )

    kernel = functools.partial(_cbam_kernel, K=K, H=H, W=W, C=C, Bb=Bb)
    out = pl.pallas_call(
        kernel,
        out_shape=jax.ShapeDtypeStruct((B * C, HW), x.dtype),
        grid=grid,
        in_specs=[
            pl.BlockSpec((Bb * C, HW), lambda i: (i, 0)),            # x (Bb samples)
            pl.BlockSpec((Cr, C), lambda i: (0, 0)),                 # fc1 weight^T
            pl.BlockSpec((Cr, 1), lambda i: (0, 0)),                 # fc1 bias
            pl.BlockSpec((C, Cr), lambda i: (0, 0)),                 # fc2 weight^T
            pl.BlockSpec((C, 1), lambda i: (0, 0)),                  # fc2 bias
            pl.BlockSpec((K, HW), lambda i: (0, 0)),                 # conv row-validity masks
            pl.BlockSpec((K, HW), lambda i: (0, 0)),                 # conv col-validity masks
            pl.BlockSpec(memory_space=pltpu.MemorySpace.SMEM),       # conv weights (flat)
            pl.BlockSpec(memory_space=pltpu.MemorySpace.SMEM),       # conv bias
        ],
        out_specs=pl.BlockSpec((Bb * C, HW), lambda i: (i, 0)),
        compiler_params=pltpu.CompilerParams(
            dimension_semantics=("parallel",),
            vmem_limit_bytes=vmem_limit),
        cost_estimate=cost,
    )(xf, w1t, b1t, w2t, b2t, rowmask, colmask, wsp_flat, bsp)
    return out.reshape(B, C, H, W)


def cbam_ref(x, w1, b1, w2, b2, wsp4, bsp):
    """Pure-JAX reference mirroring the PyTorch forward (NCHW)."""
    avg = jnp.mean(x, axis=(2, 3))                  # (B, C)
    mx = jnp.max(x, axis=(2, 3))                    # (B, C)

    def mlp(v):
        h = jnp.maximum(v @ w1 + b1, 0.0)
        return h @ w2 + b2

    gate = jax.nn.sigmoid(mlp(avg) + mlp(mx))       # (B, C)
    y = x * gate[:, :, None, None]

    sp_avg = jnp.mean(y, axis=1, keepdims=True)
    sp_max = jnp.max(y, axis=1, keepdims=True)
    cat = jnp.concatenate([sp_avg, sp_max], axis=1)  # (B, 2, H, W)
    P = wsp4.shape[-1] // 2
    conv = lax.conv_general_dilated(
        cat, wsp4, (1, 1), [(P, P), (P, P)],
        dimension_numbers=("NCHW", "OIHW", "NCHW"))
    conv = conv + bsp.reshape(1, 1, 1, 1)
    return jax.nn.sigmoid(conv) * y


if __name__ == "__main__":
    B, C, H, W = 16, 32, 16, 16         # in_channels=32, reduction=16 -> hidden=2
    reduction, K = 16, 7
    Cr = C // reduction

    key = jax.random.PRNGKey(0)
    ks = jax.random.split(key, 7)
    # deterministic synthetic parameters (Conv2d 1x1 weights folded to matmul form)
    w1 = jax.random.normal(ks[0], (C, Cr), jnp.float32) * 0.2    # fc1 weight^T
    b1 = jax.random.normal(ks[1], (1, Cr), jnp.float32) * 0.1    # fc1 bias
    w2 = jax.random.normal(ks[2], (Cr, C), jnp.float32) * 0.2    # fc2 weight^T
    b2 = jax.random.normal(ks[3], (1, C), jnp.float32) * 0.1     # fc2 bias
    wsp4 = jax.random.normal(ks[4], (1, 2, K, K), jnp.float32) * 0.1  # spatial conv weight
    bsp = jax.random.normal(ks[5], (1,), jnp.float32) * 0.1           # spatial conv bias
    x = jax.random.normal(ks[6], (B, C, H, W), jnp.float32)

    out = jax.jit(cbam_pallas)(x, w1, b1, w2, b2, wsp4, bsp)
    out = jax.block_until_ready(out)

    ref = cbam_ref(x, w1, b1, w2, b2, wsp4, bsp)
    assert out.shape == ref.shape == (B, C, H, W)
    err = float(jnp.max(jnp.abs(out - ref)))
    if err > 5e-4:
        raise AssertionError(f"mismatch vs reference: max abs err {err}")
    print("KERNEL_OK")
</pallas_src>

<mosaic_0001>
module attributes {stable_mosaic.version = 11 : i64} {
  func.func @_cbam_kernel(%arg0: i32, %arg1: memref<256x256xf32, #tpu.memory_space<vmem>>, %arg2: memref<2x32xf32, #tpu.memory_space<vmem>>, %arg3: memref<2x1xf32, #tpu.memory_space<vmem>>, %arg4: memref<32x2xf32, #tpu.memory_space<vmem>>, %arg5: memref<32x1xf32, #tpu.memory_space<vmem>>, %arg6: memref<7x256xf32, #tpu.memory_space<vmem>>, %arg7: memref<7x256xf32, #tpu.memory_space<vmem>>, %arg8: memref<98xf32, #tpu.memory_space<smem>>, %arg9: memref<1xf32, #tpu.memory_space<smem>>, %arg10: memref<256x256xf32, #tpu.memory_space<vmem>>) attributes {dimension_semantics = [#tpu.dimension_semantics<parallel>], iteration_bounds = array<i64: 2>, scalar_prefetch = 0 : i64, scratch_operands = 0 : i64, tpu.core_type = #tpu.core_type<tc>, window_params = [{transform_indices = @transform_0, window_bounds = array<i64: 256, 256>}, {pipeline_mode = #tpu.pipeline_mode<synchronous>, transform_indices = @transform_1, window_bounds = array<i64: 2, 32>}, {pipeline_mode = #tpu.pipeline_mode<synchronous>, transform_indices = @transform_2, window_bounds = array<i64: 2, 1>}, {pipeline_mode = #tpu.pipeline_mode<synchronous>, transform_indices = @transform_3, window_bounds = array<i64: 32, 2>}, {pipeline_mode = #tpu.pipeline_mode<synchronous>, transform_indices = @transform_4, window_bounds = array<i64: 32, 1>}, {pipeline_mode = #tpu.pipeline_mode<synchronous>, transform_indices = @transform_5, window_bounds = array<i64: 7, 256>}, {pipeline_mode = #tpu.pipeline_mode<synchronous>, transform_indices = @transform_6, window_bounds = array<i64: 7, 256>}, {transform_indices = @transform_7, window_bounds = array<i64: 98>}, {transform_indices = @transform_8, window_bounds = array<i64: 1>}, {transform_indices = @transform_9, window_bounds = array<i64: 256, 256>}]} {
    %c0 = arith.constant 0 : index
    %c0_0 = arith.constant 0 : index
    %0 = vector.load %arg1[%c0, %c0_0] : memref<256x256xf32, #tpu.memory_space<vmem>>, vector<256x256xf32>
    %cst = arith.constant dense<0.000000e+00> : vector<256xf32>
    %1 = vector.multi_reduction <add>, %0, %cst [1] : vector<256x256xf32> to vector<256xf32>
    %2 = vector.shape_cast %1 : vector<256xf32> to vector<256x1xf32>
    %cst_1 = arith.constant 2.560000e+02 : f32
    %3 = vector.broadcast %cst_1 : f32 to vector<256x1xf32>
    %4 = arith.divf %2, %3 : vector<256x1xf32>
    %cst_2 = arith.constant dense<0xFF800000> : vector<256xf32>
    %5 = vector.multi_reduction <maximumf>, %0, %cst_2 [1] : vector<256x256xf32> to vector<256xf32>
    %6 = vector.shape_cast %5 : vector<256xf32> to vector<256x1xf32>
    %7 = vector.extract_strided_slice %4 {offsets = [0, 0], sizes = [32, 1], strides = [1, 1]} : vector<256x1xf32> to vector<32x1xf32>
    %8 = vector.extract_strided_slice %4 {offsets = [32, 0], sizes = [32, 1], strides = [1, 1]} : vector<256x1xf32> to vector<32x1xf32>
    %9 = vector.extract_strided_slice %4 {offsets = [64, 0], sizes = [32, 1], strides = [1, 1]} : vector<256x1xf32> to vector<32x1xf32>
    %10 = vector.extract_strided_slice %4 {offsets = [96, 0], sizes = [32, 1], strides = [1, 1]} : vector<256x1xf32> to vector<32x1xf32>
    %11 = vector.extract_strided_slice %4 {offsets = [128, 0], sizes = [32, 1], strides = [1, 1]} : vector<256x1xf32> to vector<32x1xf32>
    %12 = vector.extract_strided_slice %4 {offsets = [160, 0], sizes = [32, 1], strides = [1, 1]} : vector<256x1xf32> to vector<32x1xf32>
    %13 = vector.extract_strided_slice %4 {offsets = [192, 0], sizes = [32, 1], strides = [1, 1]} : vector<256x1xf32> to vector<32x1xf32>
    %14 = vector.extract_strided_slice %4 {offsets = [224, 0], sizes = [32, 1], strides = [1, 1]} : vector<256x1xf32> to vector<32x1xf32>
    %15 = vector.extract_strided_slice %6 {offsets = [0, 0], sizes = [32, 1], strides = [1, 1]} : vector<256x1xf32> to vector<32x1xf32>
    %16 = vector.extract_strided_slice %6 {offsets = [32, 0], sizes = [32, 1], strides = [1, 1]} : vector<256x1xf32> to vector<32x1xf32>
    %17 = vector.extract_strided_slice %6 {offsets = [64, 0], sizes = [32, 1], strides = [1, 1]} : vector<256x1xf32> to vector<32x1xf32>
    %18 = vector.extract_strided_slice %6 {offsets = [96, 0], sizes = [32, 1], strides = [1, 1]} : vector<256x1xf32> to vector<32x1xf32>
    %19 = vector.extract_strided_slice %6 {offsets = [128, 0], sizes = [32, 1], strides = [1, 1]} : vector<256x1xf32> to vector<32x1xf32>
    %20 = vector.extract_strided_slice %6 {offsets = [160, 0], sizes = [32, 1], strides = [1, 1]} : vector<256x1xf32> to vector<32x1xf32>
    %21 = vector.extract_strided_slice %6 {offsets = [192, 0], sizes = [32, 1], strides = [1, 1]} : vector<256x1xf32> to vector<32x1xf32>
    %22 = vector.extract_strided_slice %6 {offsets = [224, 0], sizes = [32, 1], strides = [1, 1]} : vector<256x1xf32> to vector<32x1xf32>
    %23 = tpu.concatenate %7, %8, %9, %10, %11, %12, %13, %14, %15, %16, %17, %18, %19, %20, %21, %22 in 1 : vector<32x1xf32>, vector<32x1xf32>, vector<32x1xf32>, vector<32x1xf32>, vector<32x1xf32>, vector<32x1xf32>, vector<32x1xf32>, vector<32x1xf32>, vector<32x1xf32>, vector<32x1xf32>, vector<32x1xf32>, vector<32x1xf32>, vector<32x1xf32>, vector<32x1xf32>, vector<32x1xf32>, vector<32x1xf32> -> vector<32x16xf32>
    %c0_3 = arith.constant 0 : index
    %c0_4 = arith.constant 0 : index
    %24 = vector.load %arg2[%c0_3, %c0_4] : memref<2x32xf32, #tpu.memory_space<vmem>>, vector<2x32xf32>
    %cst_5 = arith.constant dense<0.000000e+00> : vector<2x16xf32>
    %25 = tpu.matmul %24, %23, %cst_5 {dimension_numbers = #tpu.dot_dimension_numbers<[1], [0], [0], [1], [0, 0, 1, 1], [], []>} : vector<2x32xf32>, vector<32x16xf32>, vector<2x16xf32> -> vector<2x16xf32>
    %c0_6 = arith.constant 0 : index
    %c0_7 = arith.constant 0 : index
    %26 = vector.load %arg3[%c0_6, %c0_7] : memref<2x1xf32, #tpu.memory_space<vmem>>, vector<2x1xf32>
    %27 = vector.broadcast %26 : vector<2x1xf32> to vector<2x16xf32>
    %28 = arith.addf %25, %27 : vector<2x16xf32>
    %cst_8 = arith.constant 0.000000e+00 : f32
    %29 = vector.broadcast %cst_8 : f32 to vector<2x16xf32>
    %30 = arith.maximumf %28, %29 : vector<2x16xf32>
    %c0_9 = arith.constant 0 : index
    %c0_10 = arith.constant 0 : index
    %31 = vector.load %arg4[%c0_9, %c0_10] : memref<32x2xf32, #tpu.memory_space<vmem>>, vector<32x2xf32>
    %cst_11 = arith.constant dense<0.000000e+00> : vector<32x16xf32>
    %32 = tpu.matmul %31, %30, %cst_11 {dimension_numbers = #tpu.dot_dimension_numbers<[1], [0], [0], [1], [0, 0, 1, 1], [], []>} : vector<32x2xf32>, vector<2x16xf32>, vector<32x16xf32> -> vector<32x16xf32>
    %c0_12 = arith.constant 0 : index
    %c0_13 = arith.constant 0 : index
    %33 = vector.load %arg5[%c0_12, %c0_13] : memref<32x1xf32, #tpu.memory_space<vmem>>, vector<32x1xf32>
    %34 = vector.broadcast %33 : vector<32x1xf32> to vector<32x16xf32>
    %35 = arith.addf %32, %34 : vector<32x16xf32>
    %36 = vector.extract_strided_slice %35 {offsets = [0, 0], sizes = [32, 8], strides = [1, 1]} : vector<32x16xf32> to vector<32x8xf32>
    %37 = vector.extract_strided_slice %35 {offsets = [0, 8], sizes = [32, 8], strides = [1, 1]} : vector<32x16xf32> to vector<32x8xf32>
    %38 = arith.addf %36, %37 : vector<32x8xf32>
    %39 = arith.negf %38 : vector<32x8xf32>
    %40 = math.exp %39 : vector<32x8xf32>
    %cst_14 = arith.constant 1.000000e+00 : f32
    %41 = vector.broadcast %cst_14 : f32 to vector<32x8xf32>
    %42 = arith.addf %41, %40 : vector<32x8xf32>
    %43 = arith.divf %41, %42 : vector<32x8xf32>
    %44 = vector.extract_strided_slice %43 {offsets = [0, 0], sizes = [32, 1], strides = [1, 1]} : vector<32x8xf32> to vector<32x1xf32>
    %45 = vector.extract_strided_slice %43 {offsets = [0, 1], sizes = [32, 1], strides = [1, 1]} : vector<32x8xf32> to vector<32x1xf32>
    %46 = vector.extract_strided_slice %43 {offsets = [0, 2], sizes = [32, 1], strides = [1, 1]} : vector<32x8xf32> to vector<32x1xf32>
    %47 = vector.extract_strided_slice %43 {offsets = [0, 3], sizes = [32, 1], strides = [1, 1]} : vector<32x8xf32> to vector<32x1xf32>
    %48 = vector.extract_strided_slice %43 {offsets = [0, 4], sizes = [32, 1], strides = [1, 1]} : vector<32x8xf32> to vector<32x1xf32>
    %49 = vector.extract_strided_slice %43 {offsets = [0, 5], sizes = [32, 1], strides = [1, 1]} : vector<32x8xf32> to vector<32x1xf32>
    %50 = vector.extract_strided_slice %43 {offsets = [0, 6], sizes = [32, 1], strides = [1, 1]} : vector<32x8xf32> to vector<32x1xf32>
    %51 = vector.extract_strided_slice %43 {offsets = [0, 7], sizes = [32, 1], strides = [1, 1]} : vector<32x8xf32> to vector<32x1xf32>
    %52 = tpu.concatenate %44, %45, %46, %47, %48, %49, %50, %51 in 0 : vector<32x1xf32>, vector<32x1xf32>, vector<32x1xf32>, vector<32x1xf32>, vector<32x1xf32>, vector<32x1xf32>, vector<32x1xf32>, vector<32x1xf32> -> vector<256x1xf32>
    %53 = vector.broadcast %52 : vector<256x1xf32> to vector<256x256xf32>
    %54 = arith.mulf %0, %53 : vector<256x256xf32>
    %55 = vector.extract_strided_slice %54 {offsets = [0, 0], sizes = [32, 256], strides = [1, 1]} : vector<256x256xf32> to vector<32x256xf32>
    %cst_15 = arith.constant dense<0.000000e+00> : vector<256xf32>
    %56 = vector.multi_reduction <add>, %55, %cst_15 [0] : vector<32x256xf32> to vector<256xf32>
    %57 = vector.shape_cast %56 : vector<256xf32> to vector<1x256xf32>
    %cst_16 = arith.constant 3.200000e+01 : f32
    %58 = vector.broadcast %cst_16 : f32 to vector<1x256xf32>
    %59 = arith.divf %57, %58 : vector<1x256xf32>
    %60 = vector.extract_strided_slice %54 {offsets = [32, 0], sizes = [32, 256], strides = [1, 1]} : vector<256x256xf32> to vector<32x256xf32>
    %cst_17 = arith.constant dense<0.000000e+00> : vector<256xf32>
    %61 = vector.multi_reduction <add>, %60, %cst_17 [0] : vector<32x256xf32> to vector<256xf32>
    %62 = vector.shape_cast %61 : vector<256xf32> to vector<1x256xf32>
    %cst_18 = arith.constant 3.200000e+01 : f32
    %63 = vector.broadcast %cst_18 : f32 to vector<1x256xf32>
    %64 = arith.divf %62, %63 : vector<1x256xf32>
    %65 = vector.extract_strided_slice %54 {offsets = [64, 0], sizes = [32, 256], strides = [1, 1]} : vector<256x256xf32> to vector<32x256xf32>
    %cst_19 = arith.constant dense<0.000000e+00> : vector<256xf32>
    %66 = vector.multi_reduction <add>, %65, %cst_19 [0] : vector<32x256xf32> to vector<256xf32>
    %67 = vector.shape_cast %66 : vector<256xf32> to vector<1x256xf32>
    %cst_20 = arith.constant 3.200000e+01 : f32
    %68 = vector.broadcast %cst_20 : f32 to vector<1x256xf32>
    %69 = arith.divf %67, %68 : vector<1x256xf32>
    %70 = vector.extract_strided_slice %54 {offsets = [96, 0], sizes = [32, 256], strides = [1, 1]} : vector<256x256xf32> to vector<32x256xf32>
    %cst_21 = arith.constant dense<0.000000e+00> : vector<256xf32>
    %71 = vector.multi_reduction <add>, %70, %cst_21 [0] : vector<32x256xf32> to vector<256xf32>
    %72 = vector.shape_cast %71 : vector<256xf32> to vector<1x256xf32>
    %cst_22 = arith.constant 3.200000e+01 : f32
    %73 = vector.broadcast %cst_22 : f32 to vector<1x256xf32>
    %74 = arith.divf %72, %73 : vector<1x256xf32>
    %75 = vector.extract_strided_slice %54 {offsets = [128, 0], sizes = [32, 256], strides = [1, 1]} : vector<256x256xf32> to vector<32x256xf32>
    %cst_23 = arith.constant dense<0.000000e+00> : vector<256xf32>
    %76 = vector.multi_reduction <add>, %75, %cst_23 [0] : vector<32x256xf32> to vector<256xf32>
    %77 = vector.shape_cast %76 : vector<256xf32> to vector<1x256xf32>
    %cst_24 = arith.constant 3.200000e+01 : f32
    %78 = vector.broadcast %cst_24 : f32 to vector<1x256xf32>
    %79 = arith.divf %77, %78 : vector<1x256xf32>
    %80 = vector.extract_strided_slice %54 {offsets = [160, 0], sizes = [32, 256], strides = [1, 1]} : vector<256x256xf32> to vector<32x256xf32>
    %cst_25 = arith.constant dense<0.000000e+00> : vector<256xf32>
    %81 = vector.multi_reduction <add>, %80, %cst_25 [0] : vector<32x256xf32> to vector<256xf32>
    %82 = vector.shape_cast %81 : vector<256xf32> to vector<1x256xf32>
    %cst_26 = arith.constant 3.200000e+01 : f32
    %83 = vector.broadcast %cst_26 : f32 to vector<1x256xf32>
    %84 = arith.divf %82, %83 : vector<1x256xf32>
    %85 = vector.extract_strided_slice %54 {offsets = [192, 0], sizes = [32, 256], strides = [1, 1]} : vector<256x256xf32> to vector<32x256xf32>
    %cst_27 = arith.constant dense<0.000000e+00> : vector<256xf32>
    %86 = vector.multi_reduction <add>, %85, %cst_27 [0] : vector<32x256xf32> to vector<256xf32>
    %87 = vector.shape_cast %86 : vector<256xf32> to vector<1x256xf32>
    %cst_28 = arith.constant 3.200000e+01 : f32
    %88 = vector.broadcast %cst_28 : f32 to vector<1x256xf32>
    %89 = arith.divf %87, %88 : vector<1x256xf32>
    %90 = vector.extract_strided_slice %54 {offsets = [224, 0], sizes = [32, 256], strides = [1, 1]} : vector<256x256xf32> to vector<32x256xf32>
    %cst_29 = arith.constant dense<0.000000e+00> : vector<256xf32>
    %91 = vector.multi_reduction <add>, %90, %cst_29 [0] : vector<32x256xf32> to vector<256xf32>
    %92 = vector.shape_cast %91 : vector<256xf32> to vector<1x256xf32>
    %cst_30 = arith.constant 3.200000e+01 : f32
    %93 = vector.broadcast %cst_30 : f32 to vector<1x256xf32>
    %94 = arith.divf %92, %93 : vector<1x256xf32>
    %95 = tpu.concatenate %59, %64, %69, %74, %79, %84, %89, %94 in 0 : vector<1x256xf32>, vector<1x256xf32>, vector<1x256xf32>, vector<1x256xf32>, vector<1x256xf32>, vector<1x256xf32>, vector<1x256xf32>, vector<1x256xf32> -> vector<8x256xf32>
    %96 = vector.extract_strided_slice %54 {offsets = [0, 0], sizes = [32, 256], strides = [1, 1]} : vector<256x256xf32> to vector<32x256xf32>
    %cst_31 = arith.constant dense<0xFF800000> : vector<256xf32>
    %97 = vector.multi_reduction <maximumf>, %96, %cst_31 [0] : vector<32x256xf32> to vector<256xf32>
    %98 = vector.shape_cast %97 : vector<256xf32> to vector<1x256xf32>
    %99 = vector.extract_strided_slice %54 {offsets = [32, 0], sizes = [32, 256], strides = [1, 1]} : vector<256x256xf32> to vector<32x256xf32>
    %cst_32 = arith.constant dense<0xFF800000> : vector<256xf32>
    %100 = vector.multi_reduction <maximumf>, %99, %cst_32 [0] : vector<32x256xf32> to vector<256xf32>
    %101 = vector.shape_cast %100 : vector<256xf32> to vector<1x256xf32>
    %102 = vector.extract_strided_slice %54 {offsets = [64, 0], sizes = [32, 256], strides = [1, 1]} : vector<256x256xf32> to vector<32x256xf32>
    %cst_33 = arith.constant dense<0xFF800000> : vector<256xf32>
    %103 = vector.multi_reduction <maximumf>, %102, %cst_33 [0] : vector<32x256xf32> to vector<256xf32>
    %104 = vector.shape_cast %103 : vector<256xf32> to vector<1x256xf32>
    %105 = vector.extract_strided_slice %54 {offsets = [96, 0], sizes = [32, 256], strides = [1, 1]} : vector<256x256xf32> to vector<32x256xf32>
    %cst_34 = arith.constant dense<0xFF800000> : vector<256xf32>
    %106 = vector.multi_reduction <maximumf>, %105, %cst_34 [0] : vector<32x256xf32> to vector<256xf32>
    %107 = vector.shape_cast %106 : vector<256xf32> to vector<1x256xf32>
    %108 = vector.extract_strided_slice %54 {offsets = [128, 0], sizes = [32, 256], strides = [1, 1]} : vector<256x256xf32> to vector<32x256xf32>
    %cst_35 = arith.constant dense<0xFF800000> : vector<256xf32>
    %109 = vector.multi_reduction <maximumf>, %108, %cst_35 [0] : vector<32x256xf32> to vector<256xf32>
    %110 = vector.shape_cast %109 : vector<256xf32> to vector<1x256xf32>
    %111 = vector.extract_strided_slice %54 {offsets = [160, 0], sizes = [32, 256], strides = [1, 1]} : vector<256x256xf32> to vector<32x256xf32>
    %cst_36 = arith.constant dense<0xFF800000> : vector<256xf32>
    %112 = vector.multi_reduction <maximumf>, %111, %cst_36 [0] : vector<32x256xf32> to vector<256xf32>
    %113 = vector.shape_cast %112 : vector<256xf32> to vector<1x256xf32>
    %114 = vector.extract_strided_slice %54 {offsets = [192, 0], sizes = [32, 256], strides = [1, 1]} : vector<256x256xf32> to vector<32x256xf32>
    %cst_37 = arith.constant dense<0xFF800000> : vector<256xf32>
    %115 = vector.multi_reduction <maximumf>, %114, %cst_37 [0] : vector<32x256xf32> to vector<256xf32>
    %116 = vector.shape_cast %115 : vector<256xf32> to vector<1x256xf32>
    %117 = vector.extract_strided_slice %54 {offsets = [224, 0], sizes = [32, 256], strides = [1, 1]} : vector<256x256xf32> to vector<32x256xf32>
    %cst_38 = arith.constant dense<0xFF800000> : vector<256xf32>
    %118 = vector.multi_reduction <maximumf>, %117, %cst_38 [0] : vector<32x256xf32> to vector<256xf32>
    %119 = vector.shape_cast %118 : vector<256xf32> to vector<1x256xf32>
    %120 = tpu.concatenate %98, %101, %104, %107, %110, %113, %116, %119 in 0 : vector<1x256xf32>, vector<1x256xf32>, vector<1x256xf32>, vector<1x256xf32>, vector<1x256xf32>, vector<1x256xf32>, vector<1x256xf32>, vector<1x256xf32> -> vector<8x256xf32>
    %c0_39 = arith.constant 0 : index
    %c0_40 = arith.constant 0 : index
    %121 = vector.load %arg6[%c0_39, %c0_40] : memref<7x256xf32, #tpu.memory_space<vmem>>, vector<7x256xf32>
    %c0_41 = arith.constant 0 : index
    %c0_42 = arith.constant 0 : index
    %122 = vector.load %arg7[%c0_41, %c0_42] : memref<7x256xf32, #tpu.memory_space<vmem>>, vector<7x256xf32>
    %c48_i32 = arith.constant 48 : i32
    %123 = tpu.dynamic_rotate %95 by %c48_i32 dim 1 : vector<8x256xf32>, i32 -> vector<8x256xf32>
    %c48_i32_43 = arith.constant 48 : i32
    %124 = tpu.dynamic_rotate %120 by %c48_i32_43 dim 1 : vector<8x256xf32>, i32 -> vector<8x256xf32>
    %125 = vector.extract_strided_slice %121 {offsets = [0, 0], sizes = [1, 256], strides = [1, 1]} : vector<7x256xf32> to vector<1x256xf32>
    %126 = vector.broadcast %125 : vector<1x256xf32> to vector<8x256xf32>
    %127 = arith.mulf %123, %126 : vector<8x256xf32>
    %128 = vector.broadcast %125 : vector<1x256xf32> to vector<8x256xf32>
    %129 = arith.mulf %124, %128 : vector<8x256xf32>
    %c32_i32 = arith.constant 32 : i32
    %130 = tpu.dynamic_rotate %95 by %c32_i32 dim 1 : vector<8x256xf32>, i32 -> vector<8x256xf32>
    %c32_i32_44 = arith.constant 32 : i32
    %131 = tpu.dynamic_rotate %120 by %c32_i32_44 dim 1 : vector<8x256xf32>, i32 -> vector<8x256xf32>
    %132 = vector.extract_strided_slice %121 {offsets = [1, 0], sizes = [1, 256], strides = [1, 1]} : vector<7x256xf32> to vector<1x256xf32>
    %133 = vector.broadcast %132 : vector<1x256xf32> to vector<8x256xf32>
    %134 = arith.mulf %130, %133 : vector<8x256xf32>
    %135 = vector.broadcast %132 : vector<1x256xf32> to vector<8x256xf32>
    %136 = arith.mulf %131, %135 : vector<8x256xf32>
    %c16_i32 = arith.constant 16 : i32
    %137 = tpu.dynamic_rotate %95 by %c16_i32 dim 1 : vector<8x256xf32>, i32 -> vector<8x256xf32>
    %c16_i32_45 = arith.constant 16 : i32
    %138 = tpu.dynamic_rotate %120 by %c16_i32_45 dim 1 : vector<8x256xf32>, i32 -> vector<8x256xf32>
    %139 = vector.extract_strided_slice %121 {offsets = [2, 0], sizes = [1, 256], strides = [1, 1]} : vector<7x256xf32> to vector<1x256xf32>
    %140 = vector.broadcast %139 : vector<1x256xf32> to vector<8x256xf32>
    %141 = arith.mulf %137, %140 : vector<8x256xf32>
    %142 = vector.broadcast %139 : vector<1x256xf32> to vector<8x256xf32>
    %143 = arith.mulf %138, %142 : vector<8x256xf32>
    %c240_i32 = arith.constant 240 : i32
    %144 = tpu.dynamic_rotate %95 by %c240_i32 dim 1 : vector<8x256xf32>, i32 -> vector<8x256xf32>
    %c240_i32_46 = arith.constant 240 : i32
    %145 = tpu.dynamic_rotate %120 by %c240_i32_46 dim 1 : vector<8x256xf32>, i32 -> vector<8x256xf32>
    %146 = vector.extract_strided_slice %121 {offsets = [4, 0], sizes = [1, 256], strides = [1, 1]} : vector<7x256xf32> to vector<1x256xf32>
    %147 = vector.broadcast %146 : vector<1x256xf32> to vector<8x256xf32>
    %148 = arith.mulf %144, %147 : vector<8x256xf32>
    %149 = vector.broadcast %146 : vector<1x256xf32> to vector<8x256xf32>
    %150 = arith.mulf %145, %149 : vector<8x256xf32>
    %c224_i32 = arith.constant 224 : i32
    %151 = tpu.dynamic_rotate %95 by %c224_i32 dim 1 : vector<8x256xf32>, i32 -> vector<8x256xf32>
    %c224_i32_47 = arith.constant 224 : i32
    %152 = tpu.dynamic_rotate %120 by %c224_i32_47 dim 1 : vector<8x256xf32>, i32 -> vector<8x256xf32>
    %153 = vector.extract_strided_slice %121 {offsets = [5, 0], sizes = [1, 256], strides = [1, 1]} : vector<7x256xf32> to vector<1x256xf32>
    %154 = vector.broadcast %153 : vector<1x256xf32> to vector<8x256xf32>
    %155 = arith.mulf %151, %154 : vector<8x256xf32>
    %156 = vector.broadcast %153 : vector<1x256xf32> to vector<8x256xf32>
    %157 = arith.mulf %152, %156 : vector<8x256xf32>
    %c208_i32 = arith.constant 208 : i32
    %158 = tpu.dynamic_rotate %95 by %c208_i32 dim 1 : vector<8x256xf32>, i32 -> vector<8x256xf32>
    %c208_i32_48 = arith.constant 208 : i32
    %159 = tpu.dynamic_rotate %120 by %c208_i32_48 dim 1 : vector<8x256xf32>, i32 -> vector<8x256xf32>
    %160 = vector.extract_strided_slice %121 {offsets = [6, 0], sizes = [1, 256], strides = [1, 1]} : vector<7x256xf32> to vector<1x256xf32>
    %161 = vector.broadcast %160 : vector<1x256xf32> to vector<8x256xf32>
    %162 = arith.mulf %158, %161 : vector<8x256xf32>
    %163 = vector.broadcast %160 : vector<1x256xf32> to vector<8x256xf32>
    %164 = arith.mulf %159, %163 : vector<8x256xf32>
    %c0_49 = arith.constant 0 : index
    %165 = memref.load %arg9[%c0_49] : memref<1xf32, #tpu.memory_space<smem>>
    %166 = vector.broadcast %165 : f32 to vector<8x256xf32>
    %cst_50 = arith.constant 0.000000e+00 : f32
    %167 = vector.broadcast %cst_50 : f32 to vector<8x256xf32>
    %c0_51 = arith.constant 0 : index
    %168 = memref.load %arg8[%c0_51] : memref<98xf32, #tpu.memory_space<smem>>
    %c49 = arith.constant 49 : index
    %169 = memref.load %arg8[%c49] : memref<98xf32, #tpu.memory_space<smem>>
    %170 = vector.broadcast %168 : f32 to vector<8x256xf32>
    %171 = arith.mulf %170, %127 : vector<8x256xf32>
    %172 = arith.addf %167, %171 : vector<8x256xf32>
    %173 = vector.broadcast %169 : f32 to vector<8x256xf32>
    %174 = arith.mulf %173, %129 : vector<8x256xf32>
    %175 = arith.addf %172, %174 : vector<8x256xf32>
    %c7 = arith.constant 7 : index
    %176 = memref.load %arg8[%c7] : memref<98xf32, #tpu.memory_space<smem>>
    %c56 = arith.constant 56 : index
    %177 = memref.load %arg8[%c56] : memref<98xf32, #tpu.memory_space<smem>>
    %178 = vector.broadcast %176 : f32 to vector<8x256xf32>
    %179 = arith.mulf %178, %134 : vector<8x256xf32>
    %180 = arith.addf %175, %179 : vector<8x256xf32>
    %181 = vector.broadcast %177 : f32 to vector<8x256xf32>
    %182 = arith.mulf %181, %136 : vector<8x256xf32>
    %183 = arith.addf %180, %182 : vector<8x256xf32>
    %c14 = arith.constant 14 : index
    %184 = memref.load %arg8[%c14] : memref<98xf32, #tpu.memory_space<smem>>
    %c63 = arith.constant 63 : index
    %185 = memref.load %arg8[%c63] : memref<98xf32, #tpu.memory_space<smem>>
    %186 = vector.broadcast %184 : f32 to vector<8x256xf32>
    %187 = arith.mulf %186, %141 : vector<8x256xf32>
    %188 = arith.addf %183, %187 : vector<8x256xf32>
    %189 = vector.broadcast %185 : f32 to vector<8x256xf32>
    %190 = arith.mulf %189, %143 : vector<8x256xf32>
    %191 = arith.addf %188, %190 : vector<8x256xf32>
    %c21 = arith.constant 21 : index
    %192 = memref.load %arg8[%c21] : memref<98xf32, #tpu.memory_space<smem>>
    %c70 = arith.constant 70 : index
    %193 = memref.load %arg8[%c70] : memref<98xf32, #tpu.memory_space<smem>>
    %194 = vector.broadcast %192 : f32 to vector<8x256xf32>
    %195 = arith.mulf %194, %95 : vector<8x256xf32>
    %196 = arith.addf %191, %195 : vector<8x256xf32>
    %197 = vector.broadcast %193 : f32 to vector<8x256xf32>
    %198 = arith.mulf %197, %120 : vector<8x256xf32>
    %199 = arith.addf %196, %198 : vector<8x256xf32>
    %c28 = arith.constant 28 : index
    %200 = memref.load %arg8[%c28] : memref<98xf32, #tpu.memory_space<smem>>
    %c77 = arith.constant 77 : index
    %201 = memref.load %arg8[%c77] : memref<98xf32, #tpu.memory_space<smem>>
    %202 = vector.broadcast %200 : f32 to vector<8x256xf32>
    %203 = arith.mulf %202, %148 : vector<8x256xf32>
    %204 = arith.addf %199, %203 : vector<8x256xf32>
    %205 = vector.broadcast %201 : f32 to vector<8x256xf32>
    %206 = arith.mulf %205, %150 : vector<8x256xf32>
    %207 = arith.addf %204, %206 : vector<8x256xf32>
    %c35 = arith.constant 35 : index
    %208 = memref.load %arg8[%c35] : memref<98xf32, #tpu.memory_space<smem>>
    %c84 = arith.constant 84 : index
    %209 = memref.load %arg8[%c84] : memref<98xf32, #tpu.memory_space<smem>>
    %210 = vector.broadcast %208 : f32 to vector<8x256xf32>
    %211 = arith.mulf %210, %155 : vector<8x256xf32>
    %212 = arith.addf %207, %211 : vector<8x256xf32>
    %213 = vector.broadcast %209 : f32 to vector<8x256xf32>
    %214 = arith.mulf %213, %157 : vector<8x256xf32>
    %215 = arith.addf %212, %214 : vector<8x256xf32>
    %c42 = arith.constant 42 : index
    %216 = memref.load %arg8[%c42] : memref<98xf32, #tpu.memory_space<smem>>
    %c91 = arith.constant 91 : index
    %217 = memref.load %arg8[%c91] : memref<98xf32, #tpu.memory_space<smem>>
    %218 = vector.broadcast %216 : f32 to vector<8x256xf32>
    %219 = arith.mulf %218, %162 : vector<8x256xf32>
    %220 = arith.addf %215, %219 : vector<8x256xf32>
    %221 = vector.broadcast %217 : f32 to vector<8x256xf32>
    %222 = arith.mulf %221, %164 : vector<8x256xf32>
    %223 = arith.addf %220, %222 : vector<8x256xf32>
    %c3_i32 = arith.constant 3 : i32
    %224 = tpu.dynamic_rotate %223 by %c3_i32 dim 1 : vector<8x256xf32>, i32 -> vector<8x256xf32>
    %225 = vector.extract_strided_slice %122 {offsets = [0, 0], sizes = [1, 256], strides = [1, 1]} : vector<7x256xf32> to vector<1x256xf32>
    %226 = vector.broadcast %225 : vector<1x256xf32> to vector<8x256xf32>
    %227 = arith.mulf %224, %226 : vector<8x256xf32>
    %228 = arith.addf %166, %227 : vector<8x256xf32>
    %cst_52 = arith.constant 0.000000e+00 : f32
    %229 = vector.broadcast %cst_52 : f32 to vector<8x256xf32>
    %c1 = arith.constant 1 : index
    %230 = memref.load %arg8[%c1] : memref<98xf32, #tpu.memory_space<smem>>
    %c50 = arith.constant 50 : index
    %231 = memref.load %arg8[%c50] : memref<98xf32, #tpu.memory_space<smem>>
    %232 = vector.broadcast %230 : f32 to vector<8x256xf32>
    %233 = arith.mulf %232, %127 : vector<8x256xf32>
    %234 = arith.addf %229, %233 : vector<8x256xf32>
    %235 = vector.broadcast %231 : f32 to vector<8x256xf32>
    %236 = arith.mulf %235, %129 : vector<8x256xf32>
    %237 = arith.addf %234, %236 : vector<8x256xf32>
    %c8 = arith.constant 8 : index
    %238 = memref.load %arg8[%c8] : memref<98xf32, #tpu.memory_space<smem>>
    %c57 = arith.constant 57 : index
    %239 = memref.load %arg8[%c57] : memref<98xf32, #tpu.memory_space<smem>>
    %240 = vector.broadcast %238 : f32 to vector<8x256xf32>
    %241 = arith.mulf %240, %134 : vector<8x256xf32>
    %242 = arith.addf %237, %241 : vector<8x256xf32>
    %243 = vector.broadcast %239 : f32 to vector<8x256xf32>
    %244 = arith.mulf %243, %136 : vector<8x256xf32>
    %245 = arith.addf %242, %244 : vector<8x256xf32>
    %c15 = arith.constant 15 : index
    %246 = memref.load %arg8[%c15] : memref<98xf32, #tpu.memory_space<smem>>
    %c64 = arith.constant 64 : index
    %247 = memref.load %arg8[%c64] : memref<98xf32, #tpu.memory_space<smem>>
    %248 = vector.broadcast %246 : f32 to vector<8x256xf32>
    %249 = arith.mulf %248, %141 : vector<8x256xf32>
    %250 = arith.addf %245, %249 : vector<8x256xf32>
    %251 = vector.broadcast %247 : f32 to vector<8x256xf32>
    %252 = arith.mulf %251, %143 : vector<8x256xf32>
    %253 = arith.addf %250, %252 : vector<8x256xf32>
    %c22 = arith.constant 22 : index
    %254 = memref.load %arg8[%c22] : memref<98xf32, #tpu.memory_space<smem>>
    %c71 = arith.constant 71 : index
    %255 = memref.load %arg8[%c71] : memref<98xf32, #tpu.memory_space<smem>>
    %256 = vector.broadcast %254 : f32 to vector<8x256xf32>
    %257 = arith.mulf %256, %95 : vector<8x256xf32>
    %258 = arith.addf %253, %257 : vector<8x256xf32>
    %259 = vector.broadcast %255 : f32 to vector<8x256xf32>
    %260 = arith.mulf %259, %120 : vector<8x256xf32>
    %261 = arith.addf %258, %260 : vector<8x256xf32>
    %c29 = arith.constant 29 : index
    %262 = memref.load %arg8[%c29] : memref<98xf32, #tpu.memory_space<smem>>
    %c78 = arith.constant 78 : index
    %263 = memref.load %arg8[%c78] : memref<98xf32, #tpu.memory_space<smem>>
    %264 = vector.broadcast %262 : f32 to vector<8x256xf32>
    %265 = arith.mulf %264, %148 : vector<8x256xf32>
    %266 = arith.addf %261, %265 : vector<8x256xf32>
    %267 = vector.broadcast %263 : f32 to vector<8x256xf32>
    %268 = arith.mulf %267, %150 : vector<8x256xf32>
    %269 = arith.addf %266, %268 : vector<8x256xf32>
    %c36 = arith.constant 36 : index
    %270 = memref.load %arg8[%c36] : memref<98xf32, #tpu.memory_space<smem>>
    %c85 = arith.constant 85 : index
    %271 = memref.load %arg8[%c85] : memref<98xf32, #tpu.memory_space<smem>>
    %272 = vector.broadcast %270 : f32 to vector<8x256xf32>
    %273 = arith.mulf %272, %155 : vector<8x256xf32>
    %274 = arith.addf %269, %273 : vector<8x256xf32>
    %275 = vector.broadcast %271 : f32 to vector<8x256xf32>
    %276 = arith.mulf %275, %157 : vector<8x256xf32>
    %277 = arith.addf %274, %276 : vector<8x256xf32>
    %c43 = arith.constant 43 : index
    %278 = memref.load %arg8[%c43] : memref<98xf32, #tpu.memory_space<smem>>
    %c92 = arith.constant 92 : index
    %279 = memref.load %arg8[%c92] : memref<98xf32, #tpu.memory_space<smem>>
    %280 = vector.broadcast %278 : f32 to vector<8x256xf32>
    %281 = arith.mulf %280, %162 : vector<8x256xf32>
    %282 = arith.addf %277, %281 : vector<8x256xf32>
    %283 = vector.broadcast %279 : f32 to vector<8x256xf32>
    %284 = arith.mulf %283, %164 : vector<8x256xf32>
    %285 = arith.addf %282, %284 : vector<8x256xf32>
    %c2_i32 = arith.constant 2 : i32
    %286 = tpu.dynamic_rotate %285 by %c2_i32 dim 1 : vector<8x256xf32>, i32 -> vector<8x256xf32>
    %287 = vector.extract_strided_slice %122 {offsets = [1, 0], sizes = [1, 256], strides = [1, 1]} : vector<7x256xf32> to vector<1x256xf32>
    %288 = vector.broadcast %287 : vector<1x256xf32> to vector<8x256xf32>
    %289 = arith.mulf %286, %288 : vector<8x256xf32>
    %290 = arith.addf %228, %289 : vector<8x256xf32>
    %cst_53 = arith.constant 0.000000e+00 : f32
    %291 = vector.broadcast %cst_53 : f32 to vector<8x256xf32>
    %c2 = arith.constant 2 : index
    %292 = memref.load %arg8[%c2] : memref<98xf32, #tpu.memory_space<smem>>
    %c51 = arith.constant 51 : index
    %293 = memref.load %arg8[%c51] : memref<98xf32, #tpu.memory_space<smem>>
    %294 = vector.broadcast %292 : f32 to vector<8x256xf32>
    %295 = arith.mulf %294, %127 : vector<8x256xf32>
    %296 = arith.addf %291, %295 : vector<8x256xf32>
    %297 = vector.broadcast %293 : f32 to vector<8x256xf32>
    %298 = arith.mulf %297, %129 : vector<8x256xf32>
    %299 = arith.addf %296, %298 : vector<8x256xf32>
    %c9 = arith.constant 9 : index
    %300 = memref.load %arg8[%c9] : memref<98xf32, #tpu.memory_space<smem>>
    %c58 = arith.constant 58 : index
    %301 = memref.load %arg8[%c58] : memref<98xf32, #tpu.memory_space<smem>>
    %302 = vector.broadcast %300 : f32 to vector<8x256xf32>
    %303 = arith.mulf %302, %134 : vector<8x256xf32>
    %304 = arith.addf %299, %303 : vector<8x256xf32>
    %305 = vector.broadcast %301 : f32 to vector<8x256xf32>
    %306 = arith.mulf %305, %136 : vector<8x256xf32>
    %307 = arith.addf %304, %306 : vector<8x256xf32>
    %c16 = arith.constant 16 : index
    %308 = memref.load %arg8[%c16] : memref<98xf32, #tpu.memory_space<smem>>
    %c65 = arith.constant 65 : index
    %309 = memref.load %arg8[%c65] : memref<98xf32, #tpu.memory_space<smem>>
    %310 = vector.broadcast %308 : f32 to vector<8x256xf32>
    %311 = arith.mulf %310, %141 : vector<8x256xf32>
    %312 = arith.addf %307, %311 : vector<8x256xf32>
    %313 = vector.broadcast %309 : f32 to vector<8x256xf32>
    %314 = arith.mulf %313, %143 : vector<8x256xf32>
    %315 = arith.addf %312, %314 : vector<8x256xf32>
    %c23 = arith.constant 23 : index
    %316 = memref.load %arg8[%c23] : memref<98xf32, #tpu.memory_space<smem>>
    %c72 = arith.constant 72 : index
    %317 = memref.load %arg8[%c72] : memref<98xf32, #tpu.memory_space<smem>>
    %318 = vector.broadcast %316 : f32 to vector<8x256xf32>
    %319 = arith.mulf %318, %95 : vector<8x256xf32>
    %320 = arith.addf %315, %319 : vector<8x256xf32>
    %321 = vector.broadcast %317 : f32 to vector<8x256xf32>
    %322 = arith.mulf %321, %120 : vector<8x256xf32>
    %323 = arith.addf %320, %322 : vector<8x256xf32>
    %c30 = arith.constant 30 : index
    %324 = memref.load %arg8[%c30] : memref<98xf32, #tpu.memory_space<smem>>
    %c79 = arith.constant 79 : index
    %325 = memref.load %arg8[%c79] : memref<98xf32, #tpu.memory_space<smem>>
    %326 = vector.broadcast %324 : f32 to vector<8x256xf32>
    %327 = arith.mulf %326, %148 : vector<8x256xf32>
    %328 = arith.addf %323, %327 : vector<8x256xf32>
    %329 = vector.broadcast %325 : f32 to vector<8x256xf32>
    %330 = arith.mulf %329, %150 : vector<8x256xf32>
    %331 = arith.addf %328, %330 : vector<8x256xf32>
    %c37 = arith.constant 37 : index
    %332 = memref.load %arg8[%c37] : memref<98xf32, #tpu.memory_space<smem>>
    %c86 = arith.constant 86 : index
    %333 = memref.load %arg8[%c86] : memref<98xf32, #tpu.memory_space<smem>>
    %334 = vector.broadcast %332 : f32 to vector<8x256xf32>
    %335 = arith.mulf %334, %155 : vector<8x256xf32>
    %336 = arith.addf %331, %335 : vector<8x256xf32>
    %337 = vector.broadcast %333 : f32 to vector<8x256xf32>
    %338 = arith.mulf %337, %157 : vector<8x256xf32>
    %339 = arith.addf %336, %338 : vector<8x256xf32>
    %c44 = arith.constant 44 : index
    %340 = memref.load %arg8[%c44] : memref<98xf32, #tpu.memory_space<smem>>
    %c93 = arith.constant 93 : index
    %341 = memref.load %arg8[%c93] : memref<98xf32, #tpu.memory_space<smem>>
    %342 = vector.broadcast %340 : f32 to vector<8x256xf32>
    %343 = arith.mulf %342, %162 : vector<8x256xf32>
    %344 = arith.addf %339, %343 : vector<8x256xf32>
    %345 = vector.broadcast %341 : f32 to vector<8x256xf32>
    %346 = arith.mulf %345, %164 : vector<8x256xf32>
    %347 = arith.addf %344, %346 : vector<8x256xf32>
    %c1_i32 = arith.constant 1 : i32
    %348 = tpu.dynamic_rotate %347 by %c1_i32 dim 1 : vector<8x256xf32>, i32 -> vector<8x256xf32>
    %349 = vector.extract_strided_slice %122 {offsets = [2, 0], sizes = [1, 256], strides = [1, 1]} : vector<7x256xf32> to vector<1x256xf32>
    %350 = vector.broadcast %349 : vector<1x256xf32> to vector<8x256xf32>
    %351 = arith.mulf %348, %350 : vector<8x256xf32>
    %352 = arith.addf %290, %351 : vector<8x256xf32>
    %cst_54 = arith.constant 0.000000e+00 : f32
    %353 = vector.broadcast %cst_54 : f32 to vector<8x256xf32>
    %c3 = arith.constant 3 : index
    %354 = memref.load %arg8[%c3] : memref<98xf32, #tpu.memory_space<smem>>
    %c52 = arith.constant 52 : index
    %355 = memref.load %arg8[%c52] : memref<98xf32, #tpu.memory_space<smem>>
    %356 = vector.broadcast %354 : f32 to vector<8x256xf32>
    %357 = arith.mulf %356, %127 : vector<8x256xf32>
    %358 = arith.addf %353, %357 : vector<8x256xf32>
    %359 = vector.broadcast %355 : f32 to vector<8x256xf32>
    %360 = arith.mulf %359, %129 : vector<8x256xf32>
    %361 = arith.addf %358, %360 : vector<8x256xf32>
    %c10 = arith.constant 10 : index
    %362 = memref.load %arg8[%c10] : memref<98xf32, #tpu.memory_space<smem>>
    %c59 = arith.constant 59 : index
    %363 = memref.load %arg8[%c59] : memref<98xf32, #tpu.memory_space<smem>>
    %364 = vector.broadcast %362 : f32 to vector<8x256xf32>
    %365 = arith.mulf %364, %134 : vector<8x256xf32>
    %366 = arith.addf %361, %365 : vector<8x256xf32>
    %367 = vector.broadcast %363 : f32 to vector<8x256xf32>
    %368 = arith.mulf %367, %136 : vector<8x256xf32>
    %369 = arith.addf %366, %368 : vector<8x256xf32>
    %c17 = arith.constant 17 : index
    %370 = memref.load %arg8[%c17] : memref<98xf32, #tpu.memory_space<smem>>
    %c66 = arith.constant 66 : index
    %371 = memref.load %arg8[%c66] : memref<98xf32, #tpu.memory_space<smem>>
    %372 = vector.broadcast %370 : f32 to vector<8x256xf32>
    %373 = arith.mulf %372, %141 : vector<8x256xf32>
    %374 = arith.addf %369, %373 : vector<8x256xf32>
    %375 = vector.broadcast %371 : f32 to vector<8x256xf32>
    %376 = arith.mulf %375, %143 : vector<8x256xf32>
    %377 = arith.addf %374, %376 : vector<8x256xf32>
    %c24 = arith.constant 24 : index
    %378 = memref.load %arg8[%c24] : memref<98xf32, #tpu.memory_space<smem>>
    %c73 = arith.constant 73 : index
    %379 = memref.load %arg8[%c73] : memref<98xf32, #tpu.memory_space<smem>>
    %380 = vector.broadcast %378 : f32 to vector<8x256xf32>
    %381 = arith.mulf %380, %95 : vector<8x256xf32>
    %382 = arith.addf %377, %381 : vector<8x256xf32>
    %383 = vector.broadcast %379 : f32 to vector<8x256xf32>
    %384 = arith.mulf %383, %120 : vector<8x256xf32>
    %385 = arith.addf %382, %384 : vector<8x256xf32>
    %c31 = arith.constant 31 : index
    %386 = memref.load %arg8[%c31] : memref<98xf32, #tpu.memory_space<smem>>
    %c80 = arith.constant 80 : index
    %387 = memref.load %arg8[%c80] : memref<98xf32, #tpu.memory_space<smem>>
    %388 = vector.broadcast %386 : f32 to vector<8x256xf32>
    %389 = arith.mulf %388, %148 : vector<8x256xf32>
    %390 = arith.addf %385, %389 : vector<8x256xf32>
    %391 = vector.broadcast %387 : f32 to vector<8x256xf32>
    %392 = arith.mulf %391, %150 : vector<8x256xf32>
    %393 = arith.addf %390, %392 : vector<8x256xf32>
    %c38 = arith.constant 38 : index
    %394 = memref.load %arg8[%c38] : memref<98xf32, #tpu.memory_space<smem>>
    %c87 = arith.constant 87 : index
    %395 = memref.load %arg8[%c87] : memref<98xf32, #tpu.memory_space<smem>>
    %396 = vector.broadcast %394 : f32 to vector<8x256xf32>
    %397 = arith.mulf %396, %155 : vector<8x256xf32>
    %398 = arith.addf %393, %397 : vector<8x256xf32>
    %399 = vector.broadcast %395 : f32 to vector<8x256xf32>
    %400 = arith.mulf %399, %157 : vector<8x256xf32>
    %401 = arith.addf %398, %400 : vector<8x256xf32>
    %c45 = arith.constant 45 : index
    %402 = memref.load %arg8[%c45] : memref<98xf32, #tpu.memory_space<smem>>
    %c94 = arith.constant 94 : index
    %403 = memref.load %arg8[%c94] : memref<98xf32, #tpu.memory_space<smem>>
    %404 = vector.broadcast %402 : f32 to vector<8x256xf32>
    %405 = arith.mulf %404, %162 : vector<8x256xf32>
    %406 = arith.addf %401, %405 : vector<8x256xf32>
    %407 = vector.broadcast %403 : f32 to vector<8x256xf32>
    %408 = arith.mulf %407, %164 : vector<8x256xf32>
    %409 = arith.addf %406, %408 : vector<8x256xf32>
    %410 = arith.addf %352, %409 : vector<8x256xf32>
    %cst_55 = arith.constant 0.000000e+00 : f32
    %411 = vector.broadcast %cst_55 : f32 to vector<8x256xf32>
    %c4 = arith.constant 4 : index
    %412 = memref.load %arg8[%c4] : memref<98xf32, #tpu.memory_space<smem>>
    %c53 = arith.constant 53 : index
    %413 = memref.load %arg8[%c53] : memref<98xf32, #tpu.memory_space<smem>>
    %414 = vector.broadcast %412 : f32 to vector<8x256xf32>
    %415 = arith.mulf %414, %127 : vector<8x256xf32>
    %416 = arith.addf %411, %415 : vector<8x256xf32>
    %417 = vector.broadcast %413 : f32 to vector<8x256xf32>
    %418 = arith.mulf %417, %129 : vector<8x256xf32>
    %419 = arith.addf %416, %418 : vector<8x256xf32>
    %c11 = arith.constant 11 : index
    %420 = memref.load %arg8[%c11] : memref<98xf32, #tpu.memory_space<smem>>
    %c60 = arith.constant 60 : index
    %421 = memref.load %arg8[%c60] : memref<98xf32, #tpu.memory_space<smem>>
    %422 = vector.broadcast %420 : f32 to vector<8x256xf32>
    %423 = arith.mulf %422, %134 : vector<8x256xf32>
    %424 = arith.addf %419, %423 : vector<8x256xf32>
    %425 = vector.broadcast %421 : f32 to vector<8x256xf32>
    %426 = arith.mulf %425, %136 : vector<8x256xf32>
    %427 = arith.addf %424, %426 : vector<8x256xf32>
    %c18 = arith.constant 18 : index
    %428 = memref.load %arg8[%c18] : memref<98xf32, #tpu.memory_space<smem>>
    %c67 = arith.constant 67 : index
    %429 = memref.load %arg8[%c67] : memref<98xf32, #tpu.memory_space<smem>>
    %430 = vector.broadcast %428 : f32 to vector<8x256xf32>
    %431 = arith.mulf %430, %141 : vector<8x256xf32>
    %432 = arith.addf %427, %431 : vector<8x256xf32>
    %433 = vector.broadcast %429 : f32 to vector<8x256xf32>
    %434 = arith.mulf %433, %143 : vector<8x256xf32>
    %435 = arith.addf %432, %434 : vector<8x256xf32>
    %c25 = arith.constant 25 : index
    %436 = memref.load %arg8[%c25] : memref<98xf32, #tpu.memory_space<smem>>
    %c74 = arith.constant 74 : index
    %437 = memref.load %arg8[%c74] : memref<98xf32, #tpu.memory_space<smem>>
    %438 = vector.broadcast %436 : f32 to vector<8x256xf32>
    %439 = arith.mulf %438, %95 : vector<8x256xf32>
    %440 = arith.addf %435, %439 : vector<8x256xf32>
    %441 = vector.broadcast %437 : f32 to vector<8x256xf32>
    %442 = arith.mulf %441, %120 : vector<8x256xf32>
    %443 = arith.addf %440, %442 : vector<8x256xf32>
    %c32 = arith.constant 32 : index
    %444 = memref.load %arg8[%c32] : memref<98xf32, #tpu.memory_space<smem>>
    %c81 = arith.constant 81 : index
    %445 = memref.load %arg8[%c81] : memref<98xf32, #tpu.memory_space<smem>>
    %446 = vector.broadcast %444 : f32 to vector<8x256xf32>
    %447 = arith.mulf %446, %148 : vector<8x256xf32>
    %448 = arith.addf %443, %447 : vector<8x256xf32>
    %449 = vector.broadcast %445 : f32 to vector<8x256xf32>
    %450 = arith.mulf %449, %150 : vector<8x256xf32>
    %451 = arith.addf %448, %450 : vector<8x256xf32>
    %c39 = arith.constant 39 : index
    %452 = memref.load %arg8[%c39] : memref<98xf32, #tpu.memory_space<smem>>
    %c88 = arith.constant 88 : index
    %453 = memref.load %arg8[%c88] : memref<98xf32, #tpu.memory_space<smem>>
    %454 = vector.broadcast %452 : f32 to vector<8x256xf32>
    %455 = arith.mulf %454, %155 : vector<8x256xf32>
    %456 = arith.addf %451, %455 : vector<8x256xf32>
    %457 = vector.broadcast %453 : f32 to vector<8x256xf32>
    %458 = arith.mulf %457, %157 : vector<8x256xf32>
    %459 = arith.addf %456, %458 : vector<8x256xf32>
    %c46 = arith.constant 46 : index
    %460 = memref.load %arg8[%c46] : memref<98xf32, #tpu.memory_space<smem>>
    %c95 = arith.constant 95 : index
    %461 = memref.load %arg8[%c95] : memref<98xf32, #tpu.memory_space<smem>>
    %462 = vector.broadcast %460 : f32 to vector<8x256xf32>
    %463 = arith.mulf %462, %162 : vector<8x256xf32>
    %464 = arith.addf %459, %463 : vector<8x256xf32>
    %465 = vector.broadcast %461 : f32 to vector<8x256xf32>
    %466 = arith.mulf %465, %164 : vector<8x256xf32>
    %467 = arith.addf %464, %466 : vector<8x256xf32>
    %c255_i32 = arith.constant 255 : i32
    %468 = tpu.dynamic_rotate %467 by %c255_i32 dim 1 : vector<8x256xf32>, i32 -> vector<8x256xf32>
    %469 = vector.extract_strided_slice %122 {offsets = [4, 0], sizes = [1, 256], strides = [1, 1]} : vector<7x256xf32> to vector<1x256xf32>
    %470 = vector.broadcast %469 : vector<1x256xf32> to vector<8x256xf32>
    %471 = arith.mulf %468, %470 : vector<8x256xf32>
    %472 = arith.addf %410, %471 : vector<8x256xf32>
    %cst_56 = arith.constant 0.000000e+00 : f32
    %473 = vector.broadcast %cst_56 : f32 to vector<8x256xf32>
    %c5 = arith.constant 5 : index
    %474 = memref.load %arg8[%c5] : memref<98xf32, #tpu.memory_space<smem>>
    %c54 = arith.constant 54 : index
    %475 = memref.load %arg8[%c54] : memref<98xf32, #tpu.memory_space<smem>>
    %476 = vector.broadcast %474 : f32 to vector<8x256xf32>
    %477 = arith.mulf %476, %127 : vector<8x256xf32>
    %478 = arith.addf %473, %477 : vector<8x256xf32>
    %479 = vector.broadcast %475 : f32 to vector<8x256xf32>
    %480 = arith.mulf %479, %129 : vector<8x256xf32>
    %481 = arith.addf %478, %480 : vector<8x256xf32>
    %c12 = arith.constant 12 : index
    %482 = memref.load %arg8[%c12] : memref<98xf32, #tpu.memory_space<smem>>
    %c61 = arith.constant 61 : index
    %483 = memref.load %arg8[%c61] : memref<98xf32, #tpu.memory_space<smem>>
    %484 = vector.broadcast %482 : f32 to vector<8x256xf32>
    %485 = arith.mulf %484, %134 : vector<8x256xf32>
    %486 = arith.addf %481, %485 : vector<8x256xf32>
    %487 = vector.broadcast %483 : f32 to vector<8x256xf32>
    %488 = arith.mulf %487, %136 : vector<8x256xf32>
    %489 = arith.addf %486, %488 : vector<8x256xf32>
    %c19 = arith.constant 19 : index
    %490 = memref.load %arg8[%c19] : memref<98xf32, #tpu.memory_space<smem>>
    %c68 = arith.constant 68 : index
    %491 = memref.load %arg8[%c68] : memref<98xf32, #tpu.memory_space<smem>>
    %492 = vector.broadcast %490 : f32 to vector<8x256xf32>
    %493 = arith.mulf %492, %141 : vector<8x256xf32>
    %494 = arith.addf %489, %493 : vector<8x256xf32>
    %495 = vector.broadcast %491 : f32 to vector<8x256xf32>
    %496 = arith.mulf %495, %143 : vector<8x256xf32>
    %497 = arith.addf %494, %496 : vector<8x256xf32>
    %c26 = arith.constant 26 : index
    %498 = memref.load %arg8[%c26] : memref<98xf32, #tpu.memory_space<smem>>
    %c75 = arith.constant 75 : index
    %499 = memref.load %arg8[%c75] : memref<98xf32, #tpu.memory_space<smem>>
    %500 = vector.broadcast %498 : f32 to vector<8x256xf32>
    %501 = arith.mulf %500, %95 : vector<8x256xf32>
    %502 = arith.addf %497, %501 : vector<8x256xf32>
    %503 = vector.broadcast %499 : f32 to vector<8x256xf32>
    %504 = arith.mulf %503, %120 : vector<8x256xf32>
    %505 = arith.addf %502, %504 : vector<8x256xf32>
    %c33 = arith.constant 33 : index
    %506 = memref.load %arg8[%c33] : memref<98xf32, #tpu.memory_space<smem>>
    %c82 = arith.constant 82 : index
    %507 = memref.load %arg8[%c82] : memref<98xf32, #tpu.memory_space<smem>>
    %508 = vector.broadcast %506 : f32 to vector<8x256xf32>
    %509 = arith.mulf %508, %148 : vector<8x256xf32>
    %510 = arith.addf %505, %509 : vector<8x256xf32>
    %511 = vector.broadcast %507 : f32 to vector<8x256xf32>
    %512 = arith.mulf %511, %150 : vector<8x256xf32>
    %513 = arith.addf %510, %512 : vector<8x256xf32>
    %c40 = arith.constant 40 : index
    %514 = memref.load %arg8[%c40] : memref<98xf32, #tpu.memory_space<smem>>
    %c89 = arith.constant 89 : index
    %515 = memref.load %arg8[%c89] : memref<98xf32, #tpu.memory_space<smem>>
    %516 = vector.broadcast %514 : f32 to vector<8x256xf32>
    %517 = arith.mulf %516, %155 : vector<8x256xf32>
    %518 = arith.addf %513, %517 : vector<8x256xf32>
    %519 = vector.broadcast %515 : f32 to vector<8x256xf32>
    %520 = arith.mulf %519, %157 : vector<8x256xf32>
    %521 = arith.addf %518, %520 : vector<8x256xf32>
    %c47 = arith.constant 47 : index
    %522 = memref.load %arg8[%c47] : memref<98xf32, #tpu.memory_space<smem>>
    %c96 = arith.constant 96 : index
    %523 = memref.load %arg8[%c96] : memref<98xf32, #tpu.memory_space<smem>>
    %524 = vector.broadcast %522 : f32 to vector<8x256xf32>
    %525 = arith.mulf %524, %162 : vector<8x256xf32>
    %526 = arith.addf %521, %525 : vector<8x256xf32>
    %527 = vector.broadcast %523 : f32 to vector<8x256xf32>
    %528 = arith.mulf %527, %164 : vector<8x256xf32>
    %529 = arith.addf %526, %528 : vector<8x256xf32>
    %c254_i32 = arith.constant 254 : i32
    %530 = tpu.dynamic_rotate %529 by %c254_i32 dim 1 : vector<8x256xf32>, i32 -> vector<8x256xf32>
    %531 = vector.extract_strided_slice %122 {offsets = [5, 0], sizes = [1, 256], strides = [1, 1]} : vector<7x256xf32> to vector<1x256xf32>
    %532 = vector.broadcast %531 : vector<1x256xf32> to vector<8x256xf32>
    %533 = arith.mulf %530, %532 : vector<8x256xf32>
    %534 = arith.addf %472, %533 : vector<8x256xf32>
    %cst_57 = arith.constant 0.000000e+00 : f32
    %535 = vector.broadcast %cst_57 : f32 to vector<8x256xf32>
    %c6 = arith.constant 6 : index
    %536 = memref.load %arg8[%c6] : memref<98xf32, #tpu.memory_space<smem>>
    %c55 = arith.constant 55 : index
    %537 = memref.load %arg8[%c55] : memref<98xf32, #tpu.memory_space<smem>>
    %538 = vector.broadcast %536 : f32 to vector<8x256xf32>
    %539 = arith.mulf %538, %127 : vector<8x256xf32>
    %540 = arith.addf %535, %539 : vector<8x256xf32>
    %541 = vector.broadcast %537 : f32 to vector<8x256xf32>
    %542 = arith.mulf %541, %129 : vector<8x256xf32>
    %543 = arith.addf %540, %542 : vector<8x256xf32>
    %c13 = arith.constant 13 : index
    %544 = memref.load %arg8[%c13] : memref<98xf32, #tpu.memory_space<smem>>
    %c62 = arith.constant 62 : index
    %545 = memref.load %arg8[%c62] : memref<98xf32, #tpu.memory_space<smem>>
    %546 = vector.broadcast %544 : f32 to vector<8x256xf32>
    %547 = arith.mulf %546, %134 : vector<8x256xf32>
    %548 = arith.addf %543, %547 : vector<8x256xf32>
    %549 = vector.broadcast %545 : f32 to vector<8x256xf32>
    %550 = arith.mulf %549, %136 : vector<8x256xf32>
    %551 = arith.addf %548, %550 : vector<8x256xf32>
    %c20 = arith.constant 20 : index
    %552 = memref.load %arg8[%c20] : memref<98xf32, #tpu.memory_space<smem>>
    %c69 = arith.constant 69 : index
    %553 = memref.load %arg8[%c69] : memref<98xf32, #tpu.memory_space<smem>>
    %554 = vector.broadcast %552 : f32 to vector<8x256xf32>
    %555 = arith.mulf %554, %141 : vector<8x256xf32>
    %556 = arith.addf %551, %555 : vector<8x256xf32>
    %557 = vector.broadcast %553 : f32 to vector<8x256xf32>
    %558 = arith.mulf %557, %143 : vector<8x256xf32>
    %559 = arith.addf %556, %558 : vector<8x256xf32>
    %c27 = arith.constant 27 : index
    %560 = memref.load %arg8[%c27] : memref<98xf32, #tpu.memory_space<smem>>
    %c76 = arith.constant 76 : index
    %561 = memref.load %arg8[%c76] : memref<98xf32, #tpu.memory_space<smem>>
    %562 = vector.broadcast %560 : f32 to vector<8x256xf32>
    %563 = arith.mulf %562, %95 : vector<8x256xf32>
    %564 = arith.addf %559, %563 : vector<8x256xf32>
    %565 = vector.broadcast %561 : f32 to vector<8x256xf32>
    %566 = arith.mulf %565, %120 : vector<8x256xf32>
    %567 = arith.addf %564, %566 : vector<8x256xf32>
    %c34 = arith.constant 34 : index
    %568 = memref.load %arg8[%c34] : memref<98xf32, #tpu.memory_space<smem>>
    %c83 = arith.constant 83 : index
    %569 = memref.load %arg8[%c83] : memref<98xf32, #tpu.memory_space<smem>>
    %570 = vector.broadcast %568 : f32 to vector<8x256xf32>
    %571 = arith.mulf %570, %148 : vector<8x256xf32>
    %572 = arith.addf %567, %571 : vector<8x256xf32>
    %573 = vector.broadcast %569 : f32 to vector<8x256xf32>
    %574 = arith.mulf %573, %150 : vector<8x256xf32>
    %575 = arith.addf %572, %574 : vector<8x256xf32>
    %c41 = arith.constant 41 : index
    %576 = memref.load %arg8[%c41] : memref<98xf32, #tpu.memory_space<smem>>
    %c90 = arith.constant 90 : index
    %577 = memref.load %arg8[%c90] : memref<98xf32, #tpu.memory_space<smem>>
    %578 = vector.broadcast %576 : f32 to vector<8x256xf32>
    %579 = arith.mulf %578, %155 : vector<8x256xf32>
    %580 = arith.addf %575, %579 : vector<8x256xf32>
    %581 = vector.broadcast %577 : f32 to vector<8x256xf32>
    %582 = arith.mulf %581, %157 : vector<8x256xf32>
    %583 = arith.addf %580, %582 : vector<8x256xf32>
    %c48 = arith.constant 48 : index
    %584 = memref.load %arg8[%c48] : memref<98xf32, #tpu.memory_space<smem>>
    %c97 = arith.constant 97 : index
    %585 = memref.load %arg8[%c97] : memref<98xf32, #tpu.memory_space<smem>>
    %586 = vector.broadcast %584 : f32 to vector<8x256xf32>
    %587 = arith.mulf %586, %162 : vector<8x256xf32>
    %588 = arith.addf %583, %587 : vector<8x256xf32>
    %589 = vector.broadcast %585 : f32 to vector<8x256xf32>
    %590 = arith.mulf %589, %164 : vector<8x256xf32>
    %591 = arith.addf %588, %590 : vector<8x256xf32>
    %c253_i32 = arith.constant 253 : i32
    %592 = tpu.dynamic_rotate %591 by %c253_i32 dim 1 : vector<8x256xf32>, i32 -> vector<8x256xf32>
    %593 = vector.extract_strided_slice %122 {offsets = [6, 0], sizes = [1, 256], strides = [1, 1]} : vector<7x256xf32> to vector<1x256xf32>
    %594 = vector.broadcast %593 : vector<1x256xf32> to vector<8x256xf32>
    %595 = arith.mulf %592, %594 : vector<8x256xf32>
    %596 = arith.addf %534, %595 : vector<8x256xf32>
    %597 = arith.negf %596 : vector<8x256xf32>
    %598 = math.exp %597 : vector<8x256xf32>
    %cst_58 = arith.constant 1.000000e+00 : f32
    %599 = vector.broadcast %cst_58 : f32 to vector<8x256xf32>
    %600 = arith.addf %599, %598 : vector<8x256xf32>
    %601 = arith.divf %599, %600 : vector<8x256xf32>
    %602 = vector.extract_strided_slice %601 {offsets = [0, 0], sizes = [1, 256], strides = [1, 1]} : vector<8x256xf32> to vector<1x256xf32>
    %603 = vector.shape_cast %602 : vector<1x256xf32> to vector<1x256xf32>
    %604 = vector.broadcast %603 : vector<1x256xf32> to vector<32x256xf32>
    %605 = vector.extract_strided_slice %601 {offsets = [1, 0], sizes = [1, 256], strides = [1, 1]} : vector<8x256xf32> to vector<1x256xf32>
    %606 = vector.shape_cast %605 : vector<1x256xf32> to vector<1x256xf32>
    %607 = vector.broadcast %606 : vector<1x256xf32> to vector<32x256xf32>
    %608 = vector.extract_strided_slice %601 {offsets = [2, 0], sizes = [1, 256], strides = [1, 1]} : vector<8x256xf32> to vector<1x256xf32>
    %609 = vector.shape_cast %608 : vector<1x256xf32> to vector<1x256xf32>
    %610 = vector.broadcast %609 : vector<1x256xf32> to vector<32x256xf32>
    %611 = vector.extract_strided_slice %601 {offsets = [3, 0], sizes = [1, 256], strides = [1, 1]} : vector<8x256xf32> to vector<1x256xf32>
    %612 = vector.shape_cast %611 : vector<1x256xf32> to vector<1x256xf32>
    %613 = vector.broadcast %612 : vector<1x256xf32> to vector<32x256xf32>
    %614 = vector.extract_strided_slice %601 {offsets = [4, 0], sizes = [1, 256], strides = [1, 1]} : vector<8x256xf32> to vector<1x256xf32>
    %615 = vector.shape_cast %614 : vector<1x256xf32> to vector<1x256xf32>
    %616 = vector.broadcast %615 : vector<1x256xf32> to vector<32x256xf32>
    %617 = vector.extract_strided_slice %601 {offsets = [5, 0], sizes = [1, 256], strides = [1, 1]} : vector<8x256xf32> to vector<1x256xf32>
    %618 = vector.shape_cast %617 : vector<1x256xf32> to vector<1x256xf32>
    %619 = vector.broadcast %618 : vector<1x256xf32> to vector<32x256xf32>
    %620 = vector.extract_strided_slice %601 {offsets = [6, 0], sizes = [1, 256], strides = [1, 1]} : vector<8x256xf32> to vector<1x256xf32>
    %621 = vector.shape_cast %620 : vector<1x256xf32> to vector<1x256xf32>
    %622 = vector.broadcast %621 : vector<1x256xf32> to vector<32x256xf32>
    %623 = vector.extract_strided_slice %601 {offsets = [7, 0], sizes = [1, 256], strides = [1, 1]} : vector<8x256xf32> to vector<1x256xf32>
    %624 = vector.shape_cast %623 : vector<1x256xf32> to vector<1x256xf32>
    %625 = vector.broadcast %624 : vector<1x256xf32> to vector<32x256xf32>
    %626 = tpu.concatenate %604, %607, %610, %613, %616, %619, %622, %625 in 0 : vector<32x256xf32>, vector<32x256xf32>, vector<32x256xf32>, vector<32x256xf32>, vector<32x256xf32>, vector<32x256xf32>, vector<32x256xf32>, vector<32x256xf32> -> vector<256x256xf32>
    %627 = arith.mulf %54, %626 : vector<256x256xf32>
    %c0_59 = arith.constant 0 : index
    %c0_60 = arith.constant 0 : index
    %628 = vector.load %arg10[%c0_59, %c0_60] : memref<256x256xf32, #tpu.memory_space<vmem>>, vector<256x256xf32>
    tpu.vector_store %arg10[%c0_59, %c0_60], %627 {strides = array<i32>} : memref<256x256xf32, #tpu.memory_space<vmem>>, vector<256x256xf32>,
    return
  }
  func.func @transform_0(%arg0: i32) -> (i32, i32) {
    %c0_i32 = arith.constant 0 : i32
    %c0_i32_0 = arith.constant 0 : i32
    return %arg0, %c0_i32 : i32, i32
  }
  func.func @transform_1(%arg0: i32) -> (i32, i32) {
    %c0_i32 = arith.constant 0 : i32
    %c0_i32_0 = arith.constant 0 : i32
    %c0_i32_1 = arith.constant 0 : i32
    return %c0_i32, %c0_i32_0 : i32, i32
  }
  func.func @transform_2(%arg0: i32) -> (i32, i32) {
    %c0_i32 = arith.constant 0 : i32
    %c0_i32_0 = arith.constant 0 : i32
    %c0_i32_1 = arith.constant 0 : i32
    return %c0_i32, %c0_i32_0 : i32, i32
  }
  func.func @transform_3(%arg0: i32) -> (i32, i32) {
    %c0_i32 = arith.constant 0 : i32
    %c0_i32_0 = arith.constant 0 : i32
    %c0_i32_1 = arith.constant 0 : i32
    return %c0_i32, %c0_i32_0 : i32, i32
  }
  func.func @transform_4(%arg0: i32) -> (i32, i32) {
    %c0_i32 = arith.constant 0 : i32
    %c0_i32_0 = arith.constant 0 : i32
    %c0_i32_1 = arith.constant 0 : i32
    return %c0_i32, %c0_i32_0 : i32, i32
  }
  func.func @transform_5(%arg0: i32) -> (i32, i32) {
    %c0_i32 = arith.constant 0 : i32
    %c0_i32_0 = arith.constant 0 : i32
    %c0_i32_1 = arith.constant 0 : i32
    return %c0_i32, %c0_i32_0 : i32, i32
  }
  func.func @transform_6(%arg0: i32) -> (i32, i32) {
    %c0_i32 = arith.constant 0 : i32
    %c0_i32_0 = arith.constant 0 : i32
    %c0_i32_1 = arith.constant 0 : i32
    return %c0_i32, %c0_i32_0 : i32, i32
  }
  func.func @transform_7(%arg0: i32) -> i32 {
    %c0_i32 = arith.constant 0 : i32
    %c0_i32_0 = arith.constant 0 : i32
    return %c0_i32 : i32
  }
  func.func @transform_8(%arg0: i32) -> i32 {
    %c0_i32 = arith.constant 0 : i32
    %c0_i32_0 = arith.constant 0 : i32
    return %c0_i32 : i32
  }
  func.func @transform_9(%arg0: i32) -> (i32, i32) {
    %c0_i32 = arith.constant 0 : i32
    %c0_i32_0 = arith.constant 0 : i32
    return %arg0, %c0_i32 : i32, i32
  }
}

</mosaic_0001>

<llo_original>
// kernel: cbam_pallas.1
$region0: #{cbam_pallas.1}
  #allocation0 [shape = 'u32[]', space=smem, size = 0x4, offset = 0x4, fixed_abs, tag = 'smem constant byte address 0x4 - core index']
  #allocation1 [shape = 'u32[144,128]{1,0:T(1,128)}', space=vmem, size = 0x12000, scoped, tag = 'internal scratch']
  #allocation2 [shape = 'f32[1]{0:T(128)S(6)}', space=smem, size = 0x200, scoped, tag = 'scoped memory for cbam_pallas.1']
  %s0 = inlined_call_operand.vmem [shape: f32[512,256], index: 0, kind: input, shape index: {}]
  %s1 = inlined_call_operand.vmem [shape: f32[2,32], index: 1, kind: input, shape index: {}]
  %s2 = inlined_call_operand.vmem [shape: f32[2,1], index: 2, kind: input, shape index: {}]
  %s3 = inlined_call_operand.vmem [shape: f32[32,2], index: 3, kind: input, shape index: {}]
  %s4 = inlined_call_operand.vmem [shape: f32[32,1], index: 4, kind: input, shape index: {}]
  %s5 = inlined_call_operand.vmem [shape: f32[7,256], index: 5, kind: input, shape index: {}]
  %s6 = inlined_call_operand.vmem [shape: f32[7,256], index: 6, kind: input, shape index: {}]
  %s7 = inlined_call_operand.vmem [shape: f32[98], index: 7, kind: input, shape index: {}]
  %s8 = inlined_call_operand.<no memory space> [shape: f32[1], index: 8, kind: input, shape index: {}]
  %s9 = inlined_call_operand.vmem [shape: f32[512,256], index: 9, kind: output, shape index: {}]
  %s10 = sld [smem:[#allocation0]]
  $region73: #{cbam_pallas.1} parent=0
    _
  %s12 = ssub.s32 1, %s10
  %s13 = scalar_select 0, %s12, %s10
  %14 = sst [smem:[#allocation2]] %s8
  $region1: #{cbam_pallas.1} parent=0
    #allocation3 [shape = 'u8[512]{0}', space=smem, size = 0x200, scoped, tag = 'input window, operand 7, single buffered']
    #allocation4 [shape = 's32[2]{0}', space=sflag, size = 0x8, scoped, tag = 'scoped memory for cbam_pallas.1']
    %15 = vsyncpa [#allocation4], 0
    loop: start=0, step=1, limit=4
    $region2: #{cbam_pallas.1} parent=1 // loop_pre_header
      _
    $region3: #{cbam_pallas.1} parent=1 // loop_header
      %s17 = sphi 0, %s21
      %p18 = scmp.ge.s32.totalorder %s17, 4
      %s27 = sphi 0, %s29
      %s30 = sphi 0, %s27
      %s31 = sphi 0, %s30
      %s47 = sphi 0, %s31
      %s51 = sphi 0, %s51
      %s53 = sphi 0, %s51
      %s54 = sphi 0, %s53
      %s68 = sphi 0, %s54
      %s72 = sphi 0, %s72
      %s74 = sphi 0, %s72
      %s75 = sphi 0, %s74
      %s89 = sphi 0, %s75
      %s93 = sphi 0, %s93
      %s95 = sphi 0, %s93
      %s96 = sphi 0, %s95
      %s110 = sphi 0, %s96
      %s114 = sphi 0, %s114
      %s116 = sphi 0, %s114
      %s117 = sphi 0, %s116
      %s131 = sphi 0, %s117
      %s135 = sphi 0, %s135
      %s137 = sphi 0, %s135
      %s138 = sphi 0, %s137
      %s152 = sphi 0, %s138
      %s156 = sphi 0, %s156
      %s158 = sphi 0, %s156
      %s159 = sphi 0, %s158
      %s173 = sphi 0, %s159
      %s177 = sphi 0, %s177
      %s179 = sphi 0, %s177
      %s180 = sphi 0, %s179
      %s194 = sphi 0, %s180
      %s198 = sphi 0, %s198
      %s200 = sphi 0, %s198
      %s201 = sphi 0, %s200
      %s215 = sphi 0, %s201
      %s221 = sphi 0, %s223
      %s224 = sphi 0, %s221
      %s225 = sphi 0, %s224
      %s241 = sphi 0, %s225
    $region4: #{cbam_pallas.1} parent=1 // loop_header_branch
      %20 = sbr.rel (%p18) target = $region8
    $region5: #{cbam_pallas.1} parent=1 // loop_body
      %s22 = ssub.s32 %s17, 1
      %s23 = ssub.s32 %s17, 2
      %s24 = sadd.s32 %s17, 1
      %s25 = ssub.s32 %s17, %s24
      %p26 = scmp.eq.s32.totalorder %s25, 0
      %s28 = sadd.s32 %s27, 1
      %s29 = scalar_select %p26, %s27, %s28
      %p32 = pneg %p26
      %p33 = scmp.eq.s32.totalorder %s17, 1
      %p34 = por %p32, %p33
      %p35 = scmp.ne.s32.totalorder %s27, %s30
      %p36 = scmp.eq.s32.totalorder %s17, 0
      %p37 = por %p35, %p36
      %p38 = scmp.ne.s32.totalorder %s27, %s30
      %p39 = scmp.eq.s32.totalorder %s22, 1
      %p40 = por %p38, %p39
      %p41 = scmp.ne.s32.totalorder %s30, %s31
      %p42 = scmp.eq.s32.totalorder %s22, 0
      %p43 = por %p41, %p42
      %p44 = scmp.ne.s32.totalorder %s30, %s31
      %p45 = scmp.eq.s32.totalorder %s23, 1
      %p46 = por %p44, %p45
      %p48 = scmp.ne.s32.totalorder %s31, %s47
      %p49 = scmp.eq.s32.totalorder %s23, 0
      %p50 = por %p48, %p49
      %s52 = sadd.s32 %s51, 1
      %p55 = scmp.eq.s32.totalorder %s17, 1
      %p56 = scmp.ne.s32.totalorder %s51, %s53
      %p57 = scmp.eq.s32.totalorder %s17, 0
      %p58 = por %p56, %p57
      %p59 = scmp.ne.s32.totalorder %s51, %s53
      %p60 = scmp.eq.s32.totalorder %s22, 1
      %p61 = por %p59, %p60
      %p62 = scmp.ne.s32.totalorder %s53, %s54
      %p63 = scmp.eq.s32.totalorder %s22, 0
      %p64 = por %p62, %p63
      %p65 = scmp.ne.s32.totalorder %s53, %s54
      %p66 = scmp.eq.s32.totalorder %s23, 1
      %p67 = por %p65, %p66
      %p69 = scmp.ne.s32.totalorder %s54, %s68
      %p70 = scmp.eq.s32.totalorder %s23, 0
      %p71 = por %p69, %p70
      %s73 = sadd.s32 %s72, 1
      %p76 = scmp.eq.s32.totalorder %s17, 1
      %p77 = scmp.ne.s32.totalorder %s72, %s74
      %p78 = scmp.eq.s32.totalorder %s17, 0
      %p79 = por %p77, %p78
      %p80 = scmp.ne.s32.totalorder %s72, %s74
      %p81 = scmp.eq.s32.totalorder %s22, 1
      %p82 = por %p80, %p81
      %p83 = scmp.ne.s32.totalorder %s74, %s75
      %p84 = scmp.eq.s32.totalorder %s22, 0
      %p85 = por %p83, %p84
      %p86 = scmp.ne.s32.totalorder %s74, %s75
      %p87 = scmp.eq.s32.totalorder %s23, 1
      %p88 = por %p86, %p87
      %p90 = scmp.ne.s32.totalorder %s75, %s89
      %p91 = scmp.eq.s32.totalorder %s23, 0
      %p92 = por %p90, %p91
      %s94 = sadd.s32 %s93, 1
      %p97 = scmp.eq.s32.totalorder %s17, 1
      %p98 = scmp.ne.s32.totalorder %s93, %s95
      %p99 = scmp.eq.s32.totalorder %s17, 0
      %p100 = por %p98, %p99
      %p101 = scmp.ne.s32.totalorder %s93, %s95
      %p102 = scmp.eq.s32.totalorder %s22, 1
      %p103 = por %p101, %p102
      %p104 = scmp.ne.s32.totalorder %s95, %s96
      %p105 = scmp.eq.s32.totalorder %s22, 0
      %p106 = por %p104, %p105
      %p107 = scmp.ne.s32.totalorder %s95, %s96
      %p108 = scmp.eq.s32.totalorder %s23, 1
      %p109 = por %p107, %p108
      %p111 = scmp.ne.s32.totalorder %s96, %s110
      %p112 = scmp.eq.s32.totalorder %s23, 0
      %p113 = por %p111, %p112
      %s115 = sadd.s32 %s114, 1
      %p118 = scmp.eq.s32.totalorder %s17, 1
      %p119 = scmp.ne.s32.totalorder %s114, %s116
      %p120 = scmp.eq.s32.totalorder %s17, 0
      %p121 = por %p119, %p120
      %p122 = scmp.ne.s32.totalorder %s114, %s116
      %p123 = scmp.eq.s32.totalorder %s22, 1
      %p124 = por %p122, %p123
      %p125 = scmp.ne.s32.totalorder %s116, %s117
      %p126 = scmp.eq.s32.totalorder %s22, 0
      %p127 = por %p125, %p126
      %p128 = scmp.ne.s32.totalorder %s116, %s117
      %p129 = scmp.eq.s32.totalorder %s23, 1
      %p130 = por %p128, %p129
      %p132 = scmp.ne.s32.totalorder %s117, %s131
      %p133 = scmp.eq.s32.totalorder %s23, 0
      %p134 = por %p132, %p133
      %s136 = sadd.s32 %s135, 1
      %p139 = scmp.eq.s32.totalorder %s17, 1
      %p140 = scmp.ne.s32.totalorder %s135, %s137
      %p141 = scmp.eq.s32.totalorder %s17, 0
      %p142 = por %p140, %p141
      %p143 = scmp.ne.s32.totalorder %s135, %s137
      %p144 = scmp.eq.s32.totalorder %s22, 1
      %p145 = por %p143, %p144
      %p146 = scmp.ne.s32.totalorder %s137, %s138
      %p147 = scmp.eq.s32.totalorder %s22, 0
      %p148 = por %p146, %p147
      %p149 = scmp.ne.s32.totalorder %s137, %s138
      %p150 = scmp.eq.s32.totalorder %s23, 1
      %p151 = por %p149, %p150
      %p153 = scmp.ne.s32.totalorder %s138, %s152
      %p154 = scmp.eq.s32.totalorder %s23, 0
      %p155 = por %p153, %p154
      %s157 = sadd.s32 %s156, 1
      %p160 = scmp.eq.s32.totalorder %s17, 1
      %p161 = scmp.ne.s32.totalorder %s156, %s158
      %p162 = scmp.eq.s32.totalorder %s17, 0
      %p163 = por %p161, %p162
      %p164 = scmp.ne.s32.totalorder %s156, %s158
      %p165 = scmp.eq.s32.totalorder %s22, 1
      %p166 = por %p164, %p165
      %p167 = scmp.ne.s32.totalorder %s158, %s159
      %p168 = scmp.eq.s32.totalorder %s22, 0
      %p169 = por %p167, %p168
      %p170 = scmp.ne.s32.totalorder %s158, %s159
      %p171 = scmp.eq.s32.totalorder %s23, 1
      %p172 = por %p170, %p171
      %p174 = scmp.ne.s32.totalorder %s159, %s173
      %p175 = scmp.eq.s32.totalorder %s23, 0
      %p176 = por %p174, %p175
      %s178 = sadd.s32 %s177, 1
      %p181 = scmp.eq.s32.totalorder %s17, 1
      %p182 = scmp.ne.s32.totalorder %s177, %s179
      %p183 = scmp.eq.s32.totalorder %s17, 0
      %p184 = por %p182, %p183
      %p185 = scmp.ne.s32.totalorder %s177, %s179
      %p186 = scmp.eq.s32.totalorder %s22, 1
      %p187 = por %p185, %p186
      %p188 = scmp.ne.s32.totalorder %s179, %s180
      %p189 = scmp.eq.s32.totalorder %s22, 0
      %p190 = por %p188, %p189
      %p191 = scmp.ne.s32.totalorder %s179, %s180
      %p192 = scmp.eq.s32.totalorder %s23, 1
      %p193 = por %p191, %p192
      %p195 = scmp.ne.s32.totalorder %s180, %s194
      %p196 = scmp.eq.s32.totalorder %s23, 0
      %p197 = por %p195, %p196
      %s199 = sadd.s32 %s198, 1
      %p202 = scmp.eq.s32.totalorder %s17, 1
      %p203 = scmp.ne.s32.totalorder %s198, %s200
      %p204 = scmp.eq.s32.totalorder %s17, 0
      %p205 = por %p203, %p204
      %p206 = scmp.ne.s32.totalorder %s198, %s200
      %p207 = scmp.eq.s32.totalorder %s22, 1
      %p208 = por %p206, %p207
      %p209 = scmp.ne.s32.totalorder %s200, %s201
      %p210 = scmp.eq.s32.totalorder %s22, 0
      %p211 = por %p209, %p210
      %p212 = scmp.ne.s32.totalorder %s200, %s201
      %p213 = scmp.eq.s32.totalorder %s23, 1
      %p214 = por %p212, %p213
      %p216 = scmp.ne.s32.totalorder %s201, %s215
      %p217 = scmp.eq.s32.totalorder %s23, 0
      %p218 = por %p216, %p217
      %s219 = ssub.s32 %s17, %s24
      %p220 = scmp.eq.s32.totalorder %s219, 0
      %s222 = sadd.s32 %s221, 1
      %s223 = scalar_select %p220, %s221, %s222
      %p226 = pneg %p220
      %p227 = scmp.eq.s32.totalorder %s17, 1
      %p228 = por %p226, %p227
      %p229 = scmp.ne.s32.totalorder %s221, %s224
      %p230 = scmp.eq.s32.totalorder %s17, 0
      %p231 = por %p229, %p230
      %p232 = scmp.ne.s32.totalorder %s221, %s224
      %p233 = scmp.eq.s32.totalorder %s22, 1
      %p234 = por %p232, %p233
      %p235 = scmp.ne.s32.totalorder %s224, %s225
      %p236 = scmp.eq.s32.totalorder %s22, 0
      %p237 = por %p235, %p236
      %p238 = scmp.ne.s32.totalorder %s224, %s225
      %p239 = scmp.eq.s32.totalorder %s23, 1
      %p240 = por %p238, %p239
      %p242 = scmp.ne.s32.totalorder %s225, %s241
      %p243 = scmp.eq.s32.totalorder %s23, 0
      %p244 = por %p242, %p243
      %p245 = scmp.le.s32.totalorder 1, %s17
      %p246 = scmp.lt.s32.totalorder %s17, 3
      %p247 = pnand %p245, %p246
      %p248 = pneg %p247
      // Predicated region
      $region9: #{cbam_pallas.1} parent=5 // pred_check
        _
      $region10: #{cbam_pallas.1} parent=5 // pred_check_branch
        %250 = sbr.rel (%p247) target = $region12
      $region11: #{cbam_pallas.1} parent=5 // pred_region
        %s251 = ssub.s32 %s17, 1
        // Predicated region
        $region13: #{cbam_pallas.1} parent=11 // pred_check
          %p252 = pneg %p64
        $region14: #{cbam_pallas.1} parent=11 // pred_check_branch
          %254 = sbr.rel (%p252) target = $region16
        $region15: #{cbam_pallas.1} parent=11 // pred_region
          _
        $region16: #{cbam_pallas.1} parent=11 // pred_fallthru
          _
        // Predicated region
        $region17: #{cbam_pallas.1} parent=11 // pred_check
          %p255 = pneg %p85
        $region18: #{cbam_pallas.1} parent=11 // pred_check_branch
          %257 = sbr.rel (%p255) target = $region20
        $region19: #{cbam_pallas.1} parent=11 // pred_region
          _
        $region20: #{cbam_pallas.1} parent=11 // pred_fallthru
          _
        // Predicated region
        $region21: #{cbam_pallas.1} parent=11 // pred_check
          %p258 = pneg %p106
        $region22: #{cbam_pallas.1} parent=11 // pred_check_branch
          %260 = sbr.rel (%p258) target = $region24
        $region23: #{cbam_pallas.1} parent=11 // pred_region
          _
        $region24: #{cbam_pallas.1} parent=11 // pred_fallthru
          _
        // Predicated region
        $region25: #{cbam_pallas.1} parent=11 // pred_check
          %p261 = pneg %p127
        $region26: #{cbam_pallas.1} parent=11 // pred_check_branch
          %263 = sbr.rel (%p261) target = $region28
        $region27: #{cbam_pallas.1} parent=11 // pred_region
          _
        $region28: #{cbam_pallas.1} parent=11 // pred_fallthru
          _
        // Predicated region
        $region29: #{cbam_pallas.1} parent=11 // pred_check
          %p264 = pneg %p148
        $region30: #{cbam_pallas.1} parent=11 // pred_check_branch
          %266 = sbr.rel (%p264) target = $region32
        $region31: #{cbam_pallas.1} parent=11 // pred_region
          _
        $region32: #{cbam_pallas.1} parent=11 // pred_fallthru
          _
        // Predicated region
        $region33: #{cbam_pallas.1} parent=11 // pred_check
          %p267 = pneg %p169
        $region34: #{cbam_pallas.1} parent=11 // pred_check_branch
          %269 = sbr.rel (%p267) target = $region36
        $region35: #{cbam_pallas.1} parent=11 // pred_region
          _
        $region36: #{cbam_pallas.1} parent=11 // pred_fallthru
          _
        // Predicated region
        $region37: #{cbam_pallas.1} parent=11 // pred_check
          %p270 = pneg %p190
        $region38: #{cbam_pallas.1} parent=11 // pred_check_branch
          %272 = sbr.rel (%p270) target = $region40
        $region39: #{cbam_pallas.1} parent=11 // pred_region
          %s274 = ssub.s32 16, 16
          %275 = vsyncadd [#allocation4], %s274
          %s277 = sshll.u32 %s7, 4
          %s278 = int_to_ptr.vmem [resolvable:$true] %s277
          %280 = dma.vmem_to_smem %s278, 16, [#allocation3], [#allocation4]
        $region40: #{cbam_pallas.1} parent=11 // pred_fallthru
          _
        // Predicated region
        $region41: #{cbam_pallas.1} parent=11 // pred_check
          %p281 = pneg %p211
        $region42: #{cbam_pallas.1} parent=11 // pred_check_branch
          %283 = sbr.rel (%p281) target = $region44
        $region43: #{cbam_pallas.1} parent=11 // pred_region
          _
        $region44: #{cbam_pallas.1} parent=11 // pred_fallthru
          _
      $region12: #{cbam_pallas.1} parent=5 // pred_fallthru
        _
      %p284 = scmp.lt.s32.totalorder %s17, 2
      // Predicated region
      $region45: #{cbam_pallas.1} parent=5 // pred_check
        %p285 = pneg %p284
      $region46: #{cbam_pallas.1} parent=5 // pred_check_branch
        %287 = sbr.rel (%p285) target = $region48
      $region47: #{cbam_pallas.1} parent=5 // pred_region
        // Predicated region
        $region49: #{cbam_pallas.1} parent=47 // pred_check
          %p288 = pneg %p37
        $region50: #{cbam_pallas.1} parent=47 // pred_check_branch
          %290 = sbr.rel (%p288) target = $region52
        $region51: #{cbam_pallas.1} parent=47 // pred_region
          %s291 = smul.u32 32, %s17
          %p292 = scmp.lt.s32.totalorder %s291, 63
          %s293 = scalar_select %p292, %s291, 63
          %s294 = smul.addr %s293, 2
          %s295 = smul.addr %s294, 8
          %s296 = scalar_lea.vmem %s0, %s295
          %s297 = smul.u32 32, %s17
        $region52: #{cbam_pallas.1} parent=47 // pred_fallthru
          _
      $region48: #{cbam_pallas.1} parent=5 // pred_fallthru
        _
      %p298 = scmp.le.s32.totalorder 1, %s17
      %p299 = scmp.lt.s32.totalorder %s17, 3
      %p300 = pnand %p298, %p299
      %p301 = pneg %p300
      // Predicated region
      $region53: #{cbam_pallas.1} parent=5 // pred_check
        _
      $region54: #{cbam_pallas.1} parent=5 // pred_check_branch
        %303 = sbr.rel (%p300) target = $region56
      $region55: #{cbam_pallas.1} parent=5 // pred_region
        %s304 = ssub.s32 %s17, 1
        // Predicated region
        $region57: #{cbam_pallas.1} parent=55 // pred_check
          %p305 = pneg %p190
        $region58: #{cbam_pallas.1} parent=55 // pred_check_branch
          %307 = sbr.rel (%p305) target = $region60
        $region59: #{cbam_pallas.1} parent=55 // pred_region
          %308 = dma.done [#allocation4], 16
        $region60: #{cbam_pallas.1} parent=55 // pred_fallthru
          _
        %309 = sfence
        %s310 = smul.u32 32, %s22
        %p311 = scmp.lt.s32.totalorder %s310, 63
        %s312 = scalar_select %p311, %s310, 63
        %s313 = smul.addr %s312, 2
        %s314 = smul.addr %s313, 8
        %s315 = scalar_lea.vmem %s0, %s314
        %p316 = pneg %p43
        %p317 = pneg %p40
        %p318 = pneg %p64
        %p319 = pneg %p61
        %p320 = pneg %p85
        %p321 = pneg %p82
        %p322 = pneg %p106
        %p323 = pneg %p103
        %p324 = pneg %p127
        %p325 = pneg %p124
        %p326 = pneg %p148
        %p327 = pneg %p145
        %p328 = pneg %p169
        %p329 = pneg %p166
        %p330 = pneg %p190
        %p331 = pneg %p187
        %p332 = pneg %p211
        %p333 = pneg %p208
        %p334 = pneg %p237
        %p335 = pneg %p234
        %s336 = smul.u32 32, %s22
        %p337 = scmp.lt.s32.totalorder %s336, 63
        %s338 = scalar_select %p337, %s336, 63
        %s339 = smul.addr %s338, 2
        %s340 = smul.addr %s339, 8
        %s341 = scalar_lea.vmem %s9, %s340
        %s342 = smul.u32 32, %s22
        %p343 = scmp.lt.s32.totalorder %s342, 63
        %s344 = scalar_select %p343, %s342, 63
        %s345 = smul.addr %s344, 2
        %s346 = smul.addr %s345, 8
        %s347 = scalar_lea.vmem %s0, %s346
        %s348 = smul.u32 32, %s22
        %s349 = smul.u32 32, %s22
        %p350 = scmp.lt.s32.totalorder %s349, 63
        %s351 = scalar_select %p350, %s349, 63
        %s352 = smul.addr %s351, 2
        %s353 = smul.addr %s352, 8
        %s354 = scalar_lea.vmem %s9, %s353
        %s355 = smul.u32 32, %s22
        %v356 = vld [vmem:[%s347] sm:$0xff]
        %v357 = vld [vmem:[%s347 + $0x8] sm:$0xff]
        %v358 = vld [vmem:[%s347 + $0x10] sm:$0xff]
        %v359 = vld [vmem:[%s347 + $0x18] sm:$0xff]
        %v360 = vld [vmem:[%s347 + $0x20] sm:$0xff]
        %v361 = vld [vmem:[%s347 + $0x28] sm:$0xff]
        %v362 = vld [vmem:[%s347 + $0x30] sm:$0xff]
        %v363 = vld [vmem:[%s347 + $0x38] sm:$0xff]
        %v364 = vld [vmem:[%s347 + $0x40] sm:$0xff]
        %v365 = vld [vmem:[%s347 + $0x48] sm:$0xff]
        %v366 = vld [vmem:[%s347 + $0x50] sm:$0xff]
        %v367 = vld [vmem:[%s347 + $0x58] sm:$0xff]
        %v368 = vld [vmem:[%s347 + $0x60] sm:$0xff]
        %v369 = vld [vmem:[%s347 + $0x68] sm:$0xff]
        %v370 = vld [vmem:[%s347 + $0x70] sm:$0xff]
        %v371 = vld [vmem:[%s347 + $0x78] sm:$0xff]
        %v372 = vld [vmem:[%s347 + $0x80] sm:$0xff]
        %v373 = vld [vmem:[%s347 + $0x88] sm:$0xff]
        %v374 = vld [vmem:[%s347 + $0x90] sm:$0xff]
        %v375 = vld [vmem:[%s347 + $0x98] sm:$0xff]
        %v376 = vld [vmem:[%s347 + $0xa0] sm:$0xff]
        %v377 = vld [vmem:[%s347 + $0xa8] sm:$0xff]
        %v378 = vld [vmem:[%s347 + $0xb0] sm:$0xff]
        %v379 = vld [vmem:[%s347 + $0xb8] sm:$0xff]
        %v380 = vld [vmem:[%s347 + $0xc0] sm:$0xff]
        %v381 = vld [vmem:[%s347 + $0xc8] sm:$0xff]
        %v382 = vld [vmem:[%s347 + $0xd0] sm:$0xff]
        %v383 = vld [vmem:[%s347 + $0xd8] sm:$0xff]
        %v384 = vld [vmem:[%s347 + $0xe0] sm:$0xff]
        %v385 = vld [vmem:[%s347 + $0xe8] sm:$0xff]
        %v386 = vld [vmem:[%s347 + $0xf0] sm:$0xff]
        %v387 = vld [vmem:[%s347 + $0xf8] sm:$0xff]
        %v388 = vld [vmem:[%s347 + $0x100] sm:$0xff]
        %v389 = vld [vmem:[%s347 + $0x108] sm:$0xff]
        %v390 = vld [vmem:[%s347 + $0x110] sm:$0xff]
        %v391 = vld [vmem:[%s347 + $0x118] sm:$0xff]
        %v392 = vld [vmem:[%s347 + $0x120] sm:$0xff]
        %v393 = vld [vmem:[%s347 + $0x128] sm:$0xff]
        %v394 = vld [vmem:[%s347 + $0x130] sm:$0xff]
        %v395 = vld [vmem:[%s347 + $0x138] sm:$0xff]
        %v396 = vld [vmem:[%s347 + $0x140] sm:$0xff]
        %v397 = vld [vmem:[%s347 + $0x148] sm:$0xff]
        %v398 = vld [vmem:[%s347 + $0x150] sm:$0xff]
        %v399 = vld [vmem:[%s347 + $0x158] sm:$0xff]
        %v400 = vld [vmem:[%s347 + $0x160] sm:$0xff]
        %v401 = vld [vmem:[%s347 + $0x168] sm:$0xff]
        %v402 = vld [vmem:[%s347 + $0x170] sm:$0xff]
        %v403 = vld [vmem:[%s347 + $0x178] sm:$0xff]
        %v404 = vld [vmem:[%s347 + $0x180] sm:$0xff]
        %v405 = vld [vmem:[%s347 + $0x188] sm:$0xff]
        %v406 = vld [vmem:[%s347 + $0x190] sm:$0xff]
        %v407 = vld [vmem:[%s347 + $0x198] sm:$0xff]
        %v408 = vld [vmem:[%s347 + $0x1a0] sm:$0xff]
        %v409 = vld [vmem:[%s347 + $0x1a8] sm:$0xff]
        %v410 = vld [vmem:[%s347 + $0x1b0] sm:$0xff]
        %v411 = vld [vmem:[%s347 + $0x1b8] sm:$0xff]
        %v412 = vld [vmem:[%s347 + $0x1c0] sm:$0xff]
        %v413 = vld [vmem:[%s347 + $0x1c8] sm:$0xff]
        %v414 = vld [vmem:[%s347 + $0x1d0] sm:$0xff]
        %v415 = vld [vmem:[%s347 + $0x1d8] sm:$0xff]
        %v416 = vld [vmem:[%s347 + $0x1e0] sm:$0xff]
        %v417 = vld [vmem:[%s347 + $0x1e8] sm:$0xff]
        %v418 = vld [vmem:[%s347 + $0x1f0] sm:$0xff]
        %v419 = vld [vmem:[%s347 + $0x1f8] sm:$0xff]
        %v420 = vadd.f32 %v356, %v357
        %421 = vadd.xlane.f32.xlu0 %v420
        %v422 = vpop.xlane.xlu0 %421
        %v423 = vadd.f32 %v358, %v359
        %424 = vadd.xlane.f32.xlu0 %v423
        %v425 = vpop.xlane.xlu0 %424
        %v426 = vadd.f32 %v360, %v361
        %427 = vadd.xlane.f32.xlu0 %v426
        %v428 = vpop.xlane.xlu0 %427
        %v429 = vadd.f32 %v362, %v363
        %430 = vadd.xlane.f32.xlu0 %v429
        %v431 = vpop.xlane.xlu0 %430
        %v432 = vadd.f32 %v364, %v365
        %433 = vadd.xlane.f32.xlu0 %v432
        %v434 = vpop.xlane.xlu0 %433
        %v435 = vadd.f32 %v366, %v367
        %436 = vadd.xlane.f32.xlu0 %v435
        %v437 = vpop.xlane.xlu0 %436
        %v438 = vadd.f32 %v368, %v369
        %439 = vadd.xlane.f32.xlu0 %v438
        %v440 = vpop.xlane.xlu0 %439
        %v441 = vadd.f32 %v370, %v371
        %442 = vadd.xlane.f32.xlu0 %v441
        %v443 = vpop.xlane.xlu0 %442
        %v444 = vadd.f32 %v372, %v373
        %445 = vadd.xlane.f32.xlu0 %v444
        %v446 = vpop.xlane.xlu0 %445
        %v447 = vadd.f32 %v374, %v375
        %448 = vadd.xlane.f32.xlu0 %v447
        %v449 = vpop.xlane.xlu0 %448
        %v450 = vadd.f32 %v376, %v377
        %451 = vadd.xlane.f32.xlu0 %v450
        %v452 = vpop.xlane.xlu0 %451
        %v453 = vadd.f32 %v378, %v379
        %454 = vadd.xlane.f32.xlu0 %v453
        %v455 = vpop.xlane.xlu0 %454
        %v456 = vadd.f32 %v380, %v381
        %457 = vadd.xlane.f32.xlu0 %v456
        %v458 = vpop.xlane.xlu0 %457
        %v459 = vadd.f32 %v382, %v383
        %460 = vadd.xlane.f32.xlu0 %v459
        %v461 = vpop.xlane.xlu0 %460
        %v462 = vadd.f32 %v384, %v385
        %463 = vadd.xlane.f32.xlu0 %v462
        %v464 = vpop.xlane.xlu0 %463
        %v465 = vadd.f32 %v386, %v387
        %466 = vadd.xlane.f32.xlu0 %v465
        %v467 = vpop.xlane.xlu0 %466
        %v468 = vadd.f32 %v388, %v389
        %469 = vadd.xlane.f32.xlu0 %v468
        %v470 = vpop.xlane.xlu0 %469
        %v471 = vadd.f32 %v390, %v391
        %472 = vadd.xlane.f32.xlu0 %v471
        %v473 = vpop.xlane.xlu0 %472
        %v474 = vadd.f32 %v392, %v393
        %475 = vadd.xlane.f32.xlu0 %v474
        %v476 = vpop.xlane.xlu0 %475
        %v477 = vadd.f32 %v394, %v395
        %478 = vadd.xlane.f32.xlu0 %v477
        %v479 = vpop.xlane.xlu0 %478
        %v480 = vadd.f32 %v396, %v397
        %481 = vadd.xlane.f32.xlu0 %v480
        %v482 = vpop.xlane.xlu0 %481
        %v483 = vadd.f32 %v398, %v399
        %484 = vadd.xlane.f32.xlu0 %v483
        %v485 = vpop.xlane.xlu0 %484
        %v486 = vadd.f32 %v400, %v401
        %487 = vadd.xlane.f32.xlu0 %v486
        %v488 = vpop.xlane.xlu0 %487
        %v489 = vadd.f32 %v402, %v403
        %490 = vadd.xlane.f32.xlu0 %v489
        %v491 = vpop.xlane.xlu0 %490
        %v492 = vadd.f32 %v404, %v405
        %493 = vadd.xlane.f32.xlu0 %v492
        %v494 = vpop.xlane.xlu0 %493
        %v495 = vadd.f32 %v406, %v407
        %496 = vadd.xlane.f32.xlu0 %v495
        %v497 = vpop.xlane.xlu0 %496
        %v498 = vadd.f32 %v408, %v409
        %499 = vadd.xlane.f32.xlu0 %v498
        %v500 = vpop.xlane.xlu0 %499
        %v501 = vadd.f32 %v410, %v411
        %502 = vadd.xlane.f32.xlu0 %v501
        %v503 = vpop.xlane.xlu0 %502
        %v504 = vadd.f32 %v412, %v413
        %505 = vadd.xlane.f32.xlu0 %v504
        %v506 = vpop.xlane.xlu0 %505
        %v507 = vadd.f32 %v414, %v415
        %508 = vadd.xlane.f32.xlu0 %v507
        %v509 = vpop.xlane.xlu0 %508
        %v510 = vadd.f32 %v416, %v417
        %511 = vadd.xlane.f32.xlu0 %v510
        %v512 = vpop.xlane.xlu0 %511
        %v513 = vadd.f32 %v418, %v419
        %514 = vadd.xlane.f32.xlu0 %v513
        %v515 = vpop.xlane.xlu0 %514
        %v516 = vrcp.pop 256.0
        %v517 = vmul.f32 %v422, %v516
        %v518 = vmul.f32 %v425, %v516
        %v519 = vmul.f32 %v428, %v516
        %v520 = vmul.f32 %v431, %v516
        %v521 = vmul.f32 %v434, %v516
        %v522 = vmul.f32 %v437, %v516
        %v523 = vmul.f32 %v440, %v516
        %v524 = vmul.f32 %v443, %v516
        %v525 = vmul.f32 %v446, %v516
        %v526 = vmul.f32 %v449, %v516
        %v527 = vmul.f32 %v452, %v516
        %v528 = vmul.f32 %v455, %v516
        %v529 = vmul.f32 %v458, %v516
        %v530 = vmul.f32 %v461, %v516
        %v531 = vmul.f32 %v464, %v516
        %v532 = vmul.f32 %v467, %v516
        %v533 = vmul.f32 %v470, %v516
        %v534 = vmul.f32 %v473, %v516
        %v535 = vmul.f32 %v476, %v516
        %v536 = vmul.f32 %v479, %v516
        %v537 = vmul.f32 %v482, %v516
        %v538 = vmul.f32 %v485, %v516
        %v539 = vmul.f32 %v488, %v516
        %v540 = vmul.f32 %v491, %v516
        %v541 = vmul.f32 %v494, %v516
        %v542 = vmul.f32 %v497, %v516
        %v543 = vmul.f32 %v500, %v516
        %v544 = vmul.f32 %v503, %v516
        %v545 = vmul.f32 %v506, %v516
        %v546 = vmul.f32 %v509, %v516
        %v547 = vmul.f32 %v512, %v516
        %v548 = vmul.f32 %v515, %v516
        %v549 = vmax.f32 %v356, %v357
        %550 = vmax.xlane.f32.xlu0 %v549
        %v551 = vpop.xlane.xlu0 %550
        %v552 = vmax.f32 %v358, %v359
        %553 = vmax.xlane.f32.xlu0 %v552
        %v554 = vpop.xlane.xlu0 %553
        %v555 = vmax.f32 %v360, %v361
        %556 = vmax.xlane.f32.xlu0 %v555
        %v557 = vpop.xlane.xlu0 %556
        %v558 = vmax.f32 %v362, %v363
        %559 = vmax.xlane.f32.xlu0 %v558
        %v560 = vpop.xlane.xlu0 %559
        %v561 = vmax.f32 %v364, %v365
        %562 = vmax.xlane.f32.xlu0 %v561
        %v563 = vpop.xlane.xlu0 %562
        %v564 = vmax.f32 %v366, %v367
        %565 = vmax.xlane.f32.xlu0 %v564
        %v566 = vpop.xlane.xlu0 %565
        %v567 = vmax.f32 %v368, %v369
        %568 = vmax.xlane.f32.xlu0 %v567
        %v569 = vpop.xlane.xlu0 %568
        %v570 = vmax.f32 %v370, %v371
        %571 = vmax.xlane.f32.xlu0 %v570
        %v572 = vpop.xlane.xlu0 %571
        %v573 = vmax.f32 %v372, %v373
        %574 = vmax.xlane.f32.xlu0 %v573
        %v575 = vpop.xlane.xlu0 %574
        %v576 = vmax.f32 %v374, %v375
        %577 = vmax.xlane.f32.xlu0 %v576
        %v578 = vpop.xlane.xlu0 %577
        %v579 = vmax.f32 %v376, %v377
        %580 = vmax.xlane.f32.xlu0 %v579
        %v581 = vpop.xlane.xlu0 %580
        %v582 = vmax.f32 %v378, %v379
        %583 = vmax.xlane.f32.xlu0 %v582
        %v584 = vpop.xlane.xlu0 %583
        %v585 = vmax.f32 %v380, %v381
        %586 = vmax.xlane.f32.xlu0 %v585
        %v587 = vpop.xlane.xlu0 %586
        %v588 = vmax.f32 %v382, %v383
        %589 = vmax.xlane.f32.xlu0 %v588
        %v590 = vpop.xlane.xlu0 %589
        %v591 = vmax.f32 %v384, %v385
        %592 = vmax.xlane.f32.xlu0 %v591
        %v593 = vpop.xlane.xlu0 %592
        %v594 = vmax.f32 %v386, %v387
        %595 = vmax.xlane.f32.xlu0 %v594
        %v596 = vpop.xlane.xlu0 %595
        %v597 = vmax.f32 %v388, %v389
        %598 = vmax.xlane.f32.xlu0 %v597
        %v599 = vpop.xlane.xlu0 %598
        %v600 = vmax.f32 %v390, %v391
        %601 = vmax.xlane.f32.xlu0 %v600
        %v602 = vpop.xlane.xlu0 %601
        %v603 = vmax.f32 %v392, %v393
        %604 = vmax.xlane.f32.xlu0 %v603
        %v605 = vpop.xlane.xlu0 %604
        %v606 = vmax.f32 %v394, %v395
        %607 = vmax.xlane.f32.xlu0 %v606
        %v608 = vpop.xlane.xlu0 %607
        %v609 = vmax.f32 %v396, %v397
        %610 = vmax.xlane.f32.xlu0 %v609
        %v611 = vpop.xlane.xlu0 %610
        %v612 = vmax.f32 %v398, %v399
        %613 = vmax.xlane.f32.xlu0 %v612
        %v614 = vpop.xlane.xlu0 %613
        %v615 = vmax.f32 %v400, %v401
        %616 = vmax.xlane.f32.xlu0 %v615
        %v617 = vpop.xlane.xlu0 %616
        %v618 = vmax.f32 %v402, %v403
        %619 = vmax.xlane.f32.xlu0 %v618
        %v620 = vpop.xlane.xlu0 %619
        %v621 = vmax.f32 %v404, %v405
        %622 = vmax.xlane.f32.xlu0 %v621
        %v623 = vpop.xlane.xlu0 %622
        %v624 = vmax.f32 %v406, %v407
        %625 = vmax.xlane.f32.xlu0 %v624
        %v626 = vpop.xlane.xlu0 %625
        %v627 = vmax.f32 %v408, %v409
        %628 = vmax.xlane.f32.xlu0 %v627
        %v629 = vpop.xlane.xlu0 %628
        %v630 = vmax.f32 %v410, %v411
        %631 = vmax.xlane.f32.xlu0 %v630
        %v632 = vpop.xlane.xlu0 %631
        %v633 = vmax.f32 %v412, %v413
        %634 = vmax.xlane.f32.xlu0 %v633
        %v635 = vpop.xlane.xlu0 %634
        %v636 = vmax.f32 %v414, %v415
        %637 = vmax.xlane.f32.xlu0 %v636
        %v638 = vpop.xlane.xlu0 %637
        %v639 = vmax.f32 %v416, %v417
        %640 = vmax.xlane.f32.xlu0 %v639
        %v641 = vpop.xlane.xlu0 %640
        %v642 = vmax.f32 %v418, %v419
        %643 = vmax.xlane.f32.xlu0 %v642
        %v644 = vpop.xlane.xlu0 %643
        %vm645 = vcmask 7168
        %v646 = vsel %vm645, %v517, %v521
        %v647 = vsel %vm645, %v518, %v522
        %v648 = vsel %vm645, %v519, %v523
        %v649 = vsel %vm645, %v520, %v524
        %vm650 = vcmask 15360
        %v651 = vsel %vm650, %v646, %v525
        %v652 = vsel %vm650, %v647, %v526
        %v653 = vsel %vm650, %v648, %v527
        %v654 = vsel %vm650, %v649, %v528
        %vm655 = vcmask 23552
        %v656 = vsel %vm655, %v651, %v529
        %v657 = vsel %vm655, %v652, %v530
        %v658 = vsel %vm655, %v653, %v531
        %v659 = vsel %vm655, %v654, %v532
        %vm660 = vcmask 31744
        %v661 = vsel %vm660, %v656, %v533
        %v662 = vsel %vm660, %v657, %v534
        %v663 = vsel %vm660, %v658, %v535
        %v664 = vsel %vm660, %v659, %v536
        %vm665 = vcmask 39936
        %v666 = vsel %vm665, %v661, %v537
        %v667 = vsel %vm665, %v662, %v538
        %v668 = vsel %vm665, %v663, %v539
        %v669 = vsel %vm665, %v664, %v540
        %vm670 = vcmask 48128
        %v671 = vsel %vm670, %v666, %v541
        %v672 = vsel %vm670, %v667, %v542
        %v673 = vsel %vm670, %v668, %v543
        %v674 = vsel %vm670, %v669, %v544
        %vm675 = vcmask 56320
        %v676 = vsel %vm675, %v671, %v545
        %v677 = vsel %vm675, %v672, %v546
        %v678 = vsel %vm675, %v673, %v547
        %v679 = vsel %vm675, %v674, %v548
        %vm680 = vcmask 64512
        %v681 = vsel %vm680, %v676, %v551
        %v682 = vsel %vm680, %v677, %v554
        %v683 = vsel %vm680, %v678, %v557
        %v684 = vsel %vm680, %v679, %v560
        %vm685 = vcmask 72704
        %v686 = vsel %vm685, %v681, %v563
        %v687 = vsel %vm685, %v682, %v566
        %v688 = vsel %vm685, %v683, %v569
        %v689 = vsel %vm685, %v684, %v572
        %vm690 = vcmask 80896
        %v691 = vsel %vm690, %v686, %v575
        %v692 = vsel %vm690, %v687, %v578
        %v693 = vsel %vm690, %v688, %v581
        %v694 = vsel %vm690, %v689, %v584
        %vm695 = vcmask 89088
        %v696 = vsel %vm695, %v691, %v587
        %v697 = vsel %vm695, %v692, %v590
        %v698 = vsel %vm695, %v693, %v593
        %v699 = vsel %vm695, %v694, %v596
        %vm700 = vcmask 97280
        %v701 = vsel %vm700, %v696, %v599
        %v702 = vsel %vm700, %v697, %v602
        %v703 = vsel %vm700, %v698, %v605
        %v704 = vsel %vm700, %v699, %v608
        %vm705 = vcmask 105472
        %v706 = vsel %vm705, %v701, %v611
        %v707 = vsel %vm705, %v702, %v614
        %v708 = vsel %vm705, %v703, %v617
        %v709 = vsel %vm705, %v704, %v620
        %vm710 = vcmask 113664
        %v711 = vsel %vm710, %v706, %v623
        %v712 = vsel %vm710, %v707, %v626
        %v713 = vsel %vm710, %v708, %v629
        %v714 = vsel %vm710, %v709, %v632
        %vm715 = vcmask 121856
        %v716 = vsel %vm715, %v711, %v635
        %v717 = vsel %vm715, %v712, %v638
        %v718 = vsel %vm715, %v713, %v641
        %v719 = vsel %vm715, %v714, %v644
        %v720 = vld [vmem:[%s1] sm:$0x3]
        %v721 = vld [vmem:[%s2] sm:$0x3]
        %723 = vset.pattern.permute.xlu0 0
        %724 = vperm.xlu0 %723, %v721
        %v725 = vpop.permute.xlu0 %724
        %vm727 = vcmask 261120
        %v729 = vsel %vm727, %v720, 0
        %731 = vmatprep.subr.mxu0 0.0
        %732 = vmatpush1.msra.mxu0 0.0
        %733 = vmatprep.subr.mxu0 0.0
        %734 = vmatpush1.msra.mxu0 0.0
        %735 = vmatprep.subr.mxu0 0.0
        %736 = vmatpush1.msra.mxu0 0.0
        %737 = vmatprep.subr.mxu0 0.0
        %738 = vmatpush1.msra.mxu0 0.0
        %739 = vmatprep.subr.mxu0 0.0
        %740 = vmatpush1.msra.mxu0 0.0
        %741 = vmatprep.subr.mxu0 0.0
        %742 = vmatpush1.msra.mxu0 0.0
        %743 = vmatprep.subr.mxu0 0.0
        %744 = vmatpush1.msra.mxu0 0.0
        %745 = vmatprep.subr.mxu0 0.0
        %746 = vmatpush1.msra.mxu0 0.0
        %747 = vmatprep.subr.mxu0 0.0
        %748 = vmatpush1.msra.mxu0 0.0
        %749 = vmatprep.subr.mxu0 0.0
        %750 = vmatpush1.msra.mxu0 0.0
        %751 = vmatprep.subr.mxu0 0.0
        %752 = vmatpush1.msra.mxu0 0.0
        %753 = vmatprep.subr.mxu0 0.0
        %754 = vmatpush1.msra.mxu0 0.0
        %755 = vmatprep.subr.mxu0 0.0
        %756 = vmatpush1.msra.mxu0 %v719
        %757 = vmatprep.subr.mxu0 0.0
        %758 = vmatpush1.msra.mxu0 %v718
        %759 = vmatprep.subr.mxu0 0.0
        %760 = vmatpush1.msra.mxu0 %v717
        %761 = vmatprep.subr.mxu0 0.0
        %762 = vmatpush1.msra.mxu0 %v716
        %763 = vmatprep.subr.mxu0 0.0
        %764 = vmatpush2.msra.mxu0 0.0
        %765 = vmatprep.subr.mxu0 0.0
        %766 = vmatpush2.msra.mxu0 0.0
        %767 = vmatprep.subr.mxu0 0.0
        %768 = vmatpush2.msra.mxu0 0.0
        %769 = vmatprep.subr.mxu0 0.0
        %770 = vmatpush2.msra.mxu0 0.0
        %771 = vmatprep.subr.mxu0 0.0
        %772 = vmatpush2.msra.mxu0 0.0
        %773 = vmatprep.subr.mxu0 0.0
        %774 = vmatpush2.msra.mxu0 0.0
        %775 = vmatprep.subr.mxu0 0.0
        %776 = vmatpush2.msra.mxu0 0.0
        %777 = vmatprep.subr.mxu0 0.0
        %778 = vmatpush2.msra.mxu0 0.0
        %779 = vmatprep.subr.mxu0 0.0
        %780 = vmatpush2.msra.mxu0 0.0
        %781 = vmatprep.subr.mxu0 0.0
        %782 = vmatpush2.msra.mxu0 0.0
        %783 = vmatprep.subr.mxu0 0.0
        %784 = vmatpush2.msra.mxu0 0.0
        %785 = vmatprep.subr.mxu0 0.0
        %786 = vmatpush2.msra.mxu0 0.0
        %787 = vmatprep.subr.mxu0 0.0
        %788 = vmatpush2.msra.mxu0 0.0
        %789 = vmatprep.subr.mxu0 0.0
        %790 = vmatpush2.msra.mxu0 0.0
        %791 = vmatprep.subr.mxu0 0.0
        %792 = vmatpush2.msra.mxu0 0.0
        %793 = vmatprep.subr.mxu0 0.0
        %794 = vmatpush2.msra.mxu0 0.0
        %795 = vmatprep.mubr.f32.mxu0 0.0
        %796 = vmatmul.mubr.f32.gmra.mxu0 %v729
        %v797 = vpop.f32.mrf.mxu0
        %v798 = vadd.f32 %v725, %v797
        %v799 = vpop.f32.mrf.mxu0
        %800 = vdwg.mxu0
        %v801 = vmax.f32 %v798, 0.0
        %v802 = vld [vmem:[%s3] sm:$0xff]
        %v803 = vld [vmem:[%s3 + $0x8] sm:$0xff]
        %v804 = vld [vmem:[%s3 + $0x10] sm:$0xff]
        %v805 = vld [vmem:[%s3 + $0x18] sm:$0xff]
        %v806 = vld [vmem:[%s4] sm:$0xff]
        %v807 = vld [vmem:[%s4 + $0x8] sm:$0xff]
        %v808 = vld [vmem:[%s4 + $0x10] sm:$0xff]
        %v809 = vld [vmem:[%s4 + $0x18] sm:$0xff]
        %811 = vset.pattern.permute.xlu0 0
        %812 = vperm.xlu0 %811, %v806
        %v813 = vpop.permute.xlu0 %812
        %816 = vset.pattern.permute.xlu0 0
        %817 = vperm.xlu0 %816, %v807
        %v818 = vpop.permute.xlu0 %817
        %821 = vset.pattern.permute.xlu0 0
        %822 = vperm.xlu0 %821, %v808
        %v823 = vpop.permute.xlu0 %822
        %826 = vset.pattern.permute.xlu0 0
        %827 = vperm.xlu0 %826, %v809
        %v828 = vpop.permute.xlu0 %827
        %v831 = vsel %vm650, %v802, 0
        %v834 = vsel %vm650, %v803, 0
        %v837 = vsel %vm650, %v804, 0
        %v840 = vsel %vm650, %v805, 0
        %vm842 = vcmask 1041408
        %v844 = vsel %vm842, %v801, 0
        %846 = vmatprep.subr.mxu0 0.0
        %847 = vmatpush1.msra.mxu0 0.0
        %848 = vmatprep.subr.mxu0 0.0
        %849 = vmatpush1.msra.mxu0 0.0
        %850 = vmatprep.subr.mxu0 0.0
        %851 = vmatpush1.msra.mxu0 0.0
        %852 = vmatprep.subr.mxu0 0.0
        %853 = vmatpush1.msra.mxu0 0.0
        %854 = vmatprep.subr.mxu0 0.0
        %855 = vmatpush1.msra.mxu0 0.0
        %856 = vmatprep.subr.mxu0 0.0
        %857 = vmatpush1.msra.mxu0 0.0
        %858 = vmatprep.subr.mxu0 0.0
        %859 = vmatpush1.msra.mxu0 0.0
        %860 = vmatprep.subr.mxu0 0.0
        %861 = vmatpush1.msra.mxu0 0.0
        %862 = vmatprep.subr.mxu0 0.0
        %863 = vmatpush1.msra.mxu0 0.0
        %864 = vmatprep.subr.mxu0 0.0
        %865 = vmatpush1.msra.mxu0 0.0
        %866 = vmatprep.subr.mxu0 0.0
        %867 = vmatpush1.msra.mxu0 0.0
        %868 = vmatprep.subr.mxu0 0.0
        %869 = vmatpush1.msra.mxu0 0.0
        %870 = vmatprep.subr.mxu0 0.0
        %871 = vmatpush1.msra.mxu0 0.0
        %872 = vmatprep.subr.mxu0 0.0
        %873 = vmatpush1.msra.mxu0 0.0
        %874 = vmatprep.subr.mxu0 0.0
        %875 = vmatpush1.msra.mxu0 0.0
        %876 = vmatprep.subr.mxu0 0.0
        %877 = vmatpush1.msra.mxu0 %v844
        %878 = vmatprep.subr.mxu0 0.0
        %879 = vmatpush2.msra.mxu0 0.0
        %880 = vmatprep.subr.mxu0 0.0
        %881 = vmatpush2.msra.mxu0 0.0
        %882 = vmatprep.subr.mxu0 0.0
        %883 = vmatpush2.msra.mxu0 0.0
        %884 = vmatprep.subr.mxu0 0.0
        %885 = vmatpush2.msra.mxu0 0.0
        %886 = vmatprep.subr.mxu0 0.0
        %887 = vmatpush2.msra.mxu0 0.0
        %888 = vmatprep.subr.mxu0 0.0
        %889 = vmatpush2.msra.mxu0 0.0
        %890 = vmatprep.subr.mxu0 0.0
        %891 = vmatpush2.msra.mxu0 0.0
        %892 = vmatprep.subr.mxu0 0.0
        %893 = vmatpush2.msra.mxu0 0.0
        %894 = vmatprep.subr.mxu0 0.0
        %895 = vmatpush2.msra.mxu0 0.0
        %896 = vmatprep.subr.mxu0 0.0
        %897 = vmatpush2.msra.mxu0 0.0
        %898 = vmatprep.subr.mxu0 0.0
        %899 = vmatpush2.msra.mxu0 0.0
        %900 = vmatprep.subr.mxu0 0.0
        %901 = vmatpush2.msra.mxu0 0.0
        %902 = vmatprep.subr.mxu0 0.0
        %903 = vmatpush2.msra.mxu0 0.0
        %904 = vmatprep.subr.mxu0 0.0
        %905 = vmatpush2.msra.mxu0 0.0
        %906 = vmatprep.subr.mxu0 0.0
        %907 = vmatpush2.msra.mxu0 0.0
        %908 = vmatprep.subr.mxu0 0.0
        %909 = vmatpush2.msra.mxu0 0.0
        %910 = vmatprep.mubr.f32.mxu0 0.0
        %911 = vmatmul.mubr.f32.gmra.mxu0 %v831
        %v912 = vpop.f32.mrf.mxu0
        %v913 = vadd.f32 %v813, %v912
        %v914 = vpop.f32.mrf.mxu0
        %915 = vmatprep.mubr.f32.mxu0 0.0
        %916 = vmatmul.mubr.f32.gmra.mxu0 %v834
        %v917 = vpop.f32.mrf.mxu0
        %v918 = vadd.f32 %v818, %v917
        %v919 = vpop.f32.mrf.mxu0
        %920 = vmatprep.mubr.f32.mxu0 0.0
        %921 = vmatmul.mubr.f32.gmra.mxu0 %v837
        %v922 = vpop.f32.mrf.mxu0
        %v923 = vadd.f32 %v823, %v922
        %v924 = vpop.f32.mrf.mxu0
        %925 = vmatprep.mubr.f32.mxu0 0.0
        %926 = vmatmul.mubr.f32.gmra.mxu0 %v840
        %v927 = vpop.f32.mrf.mxu0
        %v928 = vadd.f32 %v828, %v927
        %v929 = vpop.f32.mrf.mxu0
        %930 = vdwg.mxu0
        %935 = vrot.lane.b32.xlu0 %v913, 120
        %v936 = vpop.permute.xlu0 %935
        %937 = vrot.lane.b32.xlu0 %v918, 120
        %v938 = vpop.permute.xlu0 %937
        %939 = vrot.lane.b32.xlu0 %v923, 120
        %v940 = vpop.permute.xlu0 %939
        %941 = vrot.lane.b32.xlu0 %v928, 120
        %v942 = vpop.permute.xlu0 %941
        %v947 = vadd.f32 %v913, %v936
        %v948 = vadd.f32 %v918, %v938
        %v949 = vadd.f32 %v923, %v940
        %v950 = vadd.f32 %v928, %v942
        %v951 = vxor.u32 %v947, 2147483648
        %v952 = vxor.u32 %v948, 2147483648
        %v953 = vxor.u32 %v949, 2147483648
        %v954 = vxor.u32 %v950, 2147483648
        %v955 = vmul.f32 %v951, 1.442695
        %v956 = vpow.pop %v955
        %v957 = vmul.f32 %v952, 1.442695
        %v958 = vpow.pop %v957
        %v959 = vmul.f32 %v953, 1.442695
        %v960 = vpow.pop %v959
        %v961 = vmul.f32 %v954, 1.442695
        %v962 = vpow.pop %v961
        %v963 = vadd.f32 %v956, 1.0
        %v964 = vadd.f32 %v958, 1.0
        %v965 = vadd.f32 %v960, 1.0
        %v966 = vadd.f32 %v962, 1.0
        %v967 = vrcp.pop %v963
        %v968 = vmul.f32 1.0, %v967
        %v969 = vrcp.pop %v964
        %v970 = vmul.f32 1.0, %v969
        %v971 = vrcp.pop %v965
        %v972 = vmul.f32 1.0, %v971
        %v973 = vrcp.pop %v966
        %v974 = vmul.f32 1.0, %v973
        %979 = vrot.lane.b32.xlu0 %v968, 127
        %v980 = vpop.permute.xlu0 %979
        %981 = vrot.lane.b32.xlu0 %v970, 127
        %v982 = vpop.permute.xlu0 %981
        %983 = vrot.lane.b32.xlu0 %v972, 127
        %v984 = vpop.permute.xlu0 %983
        %985 = vrot.lane.b32.xlu0 %v974, 127
        %v986 = vpop.permute.xlu0 %985
        %987 = vrot.lane.b32.xlu0 %v968, 126
        %v988 = vpop.permute.xlu0 %987
        %989 = vrot.lane.b32.xlu0 %v970, 126
        %v990 = vpop.permute.xlu0 %989
        %991 = vrot.lane.b32.xlu0 %v972, 126
        %v992 = vpop.permute.xlu0 %991
        %993 = vrot.lane.b32.xlu0 %v974, 126
        %v994 = vpop.permute.xlu0 %993
        %995 = vrot.lane.b32.xlu0 %v968, 125
        %v996 = vpop.permute.xlu0 %995
        %997 = vrot.lane.b32.xlu0 %v970, 125
        %v998 = vpop.permute.xlu0 %997
        %999 = vrot.lane.b32.xlu0 %v972, 125
        %v1000 = vpop.permute.xlu0 %999
        %1001 = vrot.lane.b32.xlu0 %v974, 125
        %v1002 = vpop.permute.xlu0 %1001
        %1003 = vrot.lane.b32.xlu0 %v968, 124
        %v1004 = vpop.permute.xlu0 %1003
        %1005 = vrot.lane.b32.xlu0 %v970, 124
        %v1006 = vpop.permute.xlu0 %1005
        %1007 = vrot.lane.b32.xlu0 %v972, 124
        %v1008 = vpop.permute.xlu0 %1007
        %1009 = vrot.lane.b32.xlu0 %v974, 124
        %v1010 = vpop.permute.xlu0 %1009
        %1011 = vrot.lane.b32.xlu0 %v968, 123
        %v1012 = vpop.permute.xlu0 %1011
        %1013 = vrot.lane.b32.xlu0 %v970, 123
        %v1014 = vpop.permute.xlu0 %1013
        %1015 = vrot.lane.b32.xlu0 %v972, 123
        %v1016 = vpop.permute.xlu0 %1015
        %1017 = vrot.lane.b32.xlu0 %v974, 123
        %v1018 = vpop.permute.xlu0 %1017
        %1019 = vrot.lane.b32.xlu0 %v968, 122
        %v1020 = vpop.permute.xlu0 %1019
        %1021 = vrot.lane.b32.xlu0 %v970, 122
        %v1022 = vpop.permute.xlu0 %1021
        %1023 = vrot.lane.b32.xlu0 %v972, 122
        %v1024 = vpop.permute.xlu0 %1023
        %1025 = vrot.lane.b32.xlu0 %v974, 122
        %v1026 = vpop.permute.xlu0 %1025
        %1027 = vrot.lane.b32.xlu0 %v968, 121
        %v1028 = vpop.permute.xlu0 %1027
        %1029 = vrot.lane.b32.xlu0 %v970, 121
        %v1030 = vpop.permute.xlu0 %1029
        %1031 = vrot.lane.b32.xlu0 %v972, 121
        %v1032 = vpop.permute.xlu0 %1031
        %1033 = vrot.lane.b32.xlu0 %v974, 121
        %v1034 = vpop.permute.xlu0 %1033
        %1035 = vset.pattern.permute.xlu0 0
        %1036 = vperm.xlu0 %1035, %v968
        %v1037 = vpop.permute.xlu0 %1036
        %1039 = vset.pattern.permute.xlu0 0
        %1040 = vperm.xlu0 %1039, %v970
        %v1041 = vpop.permute.xlu0 %1040
        %1043 = vset.pattern.permute.xlu0 0
        %1044 = vperm.xlu0 %1043, %v972
        %v1045 = vpop.permute.xlu0 %1044
        %1047 = vset.pattern.permute.xlu0 0
        %1048 = vperm.xlu0 %1047, %v974
        %v1049 = vpop.permute.xlu0 %1048
        %1051 = vset.pattern.permute.xlu0 0
        %1052 = vperm.xlu0 %1051, %v980
        %v1053 = vpop.permute.xlu0 %1052
        %1055 = vset.pattern.permute.xlu0 0
        %1056 = vperm.xlu0 %1055, %v982
        %v1057 = vpop.permute.xlu0 %1056
        %1059 = vset.pattern.permute.xlu0 0
        %1060 = vperm.xlu0 %1059, %v984
        %v1061 = vpop.permute.xlu0 %1060
        %1063 = vset.pattern.permute.xlu0 0
        %1064 = vperm.xlu0 %1063, %v986
        %v1065 = vpop.permute.xlu0 %1064
        %1067 = vset.pattern.permute.xlu0 0
        %1068 = vperm.xlu0 %1067, %v988
        %v1069 = vpop.permute.xlu0 %1068
        %1071 = vset.pattern.permute.xlu0 0
        %1072 = vperm.xlu0 %1071, %v990
        %v1073 = vpop.permute.xlu0 %1072
        %1075 = vset.pattern.permute.xlu0 0
        %1076 = vperm.xlu0 %1075, %v992
        %v1077 = vpop.permute.xlu0 %1076
        %1079 = vset.pattern.permute.xlu0 0
        %1080 = vperm.xlu0 %1079, %v994
        %v1081 = vpop.permute.xlu0 %1080
        %1083 = vset.pattern.permute.xlu0 0
        %1084 = vperm.xlu0 %1083, %v996
        %v1085 = vpop.permute.xlu0 %1084
        %1087 = vset.pattern.permute.xlu0 0
        %1088 = vperm.xlu0 %1087, %v998
        %v1089 = vpop.permute.xlu0 %1088
        %1091 = vset.pattern.permute.xlu0 0
        %1092 = vperm.xlu0 %1091, %v1000
        %v1093 = vpop.permute.xlu0 %1092
        %1095 = vset.pattern.permute.xlu0 0
        %1096 = vperm.xlu0 %1095, %v1002
        %v1097 = vpop.permute.xlu0 %1096
        %1099 = vset.pattern.permute.xlu0 0
        %1100 = vperm.xlu0 %1099, %v1004
        %v1101 = vpop.permute.xlu0 %1100
        %1103 = vset.pattern.permute.xlu0 0
        %1104 = vperm.xlu0 %1103, %v1006
        %v1105 = vpop.permute.xlu0 %1104
        %1107 = vset.pattern.permute.xlu0 0
        %1108 = vperm.xlu0 %1107, %v1008
        %v1109 = vpop.permute.xlu0 %1108
        %1111 = vset.pattern.permute.xlu0 0
        %1112 = vperm.xlu0 %1111, %v1010
        %v1113 = vpop.permute.xlu0 %1112
        %1115 = vset.pattern.permute.xlu0 0
        %1116 = vperm.xlu0 %1115, %v1012
        %v1117 = vpop.permute.xlu0 %1116
        %1119 = vset.pattern.permute.xlu0 0
        %1120 = vperm.xlu0 %1119, %v1014
        %v1121 = vpop.permute.xlu0 %1120
        %1123 = vset.pattern.permute.xlu0 0
        %1124 = vperm.xlu0 %1123, %v1016
        %v1125 = vpop.permute.xlu0 %1124
        %1127 = vset.pattern.permute.xlu0 0
        %1128 = vperm.xlu0 %1127, %v1018
        %v1129 = vpop.permute.xlu0 %1128
        %1131 = vset.pattern.permute.xlu0 0
        %1132 = vperm.xlu0 %1131, %v1020
        %v1133 = vpop.permute.xlu0 %1132
        %1135 = vset.pattern.permute.xlu0 0
        %1136 = vperm.xlu0 %1135, %v1022
        %v1137 = vpop.permute.xlu0 %1136
        %1139 = vset.pattern.permute.xlu0 0
        %1140 = vperm.xlu0 %1139, %v1024
        %v1141 = vpop.permute.xlu0 %1140
        %1143 = vset.pattern.permute.xlu0 0
        %1144 = vperm.xlu0 %1143, %v1026
        %v1145 = vpop.permute.xlu0 %1144
        %1147 = vset.pattern.permute.xlu0 0
        %1148 = vperm.xlu0 %1147, %v1028
        %v1149 = vpop.permute.xlu0 %1148
        %1151 = vset.pattern.permute.xlu0 0
        %1152 = vperm.xlu0 %1151, %v1030
        %v1153 = vpop.permute.xlu0 %1152
        %1155 = vset.pattern.permute.xlu0 0
        %1156 = vperm.xlu0 %1155, %v1032
        %v1157 = vpop.permute.xlu0 %1156
        %1159 = vset.pattern.permute.xlu0 0
        %1160 = vperm.xlu0 %1159, %v1034
        %v1161 = vpop.permute.xlu0 %1160
        %v1163 = vmul.f32 %v356, %v1037
        %v1164 = vmul.f32 %v357, %v1037
        %v1165 = vmul.f32 %v358, %v1041
        %v1166 = vmul.f32 %v359, %v1041
        %v1167 = vmul.f32 %v360, %v1045
        %v1168 = vmul.f32 %v361, %v1045
        %v1169 = vmul.f32 %v362, %v1049
        %v1170 = vmul.f32 %v363, %v1049
        %v1171 = vmul.f32 %v364, %v1053
        %v1172 = vmul.f32 %v365, %v1053
        %v1173 = vmul.f32 %v366, %v1057
        %v1174 = vmul.f32 %v367, %v1057
        %v1175 = vmul.f32 %v368, %v1061
        %v1176 = vmul.f32 %v369, %v1061
        %v1177 = vmul.f32 %v370, %v1065
        %v1178 = vmul.f32 %v371, %v1065
        %v1179 = vmul.f32 %v372, %v1069
        %v1180 = vmul.f32 %v373, %v1069
        %v1181 = vmul.f32 %v374, %v1073
        %v1182 = vmul.f32 %v375, %v1073
        %v1183 = vmul.f32 %v376, %v1077
        %v1184 = vmul.f32 %v377, %v1077
        %v1185 = vmul.f32 %v378, %v1081
        %v1186 = vmul.f32 %v379, %v1081
        %v1187 = vmul.f32 %v380, %v1085
        %v1188 = vmul.f32 %v381, %v1085
        %v1189 = vmul.f32 %v382, %v1089
        %v1190 = vmul.f32 %v383, %v1089
        %v1191 = vmul.f32 %v384, %v1093
        %v1192 = vmul.f32 %v385, %v1093
        %v1193 = vmul.f32 %v386, %v1097
        %v1194 = vmul.f32 %v387, %v1097
        %v1195 = vmul.f32 %v388, %v1101
        %v1196 = vmul.f32 %v389, %v1101
        %v1197 = vmul.f32 %v390, %v1105
        %v1198 = vmul.f32 %v391, %v1105
        %v1199 = vmul.f32 %v392, %v1109
        %v1200 = vmul.f32 %v393, %v1109
        %v1201 = vmul.f32 %v394, %v1113
        %v1202 = vmul.f32 %v395, %v1113
        %v1203 = vmul.f32 %v396, %v1117
        %v1204 = vmul.f32 %v397, %v1117
        %v1205 = vmul.f32 %v398, %v1121
        %v1206 = vmul.f32 %v399, %v1121
        %v1207 = vmul.f32 %v400, %v1125
        %v1208 = vmul.f32 %v401, %v1125
        %v1209 = vmul.f32 %v402, %v1129
        %v1210 = vmul.f32 %v403, %v1129
        %v1211 = vmul.f32 %v404, %v1133
        %v1212 = vmul.f32 %v405, %v1133
        %v1213 = vmul.f32 %v406, %v1137
        %v1214 = vmul.f32 %v407, %v1137
        %v1215 = vmul.f32 %v408, %v1141
        %v1216 = vmul.f32 %v409, %v1141
        %v1217 = vmul.f32 %v410, %v1145
        %v1218 = vmul.f32 %v411, %v1145
        %v1219 = vmul.f32 %v412, %v1149
        %v1220 = vmul.f32 %v413, %v1149
        %v1221 = vmul.f32 %v414, %v1153
        %v1222 = vmul.f32 %v415, %v1153
        %v1223 = vmul.f32 %v416, %v1157
        %v1224 = vmul.f32 %v417, %v1157
        %v1225 = vmul.f32 %v418, %v1161
        %v1226 = vmul.f32 %v419, %v1161
        %v1227 = vadd.f32 %v1163, %v1165
        %v1228 = vadd.f32 %v1227, %v1167
        %v1229 = vadd.f32 %v1228, %v1169
        %v1230 = vrot.slane %v1229, 4
        %v1231 = vadd.f32 %v1229, %v1230
        %v1232 = vrot.slane %v1231, 2
        %v1233 = vadd.f32 %v1231, %v1232
        %v1234 = vrot.slane %v1233, 1
        %v1235 = vadd.f32 %v1233, %v1234
        %v1236 = vadd.f32 %v1164, %v1166
        %v1237 = vadd.f32 %v1236, %v1168
        %v1238 = vadd.f32 %v1237, %v1170
        %v1239 = vrot.slane %v1238, 4
        %v1240 = vadd.f32 %v1238, %v1239
        %v1241 = vrot.slane %v1240, 2
        %v1242 = vadd.f32 %v1240, %v1241
        %v1243 = vrot.slane %v1242, 1
        %v1244 = vadd.f32 %v1242, %v1243
        %v1245 = vrcp.pop 32.0
        %v1246 = vmul.f32 %v1235, %v1245
        %v1247 = vmul.f32 %v1244, %v1245
        %v1248 = vadd.f32 %v1171, %v1173
        %v1249 = vadd.f32 %v1248, %v1175
        %v1250 = vadd.f32 %v1249, %v1177
        %v1251 = vrot.slane %v1250, 4
        %v1252 = vadd.f32 %v1250, %v1251
        %v1253 = vrot.slane %v1252, 2
        %v1254 = vadd.f32 %v1252, %v1253
        %v1255 = vrot.slane %v1254, 1
        %v1256 = vadd.f32 %v1254, %v1255
        %v1257 = vadd.f32 %v1172, %v1174
        %v1258 = vadd.f32 %v1257, %v1176
        %v1259 = vadd.f32 %v1258, %v1178
        %v1260 = vrot.slane %v1259, 4
        %v1261 = vadd.f32 %v1259, %v1260
        %v1262 = vrot.slane %v1261, 2
        %v1263 = vadd.f32 %v1261, %v1262
        %v1264 = vrot.slane %v1263, 1
        %v1265 = vadd.f32 %v1263, %v1264
        %v1266 = vmul.f32 %v1256, %v1245
        %v1267 = vmul.f32 %v1265, %v1245
        %v1268 = vadd.f32 %v1179, %v1181
        %v1269 = vadd.f32 %v1268, %v1183
        %v1270 = vadd.f32 %v1269, %v1185
        %v1271 = vrot.slane %v1270, 4
        %v1272 = vadd.f32 %v1270, %v1271
        %v1273 = vrot.slane %v1272, 2
        %v1274 = vadd.f32 %v1272, %v1273
        %v1275 = vrot.slane %v1274, 1
        %v1276 = vadd.f32 %v1274, %v1275
        %v1277 = vadd.f32 %v1180, %v1182
        %v1278 = vadd.f32 %v1277, %v1184
        %v1279 = vadd.f32 %v1278, %v1186
        %v1280 = vrot.slane %v1279, 4
        %v1281 = vadd.f32 %v1279, %v1280
        %v1282 = vrot.slane %v1281, 2
        %v1283 = vadd.f32 %v1281, %v1282
        %v1284 = vrot.slane %v1283, 1
        %v1285 = vadd.f32 %v1283, %v1284
        %v1286 = vmul.f32 %v1276, %v1245
        %v1287 = vmul.f32 %v1285, %v1245
        %v1288 = vadd.f32 %v1187, %v1189
        %v1289 = vadd.f32 %v1288, %v1191
        %v1290 = vadd.f32 %v1289, %v1193
        %v1291 = vrot.slane %v1290, 4
        %v1292 = vadd.f32 %v1290, %v1291
        %v1293 = vrot.slane %v1292, 2
        %v1294 = vadd.f32 %v1292, %v1293
        %v1295 = vrot.slane %v1294, 1
        %v1296 = vadd.f32 %v1294, %v1295
        %v1297 = vadd.f32 %v1188, %v1190
        %v1298 = vadd.f32 %v1297, %v1192
        %v1299 = vadd.f32 %v1298, %v1194
        %v1300 = vrot.slane %v1299, 4
        %v1301 = vadd.f32 %v1299, %v1300
        %v1302 = vrot.slane %v1301, 2
        %v1303 = vadd.f32 %v1301, %v1302
        %v1304 = vrot.slane %v1303, 1
        %v1305 = vadd.f32 %v1303, %v1304
        %v1306 = vmul.f32 %v1296, %v1245
        %v1307 = vmul.f32 %v1305, %v1245
        %v1308 = vadd.f32 %v1195, %v1197
        %v1309 = vadd.f32 %v1308, %v1199
        %v1310 = vadd.f32 %v1309, %v1201
        %v1311 = vrot.slane %v1310, 4
        %v1312 = vadd.f32 %v1310, %v1311
        %v1313 = vrot.slane %v1312, 2
        %v1314 = vadd.f32 %v1312, %v1313
        %v1315 = vrot.slane %v1314, 1
        %v1316 = vadd.f32 %v1314, %v1315
        %v1317 = vadd.f32 %v1196, %v1198
        %v1318 = vadd.f32 %v1317, %v1200
        %v1319 = vadd.f32 %v1318, %v1202
        %v1320 = vrot.slane %v1319, 4
        %v1321 = vadd.f32 %v1319, %v1320
        %v1322 = vrot.slane %v1321, 2
        %v1323 = vadd.f32 %v1321, %v1322
        %v1324 = vrot.slane %v1323, 1
        %v1325 = vadd.f32 %v1323, %v1324
        %v1326 = vmul.f32 %v1316, %v1245
        %v1327 = vmul.f32 %v1325, %v1245
        %v1328 = vadd.f32 %v1203, %v1205
        %v1329 = vadd.f32 %v1328, %v1207
        %v1330 = vadd.f32 %v1329, %v1209
        %v1331 = vrot.slane %v1330, 4
        %v1332 = vadd.f32 %v1330, %v1331
        %v1333 = vrot.slane %v1332, 2
        %v1334 = vadd.f32 %v1332, %v1333
        %v1335 = vrot.slane %v1334, 1
        %v1336 = vadd.f32 %v1334, %v1335
        %v1337 = vadd.f32 %v1204, %v1206
        %v1338 = vadd.f32 %v1337, %v1208
        %v1339 = vadd.f32 %v1338, %v1210
        %v1340 = vrot.slane %v1339, 4
        %v1341 = vadd.f32 %v1339, %v1340
        %v1342 = vrot.slane %v1341, 2
        %v1343 = vadd.f32 %v1341, %v1342
        %v1344 = vrot.slane %v1343, 1
        %v1345 = vadd.f32 %v1343, %v1344
        %v1346 = vmul.f32 %v1336, %v1245
        %v1347 = vmul.f32 %v1345, %v1245
        %v1348 = vadd.f32 %v1211, %v1213
        %v1349 = vadd.f32 %v1348, %v1215
        %v1350 = vadd.f32 %v1349, %v1217
        %v1351 = vrot.slane %v1350, 4
        %v1352 = vadd.f32 %v1350, %v1351
        %v1353 = vrot.slane %v1352, 2
        %v1354 = vadd.f32 %v1352, %v1353
        %v1355 = vrot.slane %v1354, 1
        %v1356 = vadd.f32 %v1354, %v1355
        %v1357 = vadd.f32 %v1212, %v1214
        %v1358 = vadd.f32 %v1357, %v1216
        %v1359 = vadd.f32 %v1358, %v1218
        %v1360 = vrot.slane %v1359, 4
        %v1361 = vadd.f32 %v1359, %v1360
        %v1362 = vrot.slane %v1361, 2
        %v1363 = vadd.f32 %v1361, %v1362
        %v1364 = vrot.slane %v1363, 1
        %v1365 = vadd.f32 %v1363, %v1364
        %v1366 = vmul.f32 %v1356, %v1245
        %v1367 = vmul.f32 %v1365, %v1245
        %v1368 = vadd.f32 %v1219, %v1221
        %v1369 = vadd.f32 %v1368, %v1223
        %v1370 = vadd.f32 %v1369, %v1225
        %v1371 = vrot.slane %v1370, 4
        %v1372 = vadd.f32 %v1370, %v1371
        %v1373 = vrot.slane %v1372, 2
        %v1374 = vadd.f32 %v1372, %v1373
        %v1375 = vrot.slane %v1374, 1
        %v1376 = vadd.f32 %v1374, %v1375
        %v1377 = vadd.f32 %v1220, %v1222
        %v1378 = vadd.f32 %v1377, %v1224
        %v1379 = vadd.f32 %v1378, %v1226
        %v1380 = vrot.slane %v1379, 4
        %v1381 = vadd.f32 %v1379, %v1380
        %v1382 = vrot.slane %v1381, 2
        %v1383 = vadd.f32 %v1381, %v1382
        %v1384 = vrot.slane %v1383, 1
        %v1385 = vadd.f32 %v1383, %v1384
        %v1386 = vmul.f32 %v1376, %v1245
        %v1387 = vmul.f32 %v1385, %v1245
        %vm1388 = vcmask 1040384
        %v1389 = vsel %vm1388, %v1246, %v1266
        %v1390 = vsel %vm1388, %v1247, %v1267
        %v1391 = vsel %vm842, %v1389, %v1286
        %v1392 = vsel %vm842, %v1390, %v1287
        %vm1393 = vcmask 1042432
        %v1394 = vsel %vm1393, %v1391, %v1306
        %v1395 = vsel %vm1393, %v1392, %v1307
        %vm1396 = vcmask 1043456
        %v1397 = vsel %vm1396, %v1394, %v1326
        %v1398 = vsel %vm1396, %v1395, %v1327
        %vm1399 = vcmask 1044480
        %v1400 = vsel %vm1399, %v1397, %v1346
        %v1401 = vsel %vm1399, %v1398, %v1347
        %vm1402 = vcmask 1045504
        %v1403 = vsel %vm1402, %v1400, %v1366
        %v1404 = vsel %vm1402, %v1401, %v1367
        %vm1405 = vcmask 1046528
        %v1406 = vsel %vm1405, %v1403, %v1386
        %v1407 = vsel %vm1405, %v1404, %v1387
        %v1408 = vmax.f32 %v1163, %v1167
        %v1409 = vmax.f32 %v1165, %v1169
        %v1410 = vmax.f32 %v1408, %v1409
        %v1411 = vrot.slane %v1410, 4
        %v1412 = vmax.f32 %v1410, %v1411
        %v1413 = vrot.slane %v1412, 2
        %v1414 = vmax.f32 %v1412, %v1413
        %v1415 = vrot.slane %v1414, 1
        %v1416 = vmax.f32 %v1414, %v1415
        %v1417 = vmax.f32 %v1164, %v1168
        %v1418 = vmax.f32 %v1166, %v1170
        %v1419 = vmax.f32 %v1417, %v1418
        %v1420 = vrot.slane %v1419, 4
        %v1421 = vmax.f32 %v1419, %v1420
        %v1422 = vrot.slane %v1421, 2
        %v1423 = vmax.f32 %v1421, %v1422
        %v1424 = vrot.slane %v1423, 1
        %v1425 = vmax.f32 %v1423, %v1424
        %v1426 = vmax.f32 %v1171, %v1175
        %v1427 = vmax.f32 %v1173, %v1177
        %v1428 = vmax.f32 %v1426, %v1427
        %v1429 = vrot.slane %v1428, 4
        %v1430 = vmax.f32 %v1428, %v1429
        %v1431 = vrot.slane %v1430, 2
        %v1432 = vmax.f32 %v1430, %v1431
        %v1433 = vrot.slane %v1432, 1
        %v1434 = vmax.f32 %v1432, %v1433
        %v1435 = vmax.f32 %v1172, %v1176
        %v1436 = vmax.f32 %v1174, %v1178
        %v1437 = vmax.f32 %v1435, %v1436
        %v1438 = vrot.slane %v1437, 4
        %v1439 = vmax.f32 %v1437, %v1438
        %v1440 = vrot.slane %v1439, 2
        %v1441 = vmax.f32 %v1439, %v1440
        %v1442 = vrot.slane %v1441, 1
        %v1443 = vmax.f32 %v1441, %v1442
        %v1444 = vmax.f32 %v1179, %v1183
        %v1445 = vmax.f32 %v1181, %v1185
        %v1446 = vmax.f32 %v1444, %v1445
        %v1447 = vrot.slane %v1446, 4
        %v1448 = vmax.f32 %v1446, %v1447
        %v1449 = vrot.slane %v1448, 2
        %v1450 = vmax.f32 %v1448, %v1449
        %v1451 = vrot.slane %v1450, 1
        %v1452 = vmax.f32 %v1450, %v1451
        %v1453 = vmax.f32 %v1180, %v1184
        %v1454 = vmax.f32 %v1182, %v1186
        %v1455 = vmax.f32 %v1453, %v1454
        %v1456 = vrot.slane %v1455, 4
        %v1457 = vmax.f32 %v1455, %v1456
        %v1458 = vrot.slane %v1457, 2
        %v1459 = vmax.f32 %v1457, %v1458
        %v1460 = vrot.slane %v1459, 1
        %v1461 = vmax.f32 %v1459, %v1460
        %v1462 = vmax.f32 %v1187, %v1191
        %v1463 = vmax.f32 %v1189, %v1193
        %v1464 = vmax.f32 %v1462, %v1463
        %v1465 = vrot.slane %v1464, 4
        %v1466 = vmax.f32 %v1464, %v1465
        %v1467 = vrot.slane %v1466, 2
        %v1468 = vmax.f32 %v1466, %v1467
        %v1469 = vrot.slane %v1468, 1
        %v1470 = vmax.f32 %v1468, %v1469
        %v1471 = vmax.f32 %v1188, %v1192
        %v1472 = vmax.f32 %v1190, %v1194
        %v1473 = vmax.f32 %v1471, %v1472
        %v1474 = vrot.slane %v1473, 4
        %v1475 = vmax.f32 %v1473, %v1474
        %v1476 = vrot.slane %v1475, 2
        %v1477 = vmax.f32 %v1475, %v1476
        %v1478 = vrot.slane %v1477, 1
        %v1479 = vmax.f32 %v1477, %v1478
        %v1480 = vmax.f32 %v1195, %v1199
        %v1481 = vmax.f32 %v1197, %v1201
        %v1482 = vmax.f32 %v1480, %v1481
        %v1483 = vrot.slane %v1482, 4
        %v1484 = vmax.f32 %v1482, %v1483
        %v1485 = vrot.slane %v1484, 2
        %v1486 = vmax.f32 %v1484, %v1485
        %v1487 = vrot.slane %v1486, 1
        %v1488 = vmax.f32 %v1486, %v1487
        %v1489 = vmax.f32 %v1196, %v1200
        %v1490 = vmax.f32 %v1198, %v1202
        %v1491 = vmax.f32 %v1489, %v1490
        %v1492 = vrot.slane %v1491, 4
        %v1493 = vmax.f32 %v1491, %v1492
        %v1494 = vrot.slane %v1493, 2
        %v1495 = vmax.f32 %v1493, %v1494
        %v1496 = vrot.slane %v1495, 1
        %v1497 = vmax.f32 %v1495, %v1496
        %v1498 = vmax.f32 %v1203, %v1207
        %v1499 = vmax.f32 %v1205, %v1209
        %v1500 = vmax.f32 %v1498, %v1499
        %v1501 = vrot.slane %v1500, 4
        %v1502 = vmax.f32 %v1500, %v1501
        %v1503 = vrot.slane %v1502, 2
        %v1504 = vmax.f32 %v1502, %v1503
        %v1505 = vrot.slane %v1504, 1
        %v1506 = vmax.f32 %v1504, %v1505
        %v1507 = vmax.f32 %v1204, %v1208
        %v1508 = vmax.f32 %v1206, %v1210
        %v1509 = vmax.f32 %v1507, %v1508
        %v1510 = vrot.slane %v1509, 4
        %v1511 = vmax.f32 %v1509, %v1510
        %v1512 = vrot.slane %v1511, 2
        %v1513 = vmax.f32 %v1511, %v1512
        %v1514 = vrot.slane %v1513, 1
        %v1515 = vmax.f32 %v1513, %v1514
        %v1516 = vmax.f32 %v1211, %v1215
        %v1517 = vmax.f32 %v1213, %v1217
        %v1518 = vmax.f32 %v1516, %v1517
        %v1519 = vrot.slane %v1518, 4
        %v1520 = vmax.f32 %v1518, %v1519
        %v1521 = vrot.slane %v1520, 2
        %v1522 = vmax.f32 %v1520, %v1521
        %v1523 = vrot.slane %v1522, 1
        %v1524 = vmax.f32 %v1522, %v1523
        %v1525 = vmax.f32 %v1212, %v1216
        %v1526 = vmax.f32 %v1214, %v1218
        %v1527 = vmax.f32 %v1525, %v1526
        %v1528 = vrot.slane %v1527, 4
        %v1529 = vmax.f32 %v1527, %v1528
        %v1530 = vrot.slane %v1529, 2
        %v1531 = vmax.f32 %v1529, %v1530
        %v1532 = vrot.slane %v1531, 1
        %v1533 = vmax.f32 %v1531, %v1532
        %v1534 = vmax.f32 %v1219, %v1223
        %v1535 = vmax.f32 %v1221, %v1225
        %v1536 = vmax.f32 %v1534, %v1535
        %v1537 = vrot.slane %v1536, 4
        %v1538 = vmax.f32 %v1536, %v1537
        %v1539 = vrot.slane %v1538, 2
        %v1540 = vmax.f32 %v1538, %v1539
        %v1541 = vrot.slane %v1540, 1
        %v1542 = vmax.f32 %v1540, %v1541
        %v1543 = vmax.f32 %v1220, %v1224
        %v1544 = vmax.f32 %v1222, %v1226
        %v1545 = vmax.f32 %v1543, %v1544
        %v1546 = vrot.slane %v1545, 4
        %v1547 = vmax.f32 %v1545, %v1546
        %v1548 = vrot.slane %v1547, 2
        %v1549 = vmax.f32 %v1547, %v1548
        %v1550 = vrot.slane %v1549, 1
        %v1551 = vmax.f32 %v1549, %v1550
        %v1552 = vsel %vm1388, %v1416, %v1434
        %v1553 = vsel %vm1388, %v1425, %v1443
        %v1554 = vsel %vm842, %v1552, %v1452
        %v1555 = vsel %vm842, %v1553, %v1461
        %v1556 = vsel %vm1393, %v1554, %v1470
        %v1557 = vsel %vm1393, %v1555, %v1479
        %v1558 = vsel %vm1396, %v1556, %v1488
        %v1559 = vsel %vm1396, %v1557, %v1497
        %v1560 = vsel %vm1399, %v1558, %v1506
        %v1561 = vsel %vm1399, %v1559, %v1515
        %v1562 = vsel %vm1402, %v1560, %v1524
        %v1563 = vsel %vm1402, %v1561, %v1533
        %v1564 = vsel %vm1405, %v1562, %v1542
        %v1565 = vsel %vm1405, %v1563, %v1551
        %v1566 = vld [vmem:[%s5] sm:$0x7f]
        %v1567 = vld [vmem:[%s5 + $0x8] sm:$0x7f]
        %v1568 = vld [vmem:[%s6] sm:$0x7f]
        %v1569 = vld [vmem:[%s6 + $0x8] sm:$0x7f]
        %1570 = vrot.lane.b32.xlu0 %v1406, 48
        %v1571 = vpop.permute.xlu0 %1570
        %1572 = vrot.lane.b32.xlu0 %v1407, 48
        %v1573 = vpop.permute.xlu0 %1572
        %v1574 = vlaneseq
        %v1575 = vand.u32 %v1574, 127
        %vm1576 = vcmp.lt.s32.totalorder %v1575, 48
        %v1577 = vsel %vm1576, %v1571, %v1573
        %v1578 = vsel %vm1576, %v1573, %v1571
        %1579 = vrot.lane.b32.xlu0 %v1564, 48
        %v1580 = vpop.permute.xlu0 %1579
        %1581 = vrot.lane.b32.xlu0 %v1565, 48
        %v1582 = vpop.permute.xlu0 %1581
        %v1583 = vsel %vm1576, %v1580, %v1582
        %v1584 = vsel %vm1576, %v1582, %v1580
        %v1585 = vlaneseq
        %v1586 = vshrl.u32 %v1585, 7
        %v1587 = vsub.s32 0, %v1586
        %v1588 = vrot.slane %v1566, %v1587
        %v1589 = vlaneseq
        %v1590 = vshrl.u32 %v1589, 7
        %v1591 = vsub.s32 0, %v1590
        %v1592 = vrot.slane %v1567, %v1591
        %v1593 = vmul.f32 %v1578, %v1588
        %v1594 = vmul.f32 %v1577, %v1592
        %v1595 = vmul.f32 %v1584, %v1588
        %v1596 = vmul.f32 %v1583, %v1592
        %1597 = vrot.lane.b32.xlu0 %v1406, 32
        %v1598 = vpop.permute.xlu0 %1597
        %1599 = vrot.lane.b32.xlu0 %v1407, 32
        %v1600 = vpop.permute.xlu0 %1599
        %vm1601 = vcmp.lt.s32.totalorder %v1575, 32
        %v1602 = vsel %vm1601, %v1598, %v1600
        %v1603 = vsel %vm1601, %v1600, %v1598
        %1604 = vrot.lane.b32.xlu0 %v1564, 32
        %v1605 = vpop.permute.xlu0 %1604
        %1606 = vrot.lane.b32.xlu0 %v1565, 32
        %v1607 = vpop.permute.xlu0 %1606
        %v1608 = vsel %vm1601, %v1605, %v1607
        %v1609 = vsel %vm1601, %v1607, %v1605
        %v1610 = vlaneseq
        %v1611 = vshrl.u32 %v1610, 7
        %v1612 = vsub.s32 1, %v1611
        %v1613 = vrot.slane %v1566, %v1612
        %v1614 = vlaneseq
        %v1615 = vshrl.u32 %v1614, 7
        %v1616 = vsub.s32 1, %v1615
        %v1617 = vrot.slane %v1567, %v1616
        %v1618 = vmul.f32 %v1603, %v1613
        %v1619 = vmul.f32 %v1602, %v1617
        %v1620 = vmul.f32 %v1609, %v1613
        %v1621 = vmul.f32 %v1608, %v1617
        %1622 = vrot.lane.b32.xlu0 %v1406, 16
        %v1623 = vpop.permute.xlu0 %1622
        %1624 = vrot.lane.b32.xlu0 %v1407, 16
        %v1625 = vpop.permute.xlu0 %1624
        %vm1626 = vcmp.lt.s32.totalorder %v1575, 16
        %v1627 = vsel %vm1626, %v1623, %v1625
        %v1628 = vsel %vm1626, %v1625, %v1623
        %1629 = vrot.lane.b32.xlu0 %v1564, 16
        %v1630 = vpop.permute.xlu0 %1629
        %1631 = vrot.lane.b32.xlu0 %v1565, 16
        %v1632 = vpop.permute.xlu0 %1631
        %v1633 = vsel %vm1626, %v1630, %v1632
        %v1634 = vsel %vm1626, %v1632, %v1630
        %v1635 = vlaneseq
        %v1636 = vshrl.u32 %v1635, 7
        %v1637 = vsub.s32 2, %v1636
        %v1638 = vrot.slane %v1566, %v1637
        %v1639 = vlaneseq
        %v1640 = vshrl.u32 %v1639, 7
        %v1641 = vsub.s32 2, %v1640
        %v1642 = vrot.slane %v1567, %v1641
        %v1643 = vmul.f32 %v1628, %v1638
        %v1644 = vmul.f32 %v1627, %v1642
        %v1645 = vmul.f32 %v1634, %v1638
        %v1646 = vmul.f32 %v1633, %v1642
        %1647 = vrot.lane.b32.xlu0 %v1406, 112
        %v1648 = vpop.permute.xlu0 %1647
        %1649 = vrot.lane.b32.xlu0 %v1407, 112
        %v1650 = vpop.permute.xlu0 %1649
        %vm1651 = vcmp.lt.s32.totalorder %v1575, 112
        %v1652 = vsel %vm1651, %v1648, %v1650
        %v1653 = vsel %vm1651, %v1650, %v1648
        %1654 = vrot.lane.b32.xlu0 %v1564, 112
        %v1655 = vpop.permute.xlu0 %1654
        %1656 = vrot.lane.b32.xlu0 %v1565, 112
        %v1657 = vpop.permute.xlu0 %1656
        %v1658 = vsel %vm1651, %v1655, %v1657
        %v1659 = vsel %vm1651, %v1657, %v1655
        %v1660 = vlaneseq
        %v1661 = vshrl.u32 %v1660, 7
        %v1662 = vsub.s32 4, %v1661
        %v1663 = vrot.slane %v1566, %v1662
        %v1664 = vlaneseq
        %v1665 = vshrl.u32 %v1664, 7
        %v1666 = vsub.s32 4, %v1665
        %v1667 = vrot.slane %v1567, %v1666
        %v1668 = vmul.f32 %v1652, %v1663
        %v1669 = vmul.f32 %v1653, %v1667
        %v1670 = vmul.f32 %v1658, %v1663
        %v1671 = vmul.f32 %v1659, %v1667
        %1672 = vrot.lane.b32.xlu0 %v1406, 96
        %v1673 = vpop.permute.xlu0 %1672
        %1674 = vrot.lane.b32.xlu0 %v1407, 96
        %v1675 = vpop.permute.xlu0 %1674
        %vm1676 = vcmp.lt.s32.totalorder %v1575, 96
        %v1677 = vsel %vm1676, %v1673, %v1675
        %v1678 = vsel %vm1676, %v1675, %v1673
        %1679 = vrot.lane.b32.xlu0 %v1564, 96
        %v1680 = vpop.permute.xlu0 %1679
        %1681 = vrot.lane.b32.xlu0 %v1565, 96
        %v1682 = vpop.permute.xlu0 %1681
        %v1683 = vsel %vm1676, %v1680, %v1682
        %v1684 = vsel %vm1676, %v1682, %v1680
        %v1685 = vlaneseq
        %v1686 = vshrl.u32 %v1685, 7
        %v1687 = vsub.s32 5, %v1686
        %v1688 = vrot.slane %v1566, %v1687
        %v1689 = vlaneseq
        %v1690 = vshrl.u32 %v1689, 7
        %v1691 = vsub.s32 5, %v1690
        %v1692 = vrot.slane %v1567, %v1691
        %v1693 = vmul.f32 %v1677, %v1688
        %v1694 = vmul.f32 %v1678, %v1692
        %v1695 = vmul.f32 %v1683, %v1688
        %v1696 = vmul.f32 %v1684, %v1692
        %1697 = vrot.lane.b32.xlu0 %v1406, 80
        %v1698 = vpop.permute.xlu0 %1697
        %1699 = vrot.lane.b32.xlu0 %v1407, 80
        %v1700 = vpop.permute.xlu0 %1699
        %vm1701 = vcmp.lt.s32.totalorder %v1575, 80
        %v1702 = vsel %vm1701, %v1698, %v1700
        %v1703 = vsel %vm1701, %v1700, %v1698
        %1704 = vrot.lane.b32.xlu0 %v1564, 80
        %v1705 = vpop.permute.xlu0 %1704
        %1706 = vrot.lane.b32.xlu0 %v1565, 80
        %v1707 = vpop.permute.xlu0 %1706
        %v1708 = vsel %vm1701, %v1705, %v1707
        %v1709 = vsel %vm1701, %v1707, %v1705
        %v1710 = vlaneseq
        %v1711 = vshrl.u32 %v1710, 7
        %v1712 = vsub.s32 6, %v1711
        %v1713 = vrot.slane %v1566, %v1712
        %v1714 = vlaneseq
        %v1715 = vshrl.u32 %v1714, 7
        %v1716 = vsub.s32 6, %v1715
        %v1717 = vrot.slane %v1567, %v1716
        %v1718 = vmul.f32 %v1702, %v1713
        %v1719 = vmul.f32 %v1703, %v1717
        %v1720 = vmul.f32 %v1708, %v1713
        %v1721 = vmul.f32 %v1709, %v1717
        %s1722 = sld [smem:[#allocation2]]
        %v1723 = vstv %s1722
        %s1724 = sld [smem:[#allocation3]]
        %s1725 = sld [smem:[#allocation3 + $0x31]]
        %v1726 = vstv %s1724
        %v1727 = vmul.f32 %v1726, %v1593
        %v1728 = vmul.f32 %v1726, %v1594
        %v1729 = vadd.f32 %v1727, 0.0
        %v1730 = vadd.f32 %v1728, 0.0
        %v1731 = vstv %s1725
        %v1732 = vmul.f32 %v1731, %v1595
        %v1733 = vmul.f32 %v1731, %v1596
        %v1734 = vadd.f32 %v1729, %v1732
        %v1735 = vadd.f32 %v1730, %v1733
        %s1736 = sld [smem:[#allocation3 + $0x7]]
        %s1737 = sld [smem:[#allocation3 + $0x38]]
        %v1738 = vstv %s1736
        %v1739 = vmul.f32 %v1738, %v1618
        %v1740 = vmul.f32 %v1738, %v1619
        %v1741 = vadd.f32 %v1734, %v1739
        %v1742 = vadd.f32 %v1735, %v1740
        %v1743 = vstv %s1737
        %v1744 = vmul.f32 %v1743, %v1620
        %v1745 = vmul.f32 %v1743, %v1621
        %v1746 = vadd.f32 %v1741, %v1744
        %v1747 = vadd.f32 %v1742, %v1745
        %s1748 = sld [smem:[#allocation3 + $0xe]]
        %s1749 = sld [smem:[#allocation3 + $0x3f]]
        %v1750 = vstv %s1748
        %v1751 = vmul.f32 %v1750, %v1643
        %v1752 = vmul.f32 %v1750, %v1644
        %v1753 = vadd.f32 %v1746, %v1751
        %v1754 = vadd.f32 %v1747, %v1752
        %v1755 = vstv %s1749
        %v1756 = vmul.f32 %v1755, %v1645
        %v1757 = vmul.f32 %v1755, %v1646
        %v1758 = vadd.f32 %v1753, %v1756
        %v1759 = vadd.f32 %v1754, %v1757
        %s1760 = sld [smem:[#allocation3 + $0x15]]
        %s1761 = sld [smem:[#allocation3 + $0x46]]
        %v1762 = vstv %s1760
        %v1763 = vmul.f32 %v1762, %v1406
        %v1764 = vmul.f32 %v1762, %v1407
        %v1765 = vadd.f32 %v1758, %v1763
        %v1766 = vadd.f32 %v1759, %v1764
        %v1767 = vstv %s1761
        %v1768 = vmul.f32 %v1767, %v1564
        %v1769 = vmul.f32 %v1767, %v1565
        %v1770 = vadd.f32 %v1765, %v1768
        %v1771 = vadd.f32 %v1766, %v1769
        %s1772 = sld [smem:[#allocation3 + $0x1c]]
        %s1773 = sld [smem:[#allocation3 + $0x4d]]
        %v1774 = vstv %s1772
        %v1775 = vmul.f32 %v1774, %v1668
        %v1776 = vmul.f32 %v1774, %v1669
        %v1777 = vadd.f32 %v1770, %v1775
        %v1778 = vadd.f32 %v1771, %v1776
        %v1779 = vstv %s1773
        %v1780 = vmul.f32 %v1779, %v1670
        %v1781 = vmul.f32 %v1779, %v1671
        %v1782 = vadd.f32 %v1777, %v1780
        %v1783 = vadd.f32 %v1778, %v1781
        %s1784 = sld [smem:[#allocation3 + $0x23]]
        %s1785 = sld [smem:[#allocation3 + $0x54]]
        %v1786 = vstv %s1784
        %v1787 = vmul.f32 %v1786, %v1693
        %v1788 = vmul.f32 %v1786, %v1694
        %v1789 = vadd.f32 %v1782, %v1787
        %v1790 = vadd.f32 %v1783, %v1788
        %v1791 = vstv %s1785
        %v1792 = vmul.f32 %v1791, %v1695
        %v1793 = vmul.f32 %v1791, %v1696
        %v1794 = vadd.f32 %v1789, %v1792
        %v1795 = vadd.f32 %v1790, %v1793
        %s1796 = sld [smem:[#allocation3 + $0x2a]]
        %s1797 = sld [smem:[#allocation3 + $0x5b]]
        %v1798 = vstv %s1796
        %v1799 = vmul.f32 %v1798, %v1718
        %v1800 = vmul.f32 %v1798, %v1719
        %v1801 = vadd.f32 %v1794, %v1799
        %v1802 = vadd.f32 %v1795, %v1800
        %v1803 = vstv %s1797
        %v1804 = vmul.f32 %v1803, %v1720
        %v1805 = vmul.f32 %v1803, %v1721
        %v1806 = vadd.f32 %v1801, %v1804
        %v1807 = vadd.f32 %v1802, %v1805
        %1808 = vrot.lane.b32.xlu0 %v1806, 3
        %v1809 = vpop.permute.xlu0 %1808
        %1810 = vrot.lane.b32.xlu0 %v1807, 3
        %v1811 = vpop.permute.xlu0 %1810
        %vm1812 = vcmp.lt.s32.totalorder %v1575, 3
        %v1813 = vsel %vm1812, %v1809, %v1811
        %v1814 = vsel %vm1812, %v1811, %v1809
        %v1815 = vlaneseq
        %v1816 = vshrl.u32 %v1815, 7
        %v1817 = vsub.s32 0, %v1816
        %v1818 = vrot.slane %v1568, %v1817
        %v1819 = vlaneseq
        %v1820 = vshrl.u32 %v1819, 7
        %v1821 = vsub.s32 0, %v1820
        %v1822 = vrot.slane %v1569, %v1821
        %v1823 = vmul.f32 %v1814, %v1818
        %v1824 = vmul.f32 %v1813, %v1822
        %v1825 = vadd.f32 %v1723, %v1823
        %v1826 = vadd.f32 %v1723, %v1824
        %s1827 = sld [smem:[#allocation3 + $0x1]]
        %s1828 = sld [smem:[#allocation3 + $0x32]]
        %v1829 = vstv %s1827
        %v1830 = vmul.f32 %v1829, %v1593
        %v1831 = vmul.f32 %v1829, %v1594
        %v1832 = vadd.f32 %v1830, 0.0
        %v1833 = vadd.f32 %v1831, 0.0
        %v1834 = vstv %s1828
        %v1835 = vmul.f32 %v1834, %v1595
        %v1836 = vmul.f32 %v1834, %v1596
        %v1837 = vadd.f32 %v1832, %v1835
        %v1838 = vadd.f32 %v1833, %v1836
        %s1839 = sld [smem:[#allocation3 + $0x8]]
        %s1840 = sld [smem:[#allocation3 + $0x39]]
        %v1841 = vstv %s1839
        %v1842 = vmul.f32 %v1841, %v1618
        %v1843 = vmul.f32 %v1841, %v1619
        %v1844 = vadd.f32 %v1837, %v1842
        %v1845 = vadd.f32 %v1838, %v1843
        %v1846 = vstv %s1840
        %v1847 = vmul.f32 %v1846, %v1620
        %v1848 = vmul.f32 %v1846, %v1621
        %v1849 = vadd.f32 %v1844, %v1847
        %v1850 = vadd.f32 %v1845, %v1848
        %s1851 = sld [smem:[#allocation3 + $0xf]]
        %s1852 = sld [smem:[#allocation3 + $0x40]]
        %v1853 = vstv %s1851
        %v1854 = vmul.f32 %v1853, %v1643
        %v1855 = vmul.f32 %v1853, %v1644
        %v1856 = vadd.f32 %v1849, %v1854
        %v1857 = vadd.f32 %v1850, %v1855
        %v1858 = vstv %s1852
        %v1859 = vmul.f32 %v1858, %v1645
        %v1860 = vmul.f32 %v1858, %v1646
        %v1861 = vadd.f32 %v1856, %v1859
        %v1862 = vadd.f32 %v1857, %v1860
        %s1863 = sld [smem:[#allocation3 + $0x16]]
        %s1864 = sld [smem:[#allocation3 + $0x47]]
        %v1865 = vstv %s1863
        %v1866 = vmul.f32 %v1865, %v1406
        %v1867 = vmul.f32 %v1865, %v1407
        %v1868 = vadd.f32 %v1861, %v1866
        %v1869 = vadd.f32 %v1862, %v1867
        %v1870 = vstv %s1864
        %v1871 = vmul.f32 %v1870, %v1564
        %v1872 = vmul.f32 %v1870, %v1565
        %v1873 = vadd.f32 %v1868, %v1871
        %v1874 = vadd.f32 %v1869, %v1872
        %s1875 = sld [smem:[#allocation3 + $0x1d]]
        %s1876 = sld [smem:[#allocation3 + $0x4e]]
        %v1877 = vstv %s1875
        %v1878 = vmul.f32 %v1877, %v1668
        %v1879 = vmul.f32 %v1877, %v1669
        %v1880 = vadd.f32 %v1873, %v1878
        %v1881 = vadd.f32 %v1874, %v1879
        %v1882 = vstv %s1876
        %v1883 = vmul.f32 %v1882, %v1670
        %v1884 = vmul.f32 %v1882, %v1671
        %v1885 = vadd.f32 %v1880, %v1883
        %v1886 = vadd.f32 %v1881, %v1884
        %s1887 = sld [smem:[#allocation3 + $0x24]]
        %s1888 = sld [smem:[#allocation3 + $0x55]]
        %v1889 = vstv %s1887
        %v1890 = vmul.f32 %v1889, %v1693
        %v1891 = vmul.f32 %v1889, %v1694
        %v1892 = vadd.f32 %v1885, %v1890
        %v1893 = vadd.f32 %v1886, %v1891
        %v1894 = vstv %s1888
        %v1895 = vmul.f32 %v1894, %v1695
        %v1896 = vmul.f32 %v1894, %v1696
        %v1897 = vadd.f32 %v1892, %v1895
        %v1898 = vadd.f32 %v1893, %v1896
        %s1899 = sld [smem:[#allocation3 + $0x2b]]
        %s1900 = sld [smem:[#allocation3 + $0x5c]]
        %v1901 = vstv %s1899
        %v1902 = vmul.f32 %v1901, %v1718
        %v1903 = vmul.f32 %v1901, %v1719
        %v1904 = vadd.f32 %v1897, %v1902
        %v1905 = vadd.f32 %v1898, %v1903
        %v1906 = vstv %s1900
        %v1907 = vmul.f32 %v1906, %v1720
        %v1908 = vmul.f32 %v1906, %v1721
        %v1909 = vadd.f32 %v1904, %v1907
        %v1910 = vadd.f32 %v1905, %v1908
        %1911 = vrot.lane.b32.xlu0 %v1909, 2
        %v1912 = vpop.permute.xlu0 %1911
        %1913 = vrot.lane.b32.xlu0 %v1910, 2
        %v1914 = vpop.permute.xlu0 %1913
        %vm1915 = vcmp.lt.s32.totalorder %v1575, 2
        %v1916 = vsel %vm1915, %v1912, %v1914
        %v1917 = vsel %vm1915, %v1914, %v1912
        %v1918 = vlaneseq
        %v1919 = vshrl.u32 %v1918, 7
        %v1920 = vsub.s32 1, %v1919
        %v1921 = vrot.slane %v1568, %v1920
        %v1922 = vlaneseq
        %v1923 = vshrl.u32 %v1922, 7
        %v1924 = vsub.s32 1, %v1923
        %v1925 = vrot.slane %v1569, %v1924
        %v1926 = vmul.f32 %v1917, %v1921
        %v1927 = vmul.f32 %v1916, %v1925
        %v1928 = vadd.f32 %v1825, %v1926
        %v1929 = vadd.f32 %v1826, %v1927
        %s1930 = sld [smem:[#allocation3 + $0x2]]
        %s1931 = sld [smem:[#allocation3 + $0x33]]
        %v1932 = vstv %s1930
        %v1933 = vmul.f32 %v1932, %v1593
        %v1934 = vmul.f32 %v1932, %v1594
        %v1935 = vadd.f32 %v1933, 0.0
        %v1936 = vadd.f32 %v1934, 0.0
        %v1937 = vstv %s1931
        %v1938 = vmul.f32 %v1937, %v1595
        %v1939 = vmul.f32 %v1937, %v1596
        %v1940 = vadd.f32 %v1935, %v1938
        %v1941 = vadd.f32 %v1936, %v1939
        %s1942 = sld [smem:[#allocation3 + $0x9]]
        %s1943 = sld [smem:[#allocation3 + $0x3a]]
        %v1944 = vstv %s1942
        %v1945 = vmul.f32 %v1944, %v1618
        %v1946 = vmul.f32 %v1944, %v1619
        %v1947 = vadd.f32 %v1940, %v1945
        %v1948 = vadd.f32 %v1941, %v1946
        %v1949 = vstv %s1943
        %v1950 = vmul.f32 %v1949, %v1620
        %v1951 = vmul.f32 %v1949, %v1621
        %v1952 = vadd.f32 %v1947, %v1950
        %v1953 = vadd.f32 %v1948, %v1951
        %s1954 = sld [smem:[#allocation3 + $0x10]]
        %s1955 = sld [smem:[#allocation3 + $0x41]]
        %v1956 = vstv %s1954
        %v1957 = vmul.f32 %v1956, %v1643
        %v1958 = vmul.f32 %v1956, %v1644
        %v1959 = vadd.f32 %v1952, %v1957
        %v1960 = vadd.f32 %v1953, %v1958
        %v1961 = vstv %s1955
        %v1962 = vmul.f32 %v1961, %v1645
        %v1963 = vmul.f32 %v1961, %v1646
        %v1964 = vadd.f32 %v1959, %v1962
        %v1965 = vadd.f32 %v1960, %v1963
        %s1966 = sld [smem:[#allocation3 + $0x17]]
        %s1967 = sld [smem:[#allocation3 + $0x48]]
        %v1968 = vstv %s1966
        %v1969 = vmul.f32 %v1968, %v1406
        %v1970 = vmul.f32 %v1968, %v1407
        %v1971 = vadd.f32 %v1964, %v1969
        %v1972 = vadd.f32 %v1965, %v1970
        %v1973 = vstv %s1967
        %v1974 = vmul.f32 %v1973, %v1564
        %v1975 = vmul.f32 %v1973, %v1565
        %v1976 = vadd.f32 %v1971, %v1974
        %v1977 = vadd.f32 %v1972, %v1975
        %s1978 = sld [smem:[#allocation3 + $0x1e]]
        %s1979 = sld [smem:[#allocation3 + $0x4f]]
        %v1980 = vstv %s1978
        %v1981 = vmul.f32 %v1980, %v1668
        %v1982 = vmul.f32 %v1980, %v1669
        %v1983 = vadd.f32 %v1976, %v1981
        %v1984 = vadd.f32 %v1977, %v1982
        %v1985 = vstv %s1979
        %v1986 = vmul.f32 %v1985, %v1670
        %v1987 = vmul.f32 %v1985, %v1671
        %v1988 = vadd.f32 %v1983, %v1986
        %v1989 = vadd.f32 %v1984, %v1987
        %s1990 = sld [smem:[#allocation3 + $0x25]]
        %s1991 = sld [smem:[#allocation3 + $0x56]]
        %v1992 = vstv %s1990
        %v1993 = vmul.f32 %v1992, %v1693
        %v1994 = vmul.f32 %v1992, %v1694
        %v1995 = vadd.f32 %v1988, %v1993
        %v1996 = vadd.f32 %v1989, %v1994
        %v1997 = vstv %s1991
        %v1998 = vmul.f32 %v1997, %v1695
        %v1999 = vmul.f32 %v1997, %v1696
        %v2000 = vadd.f32 %v1995, %v1998
        %v2001 = vadd.f32 %v1996, %v1999
        %s2002 = sld [smem:[#allocation3 + $0x2c]]
        %s2003 = sld [smem:[#allocation3 + $0x5d]]
        %v2004 = vstv %s2002
        %v2005 = vmul.f32 %v2004, %v1718
        %v2006 = vmul.f32 %v2004, %v1719
        %v2007 = vadd.f32 %v2000, %v2005
        %v2008 = vadd.f32 %v2001, %v2006
        %v2009 = vstv %s2003
        %v2010 = vmul.f32 %v2009, %v1720
        %v2011 = vmul.f32 %v2009, %v1721
        %v2012 = vadd.f32 %v2007, %v2010
        %v2013 = vadd.f32 %v2008, %v2011
        %2014 = vrot.lane.b32.xlu0 %v2012, 1
        %v2015 = vpop.permute.xlu0 %2014
        %2016 = vrot.lane.b32.xlu0 %v2013, 1
        %v2017 = vpop.permute.xlu0 %2016
        %vm2018 = vcmp.lt.s32.totalorder %v1575, 1
        %v2019 = vsel %vm2018, %v2015, %v2017
        %v2020 = vsel %vm2018, %v2017, %v2015
        %v2021 = vlaneseq
        %v2022 = vshrl.u32 %v2021, 7
        %v2023 = vsub.s32 2, %v2022
        %v2024 = vrot.slane %v1568, %v2023
        %v2025 = vlaneseq
        %v2026 = vshrl.u32 %v2025, 7
        %v2027 = vsub.s32 2, %v2026
        %v2028 = vrot.slane %v1569, %v2027
        %v2029 = vmul.f32 %v2020, %v2024
        %v2030 = vmul.f32 %v2019, %v2028
        %v2031 = vadd.f32 %v1928, %v2029
        %v2032 = vadd.f32 %v1929, %v2030
        %s2033 = sld [smem:[#allocation3 + $0x3]]
        %s2034 = sld [smem:[#allocation3 + $0x34]]
        %v2035 = vstv %s2033
        %v2036 = vmul.f32 %v2035, %v1593
        %v2037 = vmul.f32 %v2035, %v1594
        %v2038 = vadd.f32 %v2036, 0.0
        %v2039 = vadd.f32 %v2037, 0.0
        %v2040 = vstv %s2034
        %v2041 = vmul.f32 %v2040, %v1595
        %v2042 = vmul.f32 %v2040, %v1596
        %v2043 = vadd.f32 %v2038, %v2041
        %v2044 = vadd.f32 %v2039, %v2042
        %s2045 = sld [smem:[#allocation3 + $0xa]]
        %s2046 = sld [smem:[#allocation3 + $0x3b]]
        %v2047 = vstv %s2045
        %v2048 = vmul.f32 %v2047, %v1618
        %v2049 = vmul.f32 %v2047, %v1619
        %v2050 = vadd.f32 %v2043, %v2048
        %v2051 = vadd.f32 %v2044, %v2049
        %v2052 = vstv %s2046
        %v2053 = vmul.f32 %v2052, %v1620
        %v2054 = vmul.f32 %v2052, %v1621
        %v2055 = vadd.f32 %v2050, %v2053
        %v2056 = vadd.f32 %v2051, %v2054
        %s2057 = sld [smem:[#allocation3 + $0x11]]
        %s2058 = sld [smem:[#allocation3 + $0x42]]
        %v2059 = vstv %s2057
        %v2060 = vmul.f32 %v2059, %v1643
        %v2061 = vmul.f32 %v2059, %v1644
        %v2062 = vadd.f32 %v2055, %v2060
        %v2063 = vadd.f32 %v2056, %v2061
        %v2064 = vstv %s2058
        %v2065 = vmul.f32 %v2064, %v1645
        %v2066 = vmul.f32 %v2064, %v1646
        %v2067 = vadd.f32 %v2062, %v2065
        %v2068 = vadd.f32 %v2063, %v2066
        %s2069 = sld [smem:[#allocation3 + $0x18]]
        %s2070 = sld [smem:[#allocation3 + $0x49]]
        %v2071 = vstv %s2069
        %v2072 = vmul.f32 %v2071, %v1406
        %v2073 = vmul.f32 %v2071, %v1407
        %v2074 = vadd.f32 %v2067, %v2072
        %v2075 = vadd.f32 %v2068, %v2073
        %v2076 = vstv %s2070
        %v2077 = vmul.f32 %v2076, %v1564
        %v2078 = vmul.f32 %v2076, %v1565
        %v2079 = vadd.f32 %v2074, %v2077
        %v2080 = vadd.f32 %v2075, %v2078
        %s2081 = sld [smem:[#allocation3 + $0x1f]]
        %s2082 = sld [smem:[#allocation3 + $0x50]]
        %v2083 = vstv %s2081
        %v2084 = vmul.f32 %v2083, %v1668
        %v2085 = vmul.f32 %v2083, %v1669
        %v2086 = vadd.f32 %v2079, %v2084
        %v2087 = vadd.f32 %v2080, %v2085
        %v2088 = vstv %s2082
        %v2089 = vmul.f32 %v2088, %v1670
        %v2090 = vmul.f32 %v2088, %v1671
        %v2091 = vadd.f32 %v2086, %v2089
        %v2092 = vadd.f32 %v2087, %v2090
        %s2093 = sld [smem:[#allocation3 + $0x26]]
        %s2094 = sld [smem:[#allocation3 + $0x57]]
        %v2095 = vstv %s2093
        %v2096 = vmul.f32 %v2095, %v1693
        %v2097 = vmul.f32 %v2095, %v1694
        %v2098 = vadd.f32 %v2091, %v2096
        %v2099 = vadd.f32 %v2092, %v2097
        %v2100 = vstv %s2094
        %v2101 = vmul.f32 %v2100, %v1695
        %v2102 = vmul.f32 %v2100, %v1696
        %v2103 = vadd.f32 %v2098, %v2101
        %v2104 = vadd.f32 %v2099, %v2102
        %s2105 = sld [smem:[#allocation3 + $0x2d]]
        %s2106 = sld [smem:[#allocation3 + $0x5e]]
        %v2107 = vstv %s2105
        %v2108 = vmul.f32 %v2107, %v1718
        %v2109 = vmul.f32 %v2107, %v1719
        %v2110 = vadd.f32 %v2103, %v2108
        %v2111 = vadd.f32 %v2104, %v2109
        %v2112 = vstv %s2106
        %v2113 = vmul.f32 %v2112, %v1720
        %v2114 = vmul.f32 %v2112, %v1721
        %v2115 = vadd.f32 %v2110, %v2113
        %v2116 = vadd.f32 %v2111, %v2114
        %v2117 = vadd.f32 %v2031, %v2115
        %v2118 = vadd.f32 %v2032, %v2116
        %s2119 = sld [smem:[#allocation3 + $0x4]]
        %s2120 = sld [smem:[#allocation3 + $0x35]]
        %v2121 = vstv %s2119
        %v2122 = vmul.f32 %v2121, %v1593
        %v2123 = vmul.f32 %v2121, %v1594
        %v2124 = vadd.f32 %v2122, 0.0
        %v2125 = vadd.f32 %v2123, 0.0
        %v2126 = vstv %s2120
        %v2127 = vmul.f32 %v2126, %v1595
        %v2128 = vmul.f32 %v2126, %v1596
        %v2129 = vadd.f32 %v2124, %v2127
        %v2130 = vadd.f32 %v2125, %v2128
        %s2131 = sld [smem:[#allocation3 + $0xb]]
        %s2132 = sld [smem:[#allocation3 + $0x3c]]
        %v2133 = vstv %s2131
        %v2134 = vmul.f32 %v2133, %v1618
        %v2135 = vmul.f32 %v2133, %v1619
        %v2136 = vadd.f32 %v2129, %v2134
        %v2137 = vadd.f32 %v2130, %v2135
        %v2138 = vstv %s2132
        %v2139 = vmul.f32 %v2138, %v1620
        %v2140 = vmul.f32 %v2138, %v1621
        %v2141 = vadd.f32 %v2136, %v2139
        %v2142 = vadd.f32 %v2137, %v2140
        %s2143 = sld [smem:[#allocation3 + $0x12]]
        %s2144 = sld [smem:[#allocation3 + $0x43]]
        %v2145 = vstv %s2143
        %v2146 = vmul.f32 %v2145, %v1643
        %v2147 = vmul.f32 %v2145, %v1644
        %v2148 = vadd.f32 %v2141, %v2146
        %v2149 = vadd.f32 %v2142, %v2147
        %v2150 = vstv %s2144
        %v2151 = vmul.f32 %v2150, %v1645
        %v2152 = vmul.f32 %v2150, %v1646
        %v2153 = vadd.f32 %v2148, %v2151
        %v2154 = vadd.f32 %v2149, %v2152
        %s2155 = sld [smem:[#allocation3 + $0x19]]
        %s2156 = sld [smem:[#allocation3 + $0x4a]]
        %v2157 = vstv %s2155
        %v2158 = vmul.f32 %v2157, %v1406
        %v2159 = vmul.f32 %v2157, %v1407
        %v2160 = vadd.f32 %v2153, %v2158
        %v2161 = vadd.f32 %v2154, %v2159
        %v2162 = vstv %s2156
        %v2163 = vmul.f32 %v2162, %v1564
        %v2164 = vmul.f32 %v2162, %v1565
        %v2165 = vadd.f32 %v2160, %v2163
        %v2166 = vadd.f32 %v2161, %v2164
        %s2167 = sld [smem:[#allocation3 + $0x20]]
        %s2168 = sld [smem:[#allocation3 + $0x51]]
        %v2169 = vstv %s2167
        %v2170 = vmul.f32 %v2169, %v1668
        %v2171 = vmul.f32 %v2169, %v1669
        %v2172 = vadd.f32 %v2165, %v2170
        %v2173 = vadd.f32 %v2166, %v2171
        %v2174 = vstv %s2168
        %v2175 = vmul.f32 %v2174, %v1670
        %v2176 = vmul.f32 %v2174, %v1671
        %v2177 = vadd.f32 %v2172, %v2175
        %v2178 = vadd.f32 %v2173, %v2176
        %s2179 = sld [smem:[#allocation3 + $0x27]]
        %s2180 = sld [smem:[#allocation3 + $0x58]]
        %v2181 = vstv %s2179
        %v2182 = vmul.f32 %v2181, %v1693
        %v2183 = vmul.f32 %v2181, %v1694
        %v2184 = vadd.f32 %v2177, %v2182
        %v2185 = vadd.f32 %v2178, %v2183
        %v2186 = vstv %s2180
        %v2187 = vmul.f32 %v2186, %v1695
        %v2188 = vmul.f32 %v2186, %v1696
        %v2189 = vadd.f32 %v2184, %v2187
        %v2190 = vadd.f32 %v2185, %v2188
        %s2191 = sld [smem:[#allocation3 + $0x2e]]
        %s2192 = sld [smem:[#allocation3 + $0x5f]]
        %v2193 = vstv %s2191
        %v2194 = vmul.f32 %v2193, %v1718
        %v2195 = vmul.f32 %v2193, %v1719
        %v2196 = vadd.f32 %v2189, %v2194
        %v2197 = vadd.f32 %v2190, %v2195
        %v2198 = vstv %s2192
        %v2199 = vmul.f32 %v2198, %v1720
        %v2200 = vmul.f32 %v2198, %v1721
        %v2201 = vadd.f32 %v2196, %v2199
        %v2202 = vadd.f32 %v2197, %v2200
        %2203 = vrot.lane.b32.xlu0 %v2201, 127
        %v2204 = vpop.permute.xlu0 %2203
        %2205 = vrot.lane.b32.xlu0 %v2202, 127
        %v2206 = vpop.permute.xlu0 %2205
        %vm2207 = vcmp.lt.s32.totalorder %v1575, 127
        %v2208 = vsel %vm2207, %v2204, %v2206
        %v2209 = vsel %vm2207, %v2206, %v2204
        %v2210 = vlaneseq
        %v2211 = vshrl.u32 %v2210, 7
        %v2212 = vsub.s32 4, %v2211
        %v2213 = vrot.slane %v1568, %v2212
        %v2214 = vlaneseq
        %v2215 = vshrl.u32 %v2214, 7
        %v2216 = vsub.s32 4, %v2215
        %v2217 = vrot.slane %v1569, %v2216
        %v2218 = vmul.f32 %v2208, %v2213
        %v2219 = vmul.f32 %v2209, %v2217
        %v2220 = vadd.f32 %v2117, %v2218
        %v2221 = vadd.f32 %v2118, %v2219
        %s2222 = sld [smem:[#allocation3 + $0x5]]
        %s2223 = sld [smem:[#allocation3 + $0x36]]
        %v2224 = vstv %s2222
        %v2225 = vmul.f32 %v2224, %v1593
        %v2226 = vmul.f32 %v2224, %v1594
        %v2227 = vadd.f32 %v2225, 0.0
        %v2228 = vadd.f32 %v2226, 0.0
        %v2229 = vstv %s2223
        %v2230 = vmul.f32 %v2229, %v1595
        %v2231 = vmul.f32 %v2229, %v1596
        %v2232 = vadd.f32 %v2227, %v2230
        %v2233 = vadd.f32 %v2228, %v2231
        %s2234 = sld [smem:[#allocation3 + $0xc]]
        %s2235 = sld [smem:[#allocation3 + $0x3d]]
        %v2236 = vstv %s2234
        %v2237 = vmul.f32 %v2236, %v1618
        %v2238 = vmul.f32 %v2236, %v1619
        %v2239 = vadd.f32 %v2232, %v2237
        %v2240 = vadd.f32 %v2233, %v2238
        %v2241 = vstv %s2235
        %v2242 = vmul.f32 %v2241, %v1620
        %v2243 = vmul.f32 %v2241, %v1621
        %v2244 = vadd.f32 %v2239, %v2242
        %v2245 = vadd.f32 %v2240, %v2243
        %s2246 = sld [smem:[#allocation3 + $0x13]]
        %s2247 = sld [smem:[#allocation3 + $0x44]]
        %v2248 = vstv %s2246
        %v2249 = vmul.f32 %v2248, %v1643
        %v2250 = vmul.f32 %v2248, %v1644
        %v2251 = vadd.f32 %v2244, %v2249
        %v2252 = vadd.f32 %v2245, %v2250
        %v2253 = vstv %s2247
        %v2254 = vmul.f32 %v2253, %v1645
        %v2255 = vmul.f32 %v2253, %v1646
        %v2256 = vadd.f32 %v2251, %v2254
        %v2257 = vadd.f32 %v2252, %v2255
        %s2258 = sld [smem:[#allocation3 + $0x1a]]
        %s2259 = sld [smem:[#allocation3 + $0x4b]]
        %v2260 = vstv %s2258
        %v2261 = vmul.f32 %v2260, %v1406
        %v2262 = vmul.f32 %v2260, %v1407
        %v2263 = vadd.f32 %v2256, %v2261
        %v2264 = vadd.f32 %v2257, %v2262
        %v2265 = vstv %s2259
        %v2266 = vmul.f32 %v2265, %v1564
        %v2267 = vmul.f32 %v2265, %v1565
        %v2268 = vadd.f32 %v2263, %v2266
        %v2269 = vadd.f32 %v2264, %v2267
        %s2270 = sld [smem:[#allocation3 + $0x21]]
        %s2271 = sld [smem:[#allocation3 + $0x52]]
        %v2272 = vstv %s2270
        %v2273 = vmul.f32 %v2272, %v1668
        %v2274 = vmul.f32 %v2272, %v1669
        %v2275 = vadd.f32 %v2268, %v2273
        %v2276 = vadd.f32 %v2269, %v2274
        %v2277 = vstv %s2271
        %v2278 = vmul.f32 %v2277, %v1670
        %v2279 = vmul.f32 %v2277, %v1671
        %v2280 = vadd.f32 %v2275, %v2278
        %v2281 = vadd.f32 %v2276, %v2279
        %s2282 = sld [smem:[#allocation3 + $0x28]]
        %s2283 = sld [smem:[#allocation3 + $0x59]]
        %v2284 = vstv %s2282
        %v2285 = vmul.f32 %v2284, %v1693
        %v2286 = vmul.f32 %v2284, %v1694
        %v2287 = vadd.f32 %v2280, %v2285
        %v2288 = vadd.f32 %v2281, %v2286
        %v2289 = vstv %s2283
        %v2290 = vmul.f32 %v2289, %v1695
        %v2291 = vmul.f32 %v2289, %v1696
        %v2292 = vadd.f32 %v2287, %v2290
        %v2293 = vadd.f32 %v2288, %v2291
        %s2294 = sld [smem:[#allocation3 + $0x2f]]
        %s2295 = sld [smem:[#allocation3 + $0x60]]
        %v2296 = vstv %s2294
        %v2297 = vmul.f32 %v2296, %v1718
        %v2298 = vmul.f32 %v2296, %v1719
        %v2299 = vadd.f32 %v2292, %v2297
        %v2300 = vadd.f32 %v2293, %v2298
        %v2301 = vstv %s2295
        %v2302 = vmul.f32 %v2301, %v1720
        %v2303 = vmul.f32 %v2301, %v1721
        %v2304 = vadd.f32 %v2299, %v2302
        %v2305 = vadd.f32 %v2300, %v2303
        %2306 = vrot.lane.b32.xlu0 %v2304, 126
        %v2307 = vpop.permute.xlu0 %2306
        %2308 = vrot.lane.b32.xlu0 %v2305, 126
        %v2309 = vpop.permute.xlu0 %2308
        %vm2310 = vcmp.lt.s32.totalorder %v1575, 126
        %v2311 = vsel %vm2310, %v2307, %v2309
        %v2312 = vsel %vm2310, %v2309, %v2307
        %v2313 = vlaneseq
        %v2314 = vshrl.u32 %v2313, 7
        %v2315 = vsub.s32 5, %v2314
        %v2316 = vrot.slane %v1568, %v2315
        %v2317 = vlaneseq
        %v2318 = vshrl.u32 %v2317, 7
        %v2319 = vsub.s32 5, %v2318
        %v2320 = vrot.slane %v1569, %v2319
        %v2321 = vmul.f32 %v2311, %v2316
        %v2322 = vmul.f32 %v2312, %v2320
        %v2323 = vadd.f32 %v2220, %v2321
        %v2324 = vadd.f32 %v2221, %v2322
        %s2325 = sld [smem:[#allocation3 + $0x6]]
        %s2326 = sld [smem:[#allocation3 + $0x37]]
        %v2327 = vstv %s2325
        %v2328 = vmul.f32 %v2327, %v1593
        %v2329 = vmul.f32 %v2327, %v1594
        %v2330 = vadd.f32 %v2328, 0.0
        %v2331 = vadd.f32 %v2329, 0.0
        %v2332 = vstv %s2326
        %v2333 = vmul.f32 %v2332, %v1595
        %v2334 = vmul.f32 %v2332, %v1596
        %v2335 = vadd.f32 %v2330, %v2333
        %v2336 = vadd.f32 %v2331, %v2334
        %s2337 = sld [smem:[#allocation3 + $0xd]]
        %s2338 = sld [smem:[#allocation3 + $0x3e]]
        %v2339 = vstv %s2337
        %v2340 = vmul.f32 %v2339, %v1618
        %v2341 = vmul.f32 %v2339, %v1619
        %v2342 = vadd.f32 %v2335, %v2340
        %v2343 = vadd.f32 %v2336, %v2341
        %v2344 = vstv %s2338
        %v2345 = vmul.f32 %v2344, %v1620
        %v2346 = vmul.f32 %v2344, %v1621
        %v2347 = vadd.f32 %v2342, %v2345
        %v2348 = vadd.f32 %v2343, %v2346
        %s2349 = sld [smem:[#allocation3 + $0x14]]
        %s2350 = sld [smem:[#allocation3 + $0x45]]
        %v2351 = vstv %s2349
        %v2352 = vmul.f32 %v2351, %v1643
        %v2353 = vmul.f32 %v2351, %v1644
        %v2354 = vadd.f32 %v2347, %v2352
        %v2355 = vadd.f32 %v2348, %v2353
        %v2356 = vstv %s2350
        %v2357 = vmul.f32 %v2356, %v1645
        %v2358 = vmul.f32 %v2356, %v1646
        %v2359 = vadd.f32 %v2354, %v2357
        %v2360 = vadd.f32 %v2355, %v2358
        %s2361 = sld [smem:[#allocation3 + $0x1b]]
        %s2362 = sld [smem:[#allocation3 + $0x4c]]
        %v2363 = vstv %s2361
        %v2364 = vmul.f32 %v2363, %v1406
        %v2365 = vmul.f32 %v2363, %v1407
        %v2366 = vadd.f32 %v2359, %v2364
        %v2367 = vadd.f32 %v2360, %v2365
        %v2368 = vstv %s2362
        %v2369 = vmul.f32 %v2368, %v1564
        %v2370 = vmul.f32 %v2368, %v1565
        %v2371 = vadd.f32 %v2366, %v2369
        %v2372 = vadd.f32 %v2367, %v2370
        %s2373 = sld [smem:[#allocation3 + $0x22]]
        %s2374 = sld [smem:[#allocation3 + $0x53]]
        %v2375 = vstv %s2373
        %v2376 = vmul.f32 %v2375, %v1668
        %v2377 = vmul.f32 %v2375, %v1669
        %v2378 = vadd.f32 %v2371, %v2376
        %v2379 = vadd.f32 %v2372, %v2377
        %v2380 = vstv %s2374
        %v2381 = vmul.f32 %v2380, %v1670
        %v2382 = vmul.f32 %v2380, %v1671
        %v2383 = vadd.f32 %v2378, %v2381
        %v2384 = vadd.f32 %v2379, %v2382
        %s2385 = sld [smem:[#allocation3 + $0x29]]
        %s2386 = sld [smem:[#allocation3 + $0x5a]]
        %v2387 = vstv %s2385
        %v2388 = vmul.f32 %v2387, %v1693
        %v2389 = vmul.f32 %v2387, %v1694
        %v2390 = vadd.f32 %v2383, %v2388
        %v2391 = vadd.f32 %v2384, %v2389
        %v2392 = vstv %s2386
        %v2393 = vmul.f32 %v2392, %v1695
        %v2394 = vmul.f32 %v2392, %v1696
        %v2395 = vadd.f32 %v2390, %v2393
        %v2396 = vadd.f32 %v2391, %v2394
        %s2397 = sld [smem:[#allocation3 + $0x30]]
        %s2398 = sld [smem:[#allocation3 + $0x61]]
        %v2399 = vstv %s2397
        %v2400 = vmul.f32 %v2399, %v1718
        %v2401 = vmul.f32 %v2399, %v1719
        %v2402 = vadd.f32 %v2395, %v2400
        %v2403 = vadd.f32 %v2396, %v2401
        %v2404 = vstv %s2398
        %v2405 = vmul.f32 %v2404, %v1720
        %v2406 = vmul.f32 %v2404, %v1721
        %v2407 = vadd.f32 %v2402, %v2405
        %v2408 = vadd.f32 %v2403, %v2406
        %2409 = vrot.lane.b32.xlu0 %v2407, 125
        %v2410 = vpop.permute.xlu0 %2409
        %2411 = vrot.lane.b32.xlu0 %v2408, 125
        %v2412 = vpop.permute.xlu0 %2411
        %vm2413 = vcmp.lt.s32.totalorder %v1575, 125
        %v2414 = vsel %vm2413, %v2410, %v2412
        %v2415 = vsel %vm2413, %v2412, %v2410
        %v2416 = vlaneseq
        %v2417 = vshrl.u32 %v2416, 7
        %v2418 = vsub.s32 6, %v2417
        %v2419 = vrot.slane %v1568, %v2418
        %v2420 = vlaneseq
        %v2421 = vshrl.u32 %v2420, 7
        %v2422 = vsub.s32 6, %v2421
        %v2423 = vrot.slane %v1569, %v2422
        %v2424 = vmul.f32 %v2414, %v2419
        %v2425 = vmul.f32 %v2415, %v2423
        %v2426 = vadd.f32 %v2323, %v2424
        %v2427 = vadd.f32 %v2324, %v2425
        %v2428 = vxor.u32 %v2426, 2147483648
        %v2429 = vxor.u32 %v2427, 2147483648
        %v2430 = vmul.f32 %v2428, 1.442695
        %v2431 = vpow.pop %v2430
        %v2432 = vmul.f32 %v2429, 1.442695
        %v2433 = vpow.pop %v2432
        %v2434 = vadd.f32 %v2431, 1.0
        %v2435 = vadd.f32 %v2433, 1.0
        %v2436 = vrcp.pop %v2434
        %v2437 = vmul.f32 1.0, %v2436
        %v2438 = vrcp.pop %v2435
        %v2439 = vmul.f32 1.0, %v2438
        %v2440 = vlaneseq
        %v2441 = vshrl.u32 %v2440, 7
        %v2442 = vsub.s32 0, %v2441
        %v2443 = vrot.slane %v2437, %v2442
        %v2444 = vlaneseq
        %v2445 = vshrl.u32 %v2444, 7
        %v2446 = vsub.s32 0, %v2445
        %v2447 = vrot.slane %v2439, %v2446
        %v2448 = vlaneseq
        %v2449 = vshrl.u32 %v2448, 7
        %v2450 = vsub.s32 1, %v2449
        %v2451 = vrot.slane %v2437, %v2450
        %v2452 = vlaneseq
        %v2453 = vshrl.u32 %v2452, 7
        %v2454 = vsub.s32 1, %v2453
        %v2455 = vrot.slane %v2439, %v2454
        %v2456 = vlaneseq
        %v2457 = vshrl.u32 %v2456, 7
        %v2458 = vsub.s32 2, %v2457
        %v2459 = vrot.slane %v2437, %v2458
        %v2460 = vlaneseq
        %v2461 = vshrl.u32 %v2460, 7
        %v2462 = vsub.s32 2, %v2461
        %v2463 = vrot.slane %v2439, %v2462
        %v2464 = vlaneseq
        %v2465 = vshrl.u32 %v2464, 7
        %v2466 = vsub.s32 3, %v2465
        %v2467 = vrot.slane %v2437, %v2466
        %v2468 = vlaneseq
        %v2469 = vshrl.u32 %v2468, 7
        %v2470 = vsub.s32 3, %v2469
        %v2471 = vrot.slane %v2439, %v2470
        %v2472 = vlaneseq
        %v2473 = vshrl.u32 %v2472, 7
        %v2474 = vsub.s32 4, %v2473
        %v2475 = vrot.slane %v2437, %v2474
        %v2476 = vlaneseq
        %v2477 = vshrl.u32 %v2476, 7
        %v2478 = vsub.s32 4, %v2477
        %v2479 = vrot.slane %v2439, %v2478
        %v2480 = vlaneseq
        %v2481 = vshrl.u32 %v2480, 7
        %v2482 = vsub.s32 5, %v2481
        %v2483 = vrot.slane %v2437, %v2482
        %v2484 = vlaneseq
        %v2485 = vshrl.u32 %v2484, 7
        %v2486 = vsub.s32 5, %v2485
        %v2487 = vrot.slane %v2439, %v2486
        %v2488 = vlaneseq
        %v2489 = vshrl.u32 %v2488, 7
        %v2490 = vsub.s32 6, %v2489
        %v2491 = vrot.slane %v2437, %v2490
        %v2492 = vlaneseq
        %v2493 = vshrl.u32 %v2492, 7
        %v2494 = vsub.s32 6, %v2493
        %v2495 = vrot.slane %v2439, %v2494
        %v2496 = vlaneseq
        %v2497 = vshrl.u32 %v2496, 7
        %v2498 = vsub.s32 7, %v2497
        %v2499 = vrot.slane %v2437, %v2498
        %v2500 = vlaneseq
        %v2501 = vshrl.u32 %v2500, 7
        %v2502 = vsub.s32 7, %v2501
        %v2503 = vrot.slane %v2439, %v2502
        %v2504 = vmul.f32 %v1163, %v2443
        %v2505 = vmul.f32 %v1164, %v2447
        %v2506 = vmul.f32 %v1165, %v2443
        %v2507 = vmul.f32 %v1166, %v2447
        %v2508 = vmul.f32 %v1167, %v2443
        %v2509 = vmul.f32 %v1168, %v2447
        %v2510 = vmul.f32 %v1169, %v2443
        %v2511 = vmul.f32 %v1170, %v2447
        %v2512 = vmul.f32 %v1171, %v2451
        %v2513 = vmul.f32 %v1172, %v2455
        %v2514 = vmul.f32 %v1173, %v2451
        %v2515 = vmul.f32 %v1174, %v2455
        %v2516 = vmul.f32 %v1175, %v2451
        %v2517 = vmul.f32 %v1176, %v2455
        %v2518 = vmul.f32 %v1177, %v2451
        %v2519 = vmul.f32 %v1178, %v2455
        %v2520 = vmul.f32 %v1179, %v2459
        %v2521 = vmul.f32 %v1180, %v2463
        %v2522 = vmul.f32 %v1181, %v2459
        %v2523 = vmul.f32 %v1182, %v2463
        %v2524 = vmul.f32 %v1183, %v2459
        %v2525 = vmul.f32 %v1184, %v2463
        %v2526 = vmul.f32 %v1185, %v2459
        %v2527 = vmul.f32 %v1186, %v2463
        %v2528 = vmul.f32 %v1187, %v2467
        %v2529 = vmul.f32 %v1188, %v2471
        %v2530 = vmul.f32 %v1189, %v2467
        %v2531 = vmul.f32 %v1190, %v2471
        %v2532 = vmul.f32 %v1191, %v2467
        %v2533 = vmul.f32 %v1192, %v2471
        %v2534 = vmul.f32 %v1193, %v2467
        %v2535 = vmul.f32 %v1194, %v2471
        %v2536 = vmul.f32 %v1195, %v2475
        %v2537 = vmul.f32 %v1196, %v2479
        %v2538 = vmul.f32 %v1197, %v2475
        %v2539 = vmul.f32 %v1198, %v2479
        %v2540 = vmul.f32 %v1199, %v2475
        %v2541 = vmul.f32 %v1200, %v2479
        %v2542 = vmul.f32 %v1201, %v2475
        %v2543 = vmul.f32 %v1202, %v2479
        %v2544 = vmul.f32 %v1203, %v2483
        %v2545 = vmul.f32 %v1204, %v2487
        %v2546 = vmul.f32 %v1205, %v2483
        %v2547 = vmul.f32 %v1206, %v2487
        %v2548 = vmul.f32 %v1207, %v2483
        %v2549 = vmul.f32 %v1208, %v2487
        %v2550 = vmul.f32 %v1209, %v2483
        %v2551 = vmul.f32 %v1210, %v2487
        %v2552 = vmul.f32 %v1211, %v2491
        %v2553 = vmul.f32 %v1212, %v2495
        %v2554 = vmul.f32 %v1213, %v2491
        %v2555 = vmul.f32 %v1214, %v2495
        %v2556 = vmul.f32 %v1215, %v2491
        %v2557 = vmul.f32 %v1216, %v2495
        %v2558 = vmul.f32 %v1217, %v2491
        %v2559 = vmul.f32 %v1218, %v2495
        %v2560 = vmul.f32 %v1219, %v2499
        %v2561 = vmul.f32 %v1220, %v2503
        %v2562 = vmul.f32 %v1221, %v2499
        %v2563 = vmul.f32 %v1222, %v2503
        %v2564 = vmul.f32 %v1223, %v2499
        %v2565 = vmul.f32 %v1224, %v2503
        %v2566 = vmul.f32 %v1225, %v2499
        %v2567 = vmul.f32 %v1226, %v2503
        %2568 = vst [vmem:[%s354] sm:$0xff] %v2504
        %2569 = vst [vmem:[%s354 + $0x8] sm:$0xff] %v2505
        %2570 = vst [vmem:[%s354 + $0x10] sm:$0xff] %v2506
        %2571 = vst [vmem:[%s354 + $0x18] sm:$0xff] %v2507
        %2572 = vst [vmem:[%s354 + $0x20] sm:$0xff] %v2508
        %2573 = vst [vmem:[%s354 + $0x28] sm:$0xff] %v2509
        %2574 = vst [vmem:[%s354 + $0x30] sm:$0xff] %v2510
        %2575 = vst [vmem:[%s354 + $0x38] sm:$0xff] %v2511
        %2576 = vst [vmem:[%s354 + $0x40] sm:$0xff] %v2512
        %2577 = vst [vmem:[%s354 + $0x48] sm:$0xff] %v2513
        %2578 = vst [vmem:[%s354 + $0x50] sm:$0xff] %v2514
        %2579 = vst [vmem:[%s354 + $0x58] sm:$0xff] %v2515
        %2580 = vst [vmem:[%s354 + $0x60] sm:$0xff] %v2516
        %2581 = vst [vmem:[%s354 + $0x68] sm:$0xff] %v2517
        %2582 = vst [vmem:[%s354 + $0x70] sm:$0xff] %v2518
        %2583 = vst [vmem:[%s354 + $0x78] sm:$0xff] %v2519
        %2584 = vst [vmem:[%s354 + $0x80] sm:$0xff] %v2520
        %2585 = vst [vmem:[%s354 + $0x88] sm:$0xff] %v2521
        %2586 = vst [vmem:[%s354 + $0x90] sm:$0xff] %v2522
        %2587 = vst [vmem:[%s354 + $0x98] sm:$0xff] %v2523
        %2588 = vst [vmem:[%s354 + $0xa0] sm:$0xff] %v2524
        %2589 = vst [vmem:[%s354 + $0xa8] sm:$0xff] %v2525
        %2590 = vst [vmem:[%s354 + $0xb0] sm:$0xff] %v2526
        %2591 = vst [vmem:[%s354 + $0xb8] sm:$0xff] %v2527
        %2592 = vst [vmem:[%s354 + $0xc0] sm:$0xff] %v2528
        %2593 = vst [vmem:[%s354 + $0xc8] sm:$0xff] %v2529
        %2594 = vst [vmem:[%s354 + $0xd0] sm:$0xff] %v2530
        %2595 = vst [vmem:[%s354 + $0xd8] sm:$0xff] %v2531
        %2596 = vst [vmem:[%s354 + $0xe0] sm:$0xff] %v2532
        %2597 = vst [vmem:[%s354 + $0xe8] sm:$0xff] %v2533
        %2598 = vst [vmem:[%s354 + $0xf0] sm:$0xff] %v2534
        %2599 = vst [vmem:[%s354 + $0xf8] sm:$0xff] %v2535
        %2600 = vst [vmem:[%s354 + $0x100] sm:$0xff] %v2536
        %2601 = vst [vmem:[%s354 + $0x108] sm:$0xff] %v2537
        %2602 = vst [vmem:[%s354 + $0x110] sm:$0xff] %v2538
        %2603 = vst [vmem:[%s354 + $0x118] sm:$0xff] %v2539
        %2604 = vst [vmem:[%s354 + $0x120] sm:$0xff] %v2540
        %2605 = vst [vmem:[%s354 + $0x128] sm:$0xff] %v2541
        %2606 = vst [vmem:[%s354 + $0x130] sm:$0xff] %v2542
        %2607 = vst [vmem:[%s354 + $0x138] sm:$0xff] %v2543
        %2608 = vst [vmem:[%s354 + $0x140] sm:$0xff] %v2544
        %2609 = vst [vmem:[%s354 + $0x148] sm:$0xff] %v2545
        %2610 = vst [vmem:[%s354 + $0x150] sm:$0xff] %v2546
        %2611 = vst [vmem:[%s354 + $0x158] sm:$0xff] %v2547
        %2612 = vst [vmem:[%s354 + $0x160] sm:$0xff] %v2548
        %2613 = vst [vmem:[%s354 + $0x168] sm:$0xff] %v2549
        %2614 = vst [vmem:[%s354 + $0x170] sm:$0xff] %v2550
        %2615 = vst [vmem:[%s354 + $0x178] sm:$0xff] %v2551
        %2616 = vst [vmem:[%s354 + $0x180] sm:$0xff] %v2552
        %2617 = vst [vmem:[%s354 + $0x188] sm:$0xff] %v2553
        %2618 = vst [vmem:[%s354 + $0x190] sm:$0xff] %v2554
        %2619 = vst [vmem:[%s354 + $0x198] sm:$0xff] %v2555
        %2620 = vst [vmem:[%s354 + $0x1a0] sm:$0xff] %v2556
        %2621 = vst [vmem:[%s354 + $0x1a8] sm:$0xff] %v2557
        %2622 = vst [vmem:[%s354 + $0x1b0] sm:$0xff] %v2558
        %2623 = vst [vmem:[%s354 + $0x1b8] sm:$0xff] %v2559
        %2624 = vst [vmem:[%s354 + $0x1c0] sm:$0xff] %v2560
        %2625 = vst [vmem:[%s354 + $0x1c8] sm:$0xff] %v2561
        %2626 = vst [vmem:[%s354 + $0x1d0] sm:$0xff] %v2562
        %2627 = vst [vmem:[%s354 + $0x1d8] sm:$0xff] %v2563
        %2628 = vst [vmem:[%s354 + $0x1e0] sm:$0xff] %v2564
        %2629 = vst [vmem:[%s354 + $0x1e8] sm:$0xff] %v2565
        %2630 = vst [vmem:[%s354 + $0x1f0] sm:$0xff] %v2566
        %2631 = vst [vmem:[%s354 + $0x1f8] sm:$0xff] %v2567
        %s2632 = smul.u32 32, %s22
        %p2633 = scmp.lt.s32.totalorder %s2632, 63
        %s2634 = scalar_select %p2633, %s2632, 63
        %s2635 = smul.addr %s2634, 2
        %s2636 = smul.addr %s2635, 8
        %s2637 = scalar_lea.vmem %s9, %s2636
        // Predicated region
        $region61: #{cbam_pallas.1} parent=55 // pred_check
          %p2638 = pneg %p234
        $region62: #{cbam_pallas.1} parent=55 // pred_check_branch
          %2640 = sbr.rel (%p2638) target = $region64
        $region63: #{cbam_pallas.1} parent=55 // pred_region
          %s2641 = smul.u32 32, %s22
        $region64: #{cbam_pallas.1} parent=55 // pred_fallthru
          _
      $region56: #{cbam_pallas.1} parent=5 // pred_fallthru
        _
      %p2642 = scmp.le.s32.totalorder 2, %s17
      // Predicated region
      $region65: #{cbam_pallas.1} parent=5 // pred_check
        %p2643 = pneg %p2642
      $region66: #{cbam_pallas.1} parent=5 // pred_check_branch
        %2645 = sbr.rel (%p2643) target = $region68
      $region67: #{cbam_pallas.1} parent=5 // pred_region
        %s2646 = ssub.s32 %s17, 2
        // Predicated region
        $region69: #{cbam_pallas.1} parent=67 // pred_check
          %p2647 = pneg %p240
        $region70: #{cbam_pallas.1} parent=67 // pred_check_branch
          %2649 = sbr.rel (%p2647) target = $region72
        $region71: #{cbam_pallas.1} parent=67 // pred_region
          %s2650 = smul.u32 32, %s23
          %p2651 = scmp.lt.s32.totalorder %s2650, 63
          %s2652 = scalar_select %p2651, %s2650, 63
          %s2653 = smul.addr %s2652, 2
          %s2654 = smul.addr %s2653, 8
          %s2655 = scalar_lea.vmem %s9, %s2654
        $region72: #{cbam_pallas.1} parent=67 // pred_fallthru
          _
      $region68: #{cbam_pallas.1} parent=5 // pred_fallthru
        _
    $region6: #{cbam_pallas.1} parent=1 // loop_footer
      %s21 = sadd.s32 1, %s17
    $region7: #{cbam_pallas.1} parent=1 // loop_footer_branch
      %16 = sbr.rel target = $region3
    $region8: #{cbam_pallas.1} parent=1 // loop_exit
      _
    %2656 = vsyncpa [#allocation4], 1
    %s2657 = scalar_lea.sflag [#allocation4], 1
    %2658 = vsyncpa %s2657, 1

</llo_original>
